<compile_context>
chip_gen: v7x
topology: tpu7x:2x2x1
jax: 0.10.0
libtpu: 0.0.40
codegen_flags: <defaults>
</compile_context>

<pallas_src>
import functools

import jax
import jax.numpy as jnp
from jax.experimental import pallas as pl
from jax.experimental.pallas import tpu as pltpu

BN_EPS = 1e-5
STEM_KPAD = 256          # stem im2col K (7*7*3 = 147) zero-padded to a lane-aligned 256


# --------------------------------------------------------------------------
# The fused kernel: stem conv1 + bn1 + relu + maxpool + layer1 (one image per grid step)
# --------------------------------------------------------------------------
def _resnet_head_kernel(*refs, has_down, hs, ws, hp, wp):
    patches_ref, stem_w_ref, stem_b_ref = refs[:3]
    idx = 3
    block_refs = []
    for down in has_down:
        n = 8 if down else 6
        block_refs.append(refs[idx:idx + n])
        idx += n
    out_ref = refs[idx]

    f32, bf16 = jnp.float32, jnp.bfloat16

    # ---- stem: conv1 7x7/s2 as one bf16 matmul + folded-BN bias + ReLU (f32 epilogue) ----
    stem = jnp.dot(patches_ref[...], stem_w_ref[...], preferred_element_type=f32)
    stem = jnp.maximum(stem + stem_b_ref[...], 0.0)            # (hs*ws, 64) f32
    stem_sp = stem.reshape(hs, ws, 64)

    # ---- maxpool 3x3 / stride 2 / pad 1, f32, VPU only. Windows are clipped to valid
    #      elements, so no padding value is needed (matches PyTorch semantics exactly). ----
    row_pooled = []
    for i in range(hp):
        lo, hi = max(2 * i - 1, 0), min(2 * i + 2, hs)
        acc = stem_sp[lo]
        for r in range(lo + 1, hi):
            acc = jnp.maximum(acc, stem_sp[r])
        row_pooled.append(acc)                                  # (ws, 64)
    rows = jnp.stack(row_pooled, axis=0)                        # (hp, ws, 64)
    col_pooled = []
    for j in range(wp):
        lo, hi = max(2 * j - 1, 0), min(2 * j + 2, ws)
        acc = rows[:, lo]
        for c in range(lo + 1, hi):
            acc = jnp.maximum(acc, rows[:, c])
        col_pooled.append(acc)                                  # (hp, 64)
    pooled = jnp.stack(col_pooled, axis=1)                      # (hp, wp, 64)

    m = hp * wp
    x_bf = pooled.reshape(m, 64).astype(bf16)                   # layer1 input (single cast)

    # ---- layer1: 3 Bottlenecks; every activation stays in vregs / VMEM ----
    out_f32 = None
    for bi, down in enumerate(has_down):
        if down:
            w1, b1, w2, b2, w3, b3, wd, bd = block_refs[bi]
        else:
            w1, b1, w2, b2, w3, b3 = block_refs[bi]

        # conv1 (1x1) + bn1 + relu
        t1 = jnp.dot(x_bf, w1[...], preferred_element_type=f32) + b1[...]
        t1 = jnp.maximum(t1, 0.0).astype(bf16)                  # (m, 64) bf16

        # conv2 (3x3, pad 1) + bn2 + relu as ONE K=576 matmul: build the 9-tap im2col
        # operand from a bf16 zero-padded value (halo is true conv zero-padding).
        t1_sp = t1.reshape(hp, wp, 64)
        zc = jnp.zeros((hp, 1, 64), bf16)
        zr = jnp.zeros((1, wp + 2, 64), bf16)
        padded = jnp.concatenate([zc, t1_sp, zc], axis=1)       # (hp, wp+2, 64)
        padded = jnp.concatenate([zr, padded, zr], axis=0)      # (hp+2, wp+2, 64)
        taps = [padded[dy:dy + hp, dx:dx + wp, :].reshape(m, 64)
                for dy in range(3) for dx in range(3)]
        im2col = jnp.concatenate(taps, axis=-1)                 # (m, 576) bf16
        t2 = jnp.dot(im2col, w2[...], preferred_element_type=f32) + b2[...]
        t2 = jnp.maximum(t2, 0.0).astype(bf16)                  # (m, 64) bf16

        # conv3 (1x1) + bn3, residual add (f32), relu
        y = jnp.dot(t2, w3[...], preferred_element_type=f32) + b3[...]
        if down:
            identity = jnp.dot(x_bf, wd[...], preferred_element_type=f32) + bd[...]
        else:
            identity = x_bf.astype(f32)                         # residual carried as bf16
        out_f32 = jnp.maximum(y + identity, 0.0)                # (m, 256) f32
        x_bf = out_f32.astype(bf16)

    out_ref[...] = out_f32                                      # (m, 256) f32, lane-dense


def resnet_head(patches, stem_w, stem_b, blocks, n_img, hs, ws, hp, wp):
    """One fused pallas_call: grid over images, all weights fully resident in VMEM."""
    has_down = tuple('wd' in b for b in blocks)
    flat = [patches, stem_w, stem_b]
    for blk, down in zip(blocks, has_down):
        flat += [blk['w1'], blk['b1'], blk['w2'], blk['b2'], blk['w3'], blk['b3']]
        if down:
            flat += [blk['wd'], blk['bd']]

    ms_img = hs * ws                       # stem rows per image
    m_img = hp * wp                        # layer1 rows per image
    cout = blocks[-1]['w3'].shape[-1]

    def full_spec(arr):
        shp = arr.shape
        return pl.BlockSpec(shp, lambda i: (0,) * len(shp))

    in_specs = [pl.BlockSpec((ms_img, patches.shape[1]), lambda i: (i, 0))]
    in_specs += [full_spec(a) for a in flat[1:]]

    kernel = functools.partial(_resnet_head_kernel, has_down=has_down,
                               hs=hs, ws=ws, hp=hp, wp=wp)
    return pl.pallas_call(
        kernel,
        grid=(n_img,),
        in_specs=in_specs,
        out_specs=pl.BlockSpec((m_img, cout), lambda i: (i, 0)),
        out_shape=jax.ShapeDtypeStruct((n_img * m_img, cout), jnp.float32),
        compiler_params=pltpu.CompilerParams(
            dimension_semantics=("parallel",)),
    )(*flat)


# --------------------------------------------------------------------------
# XLA glue (pure data movement)
# --------------------------------------------------------------------------
def _im2col(x, kh, kw, stride, pad):
    """x NHWC -> (N*Ho*Wo, kh*kw*C) patches, tap ordering (kh, kw, cin)."""
    n, h, w, c = x.shape
    if pad:
        x = jnp.pad(x, ((0, 0), (pad, pad), (pad, pad), (0, 0)))
    ho = (h + 2 * pad - kh) // stride + 1
    wo = (w + 2 * pad - kw) // stride + 1
    cols = []
    for dy in range(kh):
        for dx in range(kw):
            cols.append(x[:, dy:dy + (ho - 1) * stride + 1:stride,
                             dx:dx + (wo - 1) * stride + 1:stride, :])
    patches = jnp.concatenate(cols, axis=-1)
    return patches.reshape(n * ho * wo, kh * kw * c), (n, ho, wo)


# --------------------------------------------------------------------------
# Forward pass (equivalent of MyResNet50(resnet50, output_layer='layer1'), eval mode)
# --------------------------------------------------------------------------
def my_resnet50_forward(x_nchw, fused):
    x = jnp.transpose(x_nchw, (0, 2, 3, 1))                       # NCHW -> NHWC
    # TODO(synk): the stem 7x7 im2col gather is XLA data-movement glue; all compute
    # (conv1/bn/relu/maxpool/layer1) runs inside the single fused Pallas kernel.
    patches, (n, hs, ws) = _im2col(x, 7, 7, 2, 3)
    k = patches.shape[1]
    patches = jnp.pad(patches, ((0, 0), (0, STEM_KPAD - k))).astype(jnp.bfloat16)
    assert hs % 2 == 0 and ws % 2 == 0
    hp, wp = hs // 2, ws // 2                                     # maxpool(3,2,1) output dims
    out = resnet_head(patches, fused['stem_w'], fused['stem_b'], fused['blocks'],
                      n, hs, ws, hp, wp)                           # (N*hp*wp, 256) f32
    out = out.reshape(n, hp, wp, out.shape[-1])
    return jnp.transpose(out, (0, 3, 1, 2))                        # NHWC -> NCHW


# --------------------------------------------------------------------------
# Deterministic synthetic parameters + inference-time BN folding
# --------------------------------------------------------------------------
def init_params(key):
    keys = iter(jax.random.split(key, 128))

    def conv_w(cout, cin, kh, kw):
        return 0.05 * jax.random.normal(next(keys), (kh, kw, cin, cout), jnp.float32)

    def bn_p(c):
        gamma = 1.0 + 0.1 * jax.random.normal(next(keys), (c,), jnp.float32)
        beta = 0.1 * jax.random.normal(next(keys), (c,), jnp.float32)
        mean = 0.1 * jax.random.normal(next(keys), (c,), jnp.float32)
        var = 0.5 + jax.random.uniform(next(keys), (c,), jnp.float32)
        return (gamma, beta, mean, var)

    params = {'conv1_w': conv_w(64, 3, 7, 7), 'bn1': bn_p(64)}
    inplanes, planes, expansion = 64, 64, 4
    blocks = []
    for i in range(3):                       # ResNet-50 layer1: 3 Bottlenecks, stride 1
        blk = {'conv1_w': conv_w(planes, inplanes, 1, 1), 'bn1': bn_p(planes),
               'conv2_w': conv_w(planes, planes, 3, 3),   'bn2': bn_p(planes),
               'conv3_w': conv_w(planes * expansion, planes, 1, 1),
               'bn3': bn_p(planes * expansion)}
        if i == 0:
            blk['down_w'] = conv_w(planes * expansion, inplanes, 1, 1)
            blk['down_bn'] = bn_p(planes * expansion)
        blocks.append(blk)
        inplanes = planes * expansion
    params['layer1'] = blocks
    return params


def _fold(w, bn):
    """Fold inference BN into the conv: bf16 (kh*kw*cin, cout) weight + f32 bias row."""
    gamma, beta, mean, var = bn
    scale = gamma / jnp.sqrt(var + BN_EPS)                  # per output channel
    bias = (beta - mean * scale).reshape(1, -1).astype(jnp.float32)
    kh, kw, cin, cout = w.shape
    wf = (w * scale).reshape(kh * kw * cin, cout)
    return wf.astype(jnp.bfloat16), bias


def fold_params(params):
    stem_w, stem_b = _fold(params['conv1_w'], params['bn1'])
    stem_w = jnp.pad(stem_w, ((0, STEM_KPAD - stem_w.shape[0]), (0, 0)))  # K pad 147 -> 256
    blocks = []
    for blk in params['layer1']:
        w1, b1 = _fold(blk['conv1_w'], blk['bn1'])
        w2, b2 = _fold(blk['conv2_w'], blk['bn2'])           # (576, 64), taps (dy,dx,cin)
        w3, b3 = _fold(blk['conv3_w'], blk['bn3'])
        fb = {'w1': w1, 'b1': b1, 'w2': w2, 'b2': b2, 'w3': w3, 'b3': b3}
        if 'down_w' in blk:
            wd, bd = _fold(blk['down_w'], blk['down_bn'])
            fb['wd'], fb['bd'] = wd, bd
        blocks.append(fb)
    return {'stem_w': stem_w, 'stem_b': stem_b, 'blocks': blocks}


if __name__ == "__main__":
    key = jax.random.PRNGKey(0)
    pkey, xkey = jax.random.split(key)
    params = init_params(pkey)
    fused = fold_params(params)

    # small NCHW input consistent with a ResNet stem (3 input channels)
    x = jax.random.normal(xkey, (2, 3, 32, 32), jnp.float32)

    fwd = jax.jit(my_resnet50_forward)
    out = jax.block_until_ready(fwd(x, fused))

    assert out.shape == (2, 256, 8, 8), out.shape
    assert bool(jnp.all(jnp.isfinite(out)))
    print("KERNEL_OK")
</pallas_src>

<mosaic_0001>
module attributes {stable_mosaic.version = 11 : i64} {
  func.func @_resnet_head_kernel(%arg0: i32, %arg1: memref<256x256xbf16, #tpu.memory_space<vmem>>, %arg2: memref<256x64xbf16, #tpu.memory_space<vmem>>, %arg3: memref<1x64xf32, #tpu.memory_space<vmem>>, %arg4: memref<64x64xbf16, #tpu.memory_space<vmem>>, %arg5: memref<1x64xf32, #tpu.memory_space<vmem>>, %arg6: memref<576x64xbf16, #tpu.memory_space<vmem>>, %arg7: memref<1x64xf32, #tpu.memory_space<vmem>>, %arg8: memref<64x256xbf16, #tpu.memory_space<vmem>>, %arg9: memref<1x256xf32, #tpu.memory_space<vmem>>, %arg10: memref<64x256xbf16, #tpu.memory_space<vmem>>, %arg11: memref<1x256xf32, #tpu.memory_space<vmem>>, %arg12: memref<256x64xbf16, #tpu.memory_space<vmem>>, %arg13: memref<1x64xf32, #tpu.memory_space<vmem>>, %arg14: memref<576x64xbf16, #tpu.memory_space<vmem>>, %arg15: memref<1x64xf32, #tpu.memory_space<vmem>>, %arg16: memref<64x256xbf16, #tpu.memory_space<vmem>>, %arg17: memref<1x256xf32, #tpu.memory_space<vmem>>, %arg18: memref<256x64xbf16, #tpu.memory_space<vmem>>, %arg19: memref<1x64xf32, #tpu.memory_space<vmem>>, %arg20: memref<576x64xbf16, #tpu.memory_space<vmem>>, %arg21: memref<1x64xf32, #tpu.memory_space<vmem>>, %arg22: memref<64x256xbf16, #tpu.memory_space<vmem>>, %arg23: memref<1x256xf32, #tpu.memory_space<vmem>>, %arg24: memref<64x256xf32, #tpu.memory_space<vmem>>) attributes {dimension_semantics = [#tpu.dimension_semantics<parallel>], iteration_bounds = array<i64: 2>, scalar_prefetch = 0 : i64, scratch_operands = 0 : i64, tpu.core_type = #tpu.core_type<tc>, window_params = [{transform_indices = @transform_0, window_bounds = array<i64: 256, 256>}, {pipeline_mode = #tpu.pipeline_mode<synchronous>, transform_indices = @transform_1, window_bounds = array<i64: 256, 64>}, {pipeline_mode = #tpu.pipeline_mode<synchronous>, transform_indices = @transform_2, window_bounds = array<i64: 1, 64>}, {pipeline_mode = #tpu.pipeline_mode<synchronous>, transform_indices = @transform_3, window_bounds = array<i64: 64, 64>}, {pipeline_mode = #tpu.pipeline_mode<synchronous>, transform_indices = @transform_4, window_bounds = array<i64: 1, 64>}, {pipeline_mode = #tpu.pipeline_mode<synchronous>, transform_indices = @transform_5, window_bounds = array<i64: 576, 64>}, {pipeline_mode = #tpu.pipeline_mode<synchronous>, transform_indices = @transform_6, window_bounds = array<i64: 1, 64>}, {pipeline_mode = #tpu.pipeline_mode<synchronous>, transform_indices = @transform_7, window_bounds = array<i64: 64, 256>}, {pipeline_mode = #tpu.pipeline_mode<synchronous>, transform_indices = @transform_8, window_bounds = array<i64: 1, 256>}, {pipeline_mode = #tpu.pipeline_mode<synchronous>, transform_indices = @transform_9, window_bounds = array<i64: 64, 256>}, {pipeline_mode = #tpu.pipeline_mode<synchronous>, transform_indices = @transform_10, window_bounds = array<i64: 1, 256>}, {pipeline_mode = #tpu.pipeline_mode<synchronous>, transform_indices = @transform_11, window_bounds = array<i64: 256, 64>}, {pipeline_mode = #tpu.pipeline_mode<synchronous>, transform_indices = @transform_12, window_bounds = array<i64: 1, 64>}, {pipeline_mode = #tpu.pipeline_mode<synchronous>, transform_indices = @transform_13, window_bounds = array<i64: 576, 64>}, {pipeline_mode = #tpu.pipeline_mode<synchronous>, transform_indices = @transform_14, window_bounds = array<i64: 1, 64>}, {pipeline_mode = #tpu.pipeline_mode<synchronous>, transform_indices = @transform_15, window_bounds = array<i64: 64, 256>}, {pipeline_mode = #tpu.pipeline_mode<synchronous>, transform_indices = @transform_16, window_bounds = array<i64: 1, 256>}, {pipeline_mode = #tpu.pipeline_mode<synchronous>, transform_indices = @transform_17, window_bounds = array<i64: 256, 64>}, {pipeline_mode = #tpu.pipeline_mode<synchronous>, transform_indices = @transform_18, window_bounds = array<i64: 1, 64>}, {pipeline_mode = #tpu.pipeline_mode<synchronous>, transform_indices = @transform_19, window_bounds = array<i64: 576, 64>}, {pipeline_mode = #tpu.pipeline_mode<synchronous>, transform_indices = @transform_20, window_bounds = array<i64: 1, 64>}, {pipeline_mode = #tpu.pipeline_mode<synchronous>, transform_indices = @transform_21, window_bounds = array<i64: 64, 256>}, {pipeline_mode = #tpu.pipeline_mode<synchronous>, transform_indices = @transform_22, window_bounds = array<i64: 1, 256>}, {transform_indices = @transform_23, window_bounds = array<i64: 64, 256>}]} {
    %c0 = arith.constant 0 : index
    %c0_0 = arith.constant 0 : index
    %0 = vector.load %arg1[%c0, %c0_0] : memref<256x256xbf16, #tpu.memory_space<vmem>>, vector<256x256xbf16>
    %c0_1 = arith.constant 0 : index
    %c0_2 = arith.constant 0 : index
    %1 = vector.load %arg2[%c0_1, %c0_2] : memref<256x64xbf16, #tpu.memory_space<vmem>>, vector<256x64xbf16>
    %cst = arith.constant dense<0.000000e+00> : vector<256x64xf32>
    %2 = tpu.matmul %0, %1, %cst {dimension_numbers = #tpu.dot_dimension_numbers<[1], [0], [0], [1], [0, 0, 1, 1], [], []>} : vector<256x256xbf16>, vector<256x64xbf16>, vector<256x64xf32> -> vector<256x64xf32>
    %c0_3 = arith.constant 0 : index
    %c0_4 = arith.constant 0 : index
    %3 = vector.load %arg3[%c0_3, %c0_4] : memref<1x64xf32, #tpu.memory_space<vmem>>, vector<1x64xf32>
    %4 = vector.broadcast %3 : vector<1x64xf32> to vector<256x64xf32>
    %5 = arith.addf %2, %4 : vector<256x64xf32>
    %cst_5 = arith.constant 0.000000e+00 : f32
    %6 = vector.broadcast %cst_5 : f32 to vector<256x64xf32>
    %7 = arith.maximumf %5, %6 : vector<256x64xf32>
    %8 = vector.shape_cast %7 : vector<256x64xf32> to vector<16x16x64xf32>
    %9 = vector.extract_strided_slice %8 {offsets = [0, 0, 0], sizes = [1, 16, 64], strides = [1, 1, 1]} : vector<16x16x64xf32> to vector<1x16x64xf32>
    %10 = vector.shape_cast %9 : vector<1x16x64xf32> to vector<16x64xf32>
    %11 = vector.extract_strided_slice %8 {offsets = [1, 0, 0], sizes = [1, 16, 64], strides = [1, 1, 1]} : vector<16x16x64xf32> to vector<1x16x64xf32>
    %12 = vector.shape_cast %11 : vector<1x16x64xf32> to vector<16x64xf32>
    %13 = arith.maximumf %10, %12 : vector<16x64xf32>
    %14 = vector.extract_strided_slice %8 {offsets = [1, 0, 0], sizes = [1, 16, 64], strides = [1, 1, 1]} : vector<16x16x64xf32> to vector<1x16x64xf32>
    %15 = vector.shape_cast %14 : vector<1x16x64xf32> to vector<16x64xf32>
    %16 = vector.extract_strided_slice %8 {offsets = [2, 0, 0], sizes = [1, 16, 64], strides = [1, 1, 1]} : vector<16x16x64xf32> to vector<1x16x64xf32>
    %17 = vector.shape_cast %16 : vector<1x16x64xf32> to vector<16x64xf32>
    %18 = arith.maximumf %15, %17 : vector<16x64xf32>
    %19 = vector.extract_strided_slice %8 {offsets = [3, 0, 0], sizes = [1, 16, 64], strides = [1, 1, 1]} : vector<16x16x64xf32> to vector<1x16x64xf32>
    %20 = vector.shape_cast %19 : vector<1x16x64xf32> to vector<16x64xf32>
    %21 = arith.maximumf %18, %20 : vector<16x64xf32>
    %22 = vector.extract_strided_slice %8 {offsets = [3, 0, 0], sizes = [1, 16, 64], strides = [1, 1, 1]} : vector<16x16x64xf32> to vector<1x16x64xf32>
    %23 = vector.shape_cast %22 : vector<1x16x64xf32> to vector<16x64xf32>
    %24 = vector.extract_strided_slice %8 {offsets = [4, 0, 0], sizes = [1, 16, 64], strides = [1, 1, 1]} : vector<16x16x64xf32> to vector<1x16x64xf32>
    %25 = vector.shape_cast %24 : vector<1x16x64xf32> to vector<16x64xf32>
    %26 = arith.maximumf %23, %25 : vector<16x64xf32>
    %27 = vector.extract_strided_slice %8 {offsets = [5, 0, 0], sizes = [1, 16, 64], strides = [1, 1, 1]} : vector<16x16x64xf32> to vector<1x16x64xf32>
    %28 = vector.shape_cast %27 : vector<1x16x64xf32> to vector<16x64xf32>
    %29 = arith.maximumf %26, %28 : vector<16x64xf32>
    %30 = vector.extract_strided_slice %8 {offsets = [5, 0, 0], sizes = [1, 16, 64], strides = [1, 1, 1]} : vector<16x16x64xf32> to vector<1x16x64xf32>
    %31 = vector.shape_cast %30 : vector<1x16x64xf32> to vector<16x64xf32>
    %32 = vector.extract_strided_slice %8 {offsets = [6, 0, 0], sizes = [1, 16, 64], strides = [1, 1, 1]} : vector<16x16x64xf32> to vector<1x16x64xf32>
    %33 = vector.shape_cast %32 : vector<1x16x64xf32> to vector<16x64xf32>
    %34 = arith.maximumf %31, %33 : vector<16x64xf32>
    %35 = vector.extract_strided_slice %8 {offsets = [7, 0, 0], sizes = [1, 16, 64], strides = [1, 1, 1]} : vector<16x16x64xf32> to vector<1x16x64xf32>
    %36 = vector.shape_cast %35 : vector<1x16x64xf32> to vector<16x64xf32>
    %37 = arith.maximumf %34, %36 : vector<16x64xf32>
    %38 = vector.extract_strided_slice %8 {offsets = [7, 0, 0], sizes = [1, 16, 64], strides = [1, 1, 1]} : vector<16x16x64xf32> to vector<1x16x64xf32>
    %39 = vector.shape_cast %38 : vector<1x16x64xf32> to vector<16x64xf32>
    %40 = vector.extract_strided_slice %8 {offsets = [8, 0, 0], sizes = [1, 16, 64], strides = [1, 1, 1]} : vector<16x16x64xf32> to vector<1x16x64xf32>
    %41 = vector.shape_cast %40 : vector<1x16x64xf32> to vector<16x64xf32>
    %42 = arith.maximumf %39, %41 : vector<16x64xf32>
    %43 = vector.extract_strided_slice %8 {offsets = [9, 0, 0], sizes = [1, 16, 64], strides = [1, 1, 1]} : vector<16x16x64xf32> to vector<1x16x64xf32>
    %44 = vector.shape_cast %43 : vector<1x16x64xf32> to vector<16x64xf32>
    %45 = arith.maximumf %42, %44 : vector<16x64xf32>
    %46 = vector.extract_strided_slice %8 {offsets = [9, 0, 0], sizes = [1, 16, 64], strides = [1, 1, 1]} : vector<16x16x64xf32> to vector<1x16x64xf32>
    %47 = vector.shape_cast %46 : vector<1x16x64xf32> to vector<16x64xf32>
    %48 = vector.extract_strided_slice %8 {offsets = [10, 0, 0], sizes = [1, 16, 64], strides = [1, 1, 1]} : vector<16x16x64xf32> to vector<1x16x64xf32>
    %49 = vector.shape_cast %48 : vector<1x16x64xf32> to vector<16x64xf32>
    %50 = arith.maximumf %47, %49 : vector<16x64xf32>
    %51 = vector.extract_strided_slice %8 {offsets = [11, 0, 0], sizes = [1, 16, 64], strides = [1, 1, 1]} : vector<16x16x64xf32> to vector<1x16x64xf32>
    %52 = vector.shape_cast %51 : vector<1x16x64xf32> to vector<16x64xf32>
    %53 = arith.maximumf %50, %52 : vector<16x64xf32>
    %54 = vector.extract_strided_slice %8 {offsets = [11, 0, 0], sizes = [1, 16, 64], strides = [1, 1, 1]} : vector<16x16x64xf32> to vector<1x16x64xf32>
    %55 = vector.shape_cast %54 : vector<1x16x64xf32> to vector<16x64xf32>
    %56 = vector.extract_strided_slice %8 {offsets = [12, 0, 0], sizes = [1, 16, 64], strides = [1, 1, 1]} : vector<16x16x64xf32> to vector<1x16x64xf32>
    %57 = vector.shape_cast %56 : vector<1x16x64xf32> to vector<16x64xf32>
    %58 = arith.maximumf %55, %57 : vector<16x64xf32>
    %59 = vector.extract_strided_slice %8 {offsets = [13, 0, 0], sizes = [1, 16, 64], strides = [1, 1, 1]} : vector<16x16x64xf32> to vector<1x16x64xf32>
    %60 = vector.shape_cast %59 : vector<1x16x64xf32> to vector<16x64xf32>
    %61 = arith.maximumf %58, %60 : vector<16x64xf32>
    %62 = vector.extract_strided_slice %8 {offsets = [13, 0, 0], sizes = [1, 16, 64], strides = [1, 1, 1]} : vector<16x16x64xf32> to vector<1x16x64xf32>
    %63 = vector.shape_cast %62 : vector<1x16x64xf32> to vector<16x64xf32>
    %64 = vector.extract_strided_slice %8 {offsets = [14, 0, 0], sizes = [1, 16, 64], strides = [1, 1, 1]} : vector<16x16x64xf32> to vector<1x16x64xf32>
    %65 = vector.shape_cast %64 : vector<1x16x64xf32> to vector<16x64xf32>
    %66 = arith.maximumf %63, %65 : vector<16x64xf32>
    %67 = vector.extract_strided_slice %8 {offsets = [15, 0, 0], sizes = [1, 16, 64], strides = [1, 1, 1]} : vector<16x16x64xf32> to vector<1x16x64xf32>
    %68 = vector.shape_cast %67 : vector<1x16x64xf32> to vector<16x64xf32>
    %69 = arith.maximumf %66, %68 : vector<16x64xf32>
    %70 = vector.shape_cast %13 : vector<16x64xf32> to vector<1x16x64xf32>
    %71 = vector.shape_cast %21 : vector<16x64xf32> to vector<1x16x64xf32>
    %72 = vector.shape_cast %29 : vector<16x64xf32> to vector<1x16x64xf32>
    %73 = vector.shape_cast %37 : vector<16x64xf32> to vector<1x16x64xf32>
    %74 = vector.shape_cast %45 : vector<16x64xf32> to vector<1x16x64xf32>
    %75 = vector.shape_cast %53 : vector<16x64xf32> to vector<1x16x64xf32>
    %76 = vector.shape_cast %61 : vector<16x64xf32> to vector<1x16x64xf32>
    %77 = vector.shape_cast %69 : vector<16x64xf32> to vector<1x16x64xf32>
    %78 = tpu.concatenate %70, %71, %72, %73, %74, %75, %76, %77 in 0 : vector<1x16x64xf32>, vector<1x16x64xf32>, vector<1x16x64xf32>, vector<1x16x64xf32>, vector<1x16x64xf32>, vector<1x16x64xf32>, vector<1x16x64xf32>, vector<1x16x64xf32> -> vector<8x16x64xf32>
    %79 = vector.extract_strided_slice %78 {offsets = [0, 0, 0], sizes = [8, 1, 64], strides = [1, 1, 1]} : vector<8x16x64xf32> to vector<8x1x64xf32>
    %80 = vector.shape_cast %79 : vector<8x1x64xf32> to vector<8x64xf32>
    %81 = vector.extract_strided_slice %78 {offsets = [0, 1, 0], sizes = [8, 1, 64], strides = [1, 1, 1]} : vector<8x16x64xf32> to vector<8x1x64xf32>
    %82 = vector.shape_cast %81 : vector<8x1x64xf32> to vector<8x64xf32>
    %83 = arith.maximumf %80, %82 : vector<8x64xf32>
    %84 = vector.extract_strided_slice %78 {offsets = [0, 1, 0], sizes = [8, 1, 64], strides = [1, 1, 1]} : vector<8x16x64xf32> to vector<8x1x64xf32>
    %85 = vector.shape_cast %84 : vector<8x1x64xf32> to vector<8x64xf32>
    %86 = vector.extract_strided_slice %78 {offsets = [0, 2, 0], sizes = [8, 1, 64], strides = [1, 1, 1]} : vector<8x16x64xf32> to vector<8x1x64xf32>
    %87 = vector.shape_cast %86 : vector<8x1x64xf32> to vector<8x64xf32>
    %88 = arith.maximumf %85, %87 : vector<8x64xf32>
    %89 = vector.extract_strided_slice %78 {offsets = [0, 3, 0], sizes = [8, 1, 64], strides = [1, 1, 1]} : vector<8x16x64xf32> to vector<8x1x64xf32>
    %90 = vector.shape_cast %89 : vector<8x1x64xf32> to vector<8x64xf32>
    %91 = arith.maximumf %88, %90 : vector<8x64xf32>
    %92 = vector.extract_strided_slice %78 {offsets = [0, 3, 0], sizes = [8, 1, 64], strides = [1, 1, 1]} : vector<8x16x64xf32> to vector<8x1x64xf32>
    %93 = vector.shape_cast %92 : vector<8x1x64xf32> to vector<8x64xf32>
    %94 = vector.extract_strided_slice %78 {offsets = [0, 4, 0], sizes = [8, 1, 64], strides = [1, 1, 1]} : vector<8x16x64xf32> to vector<8x1x64xf32>
    %95 = vector.shape_cast %94 : vector<8x1x64xf32> to vector<8x64xf32>
    %96 = arith.maximumf %93, %95 : vector<8x64xf32>
    %97 = vector.extract_strided_slice %78 {offsets = [0, 5, 0], sizes = [8, 1, 64], strides = [1, 1, 1]} : vector<8x16x64xf32> to vector<8x1x64xf32>
    %98 = vector.shape_cast %97 : vector<8x1x64xf32> to vector<8x64xf32>
    %99 = arith.maximumf %96, %98 : vector<8x64xf32>
    %100 = vector.extract_strided_slice %78 {offsets = [0, 5, 0], sizes = [8, 1, 64], strides = [1, 1, 1]} : vector<8x16x64xf32> to vector<8x1x64xf32>
    %101 = vector.shape_cast %100 : vector<8x1x64xf32> to vector<8x64xf32>
    %102 = vector.extract_strided_slice %78 {offsets = [0, 6, 0], sizes = [8, 1, 64], strides = [1, 1, 1]} : vector<8x16x64xf32> to vector<8x1x64xf32>
    %103 = vector.shape_cast %102 : vector<8x1x64xf32> to vector<8x64xf32>
    %104 = arith.maximumf %101, %103 : vector<8x64xf32>
    %105 = vector.extract_strided_slice %78 {offsets = [0, 7, 0], sizes = [8, 1, 64], strides = [1, 1, 1]} : vector<8x16x64xf32> to vector<8x1x64xf32>
    %106 = vector.shape_cast %105 : vector<8x1x64xf32> to vector<8x64xf32>
    %107 = arith.maximumf %104, %106 : vector<8x64xf32>
    %108 = vector.extract_strided_slice %78 {offsets = [0, 7, 0], sizes = [8, 1, 64], strides = [1, 1, 1]} : vector<8x16x64xf32> to vector<8x1x64xf32>
    %109 = vector.shape_cast %108 : vector<8x1x64xf32> to vector<8x64xf32>
    %110 = vector.extract_strided_slice %78 {offsets = [0, 8, 0], sizes = [8, 1, 64], strides = [1, 1, 1]} : vector<8x16x64xf32> to vector<8x1x64xf32>
    %111 = vector.shape_cast %110 : vector<8x1x64xf32> to vector<8x64xf32>
    %112 = arith.maximumf %109, %111 : vector<8x64xf32>
    %113 = vector.extract_strided_slice %78 {offsets = [0, 9, 0], sizes = [8, 1, 64], strides = [1, 1, 1]} : vector<8x16x64xf32> to vector<8x1x64xf32>
    %114 = vector.shape_cast %113 : vector<8x1x64xf32> to vector<8x64xf32>
    %115 = arith.maximumf %112, %114 : vector<8x64xf32>
    %116 = vector.extract_strided_slice %78 {offsets = [0, 9, 0], sizes = [8, 1, 64], strides = [1, 1, 1]} : vector<8x16x64xf32> to vector<8x1x64xf32>
    %117 = vector.shape_cast %116 : vector<8x1x64xf32> to vector<8x64xf32>
    %118 = vector.extract_strided_slice %78 {offsets = [0, 10, 0], sizes = [8, 1, 64], strides = [1, 1, 1]} : vector<8x16x64xf32> to vector<8x1x64xf32>
    %119 = vector.shape_cast %118 : vector<8x1x64xf32> to vector<8x64xf32>
    %120 = arith.maximumf %117, %119 : vector<8x64xf32>
    %121 = vector.extract_strided_slice %78 {offsets = [0, 11, 0], sizes = [8, 1, 64], strides = [1, 1, 1]} : vector<8x16x64xf32> to vector<8x1x64xf32>
    %122 = vector.shape_cast %121 : vector<8x1x64xf32> to vector<8x64xf32>
    %123 = arith.maximumf %120, %122 : vector<8x64xf32>
    %124 = vector.extract_strided_slice %78 {offsets = [0, 11, 0], sizes = [8, 1, 64], strides = [1, 1, 1]} : vector<8x16x64xf32> to vector<8x1x64xf32>
    %125 = vector.shape_cast %124 : vector<8x1x64xf32> to vector<8x64xf32>
    %126 = vector.extract_strided_slice %78 {offsets = [0, 12, 0], sizes = [8, 1, 64], strides = [1, 1, 1]} : vector<8x16x64xf32> to vector<8x1x64xf32>
    %127 = vector.shape_cast %126 : vector<8x1x64xf32> to vector<8x64xf32>
    %128 = arith.maximumf %125, %127 : vector<8x64xf32>
    %129 = vector.extract_strided_slice %78 {offsets = [0, 13, 0], sizes = [8, 1, 64], strides = [1, 1, 1]} : vector<8x16x64xf32> to vector<8x1x64xf32>
    %130 = vector.shape_cast %129 : vector<8x1x64xf32> to vector<8x64xf32>
    %131 = arith.maximumf %128, %130 : vector<8x64xf32>
    %132 = vector.extract_strided_slice %78 {offsets = [0, 13, 0], sizes = [8, 1, 64], strides = [1, 1, 1]} : vector<8x16x64xf32> to vector<8x1x64xf32>
    %133 = vector.shape_cast %132 : vector<8x1x64xf32> to vector<8x64xf32>
    %134 = vector.extract_strided_slice %78 {offsets = [0, 14, 0], sizes = [8, 1, 64], strides = [1, 1, 1]} : vector<8x16x64xf32> to vector<8x1x64xf32>
    %135 = vector.shape_cast %134 : vector<8x1x64xf32> to vector<8x64xf32>
    %136 = arith.maximumf %133, %135 : vector<8x64xf32>
    %137 = vector.extract_strided_slice %78 {offsets = [0, 15, 0], sizes = [8, 1, 64], strides = [1, 1, 1]} : vector<8x16x64xf32> to vector<8x1x64xf32>
    %138 = vector.shape_cast %137 : vector<8x1x64xf32> to vector<8x64xf32>
    %139 = arith.maximumf %136, %138 : vector<8x64xf32>
    %140 = vector.shape_cast %83 : vector<8x64xf32> to vector<8x1x64xf32>
    %141 = vector.shape_cast %91 : vector<8x64xf32> to vector<8x1x64xf32>
    %142 = vector.shape_cast %99 : vector<8x64xf32> to vector<8x1x64xf32>
    %143 = vector.shape_cast %107 : vector<8x64xf32> to vector<8x1x64xf32>
    %144 = vector.shape_cast %115 : vector<8x64xf32> to vector<8x1x64xf32>
    %145 = vector.shape_cast %123 : vector<8x64xf32> to vector<8x1x64xf32>
    %146 = vector.shape_cast %131 : vector<8x64xf32> to vector<8x1x64xf32>
    %147 = vector.shape_cast %139 : vector<8x64xf32> to vector<8x1x64xf32>
    %148 = tpu.concatenate %140, %141, %142, %143, %144, %145, %146, %147 in 1 : vector<8x1x64xf32>, vector<8x1x64xf32>, vector<8x1x64xf32>, vector<8x1x64xf32>, vector<8x1x64xf32>, vector<8x1x64xf32>, vector<8x1x64xf32>, vector<8x1x64xf32> -> vector<8x8x64xf32>
    %149 = vector.shape_cast %148 : vector<8x8x64xf32> to vector<64x64xf32>
    %150 = arith.truncf %149 : vector<64x64xf32> to vector<64x64xbf16>
    %c0_6 = arith.constant 0 : index
    %c0_7 = arith.constant 0 : index
    %151 = vector.load %arg4[%c0_6, %c0_7] : memref<64x64xbf16, #tpu.memory_space<vmem>>, vector<64x64xbf16>
    %cst_8 = arith.constant dense<0.000000e+00> : vector<64x64xf32>
    %152 = tpu.matmul %150, %151, %cst_8 {dimension_numbers = #tpu.dot_dimension_numbers<[1], [0], [0], [1], [0, 0, 1, 1], [], []>} : vector<64x64xbf16>, vector<64x64xbf16>, vector<64x64xf32> -> vector<64x64xf32>
    %c0_9 = arith.constant 0 : index
    %c0_10 = arith.constant 0 : index
    %153 = vector.load %arg5[%c0_9, %c0_10] : memref<1x64xf32, #tpu.memory_space<vmem>>, vector<1x64xf32>
    %154 = vector.broadcast %153 : vector<1x64xf32> to vector<64x64xf32>
    %155 = arith.addf %152, %154 : vector<64x64xf32>
    %cst_11 = arith.constant 0.000000e+00 : f32
    %156 = vector.broadcast %cst_11 : f32 to vector<64x64xf32>
    %157 = arith.maximumf %155, %156 : vector<64x64xf32>
    %158 = arith.truncf %157 : vector<64x64xf32> to vector<64x64xbf16>
    %159 = vector.shape_cast %158 : vector<64x64xbf16> to vector<8x8x64xbf16>
    %cst_12 = arith.constant 0.000000e+00 : bf16
    %160 = vector.broadcast %cst_12 : bf16 to vector<8x1x64xbf16>
    %cst_13 = arith.constant 0.000000e+00 : bf16
    %161 = vector.broadcast %cst_13 : bf16 to vector<1x10x64xbf16>
    %162 = tpu.concatenate %160, %159, %160 in 1 : vector<8x1x64xbf16>, vector<8x8x64xbf16>, vector<8x1x64xbf16> -> vector<8x10x64xbf16>
    %163 = tpu.concatenate %161, %162, %161 in 0 : vector<1x10x64xbf16>, vector<8x10x64xbf16>, vector<1x10x64xbf16> -> vector<10x10x64xbf16>
    %164 = vector.extract_strided_slice %163 {offsets = [0, 0, 0], sizes = [8, 8, 64], strides = [1, 1, 1]} : vector<10x10x64xbf16> to vector<8x8x64xbf16>
    %165 = vector.shape_cast %164 : vector<8x8x64xbf16> to vector<64x64xbf16>
    %166 = vector.extract_strided_slice %163 {offsets = [0, 1, 0], sizes = [8, 8, 64], strides = [1, 1, 1]} : vector<10x10x64xbf16> to vector<8x8x64xbf16>
    %167 = vector.shape_cast %166 : vector<8x8x64xbf16> to vector<64x64xbf16>
    %168 = vector.extract_strided_slice %163 {offsets = [0, 2, 0], sizes = [8, 8, 64], strides = [1, 1, 1]} : vector<10x10x64xbf16> to vector<8x8x64xbf16>
    %169 = vector.shape_cast %168 : vector<8x8x64xbf16> to vector<64x64xbf16>
    %170 = vector.extract_strided_slice %163 {offsets = [1, 0, 0], sizes = [8, 8, 64], strides = [1, 1, 1]} : vector<10x10x64xbf16> to vector<8x8x64xbf16>
    %171 = vector.shape_cast %170 : vector<8x8x64xbf16> to vector<64x64xbf16>
    %172 = vector.extract_strided_slice %163 {offsets = [1, 1, 0], sizes = [8, 8, 64], strides = [1, 1, 1]} : vector<10x10x64xbf16> to vector<8x8x64xbf16>
    %173 = vector.shape_cast %172 : vector<8x8x64xbf16> to vector<64x64xbf16>
    %174 = vector.extract_strided_slice %163 {offsets = [1, 2, 0], sizes = [8, 8, 64], strides = [1, 1, 1]} : vector<10x10x64xbf16> to vector<8x8x64xbf16>
    %175 = vector.shape_cast %174 : vector<8x8x64xbf16> to vector<64x64xbf16>
    %176 = vector.extract_strided_slice %163 {offsets = [2, 0, 0], sizes = [8, 8, 64], strides = [1, 1, 1]} : vector<10x10x64xbf16> to vector<8x8x64xbf16>
    %177 = vector.shape_cast %176 : vector<8x8x64xbf16> to vector<64x64xbf16>
    %178 = vector.extract_strided_slice %163 {offsets = [2, 1, 0], sizes = [8, 8, 64], strides = [1, 1, 1]} : vector<10x10x64xbf16> to vector<8x8x64xbf16>
    %179 = vector.shape_cast %178 : vector<8x8x64xbf16> to vector<64x64xbf16>
    %180 = vector.extract_strided_slice %163 {offsets = [2, 2, 0], sizes = [8, 8, 64], strides = [1, 1, 1]} : vector<10x10x64xbf16> to vector<8x8x64xbf16>
    %181 = vector.shape_cast %180 : vector<8x8x64xbf16> to vector<64x64xbf16>
    %182 = tpu.concatenate %165, %167, %169, %171, %173, %175, %177, %179, %181 in 1 : vector<64x64xbf16>, vector<64x64xbf16>, vector<64x64xbf16>, vector<64x64xbf16>, vector<64x64xbf16>, vector<64x64xbf16>, vector<64x64xbf16>, vector<64x64xbf16>, vector<64x64xbf16> -> vector<64x576xbf16>
    %c0_14 = arith.constant 0 : index
    %c0_15 = arith.constant 0 : index
    %183 = vector.load %arg6[%c0_14, %c0_15] : memref<576x64xbf16, #tpu.memory_space<vmem>>, vector<576x64xbf16>
    %cst_16 = arith.constant dense<0.000000e+00> : vector<64x64xf32>
    %184 = tpu.matmul %182, %183, %cst_16 {dimension_numbers = #tpu.dot_dimension_numbers<[1], [0], [0], [1], [0, 0, 1, 1], [], []>} : vector<64x576xbf16>, vector<576x64xbf16>, vector<64x64xf32> -> vector<64x64xf32>
    %c0_17 = arith.constant 0 : index
    %c0_18 = arith.constant 0 : index
    %185 = vector.load %arg7[%c0_17, %c0_18] : memref<1x64xf32, #tpu.memory_space<vmem>>, vector<1x64xf32>
    %186 = vector.broadcast %185 : vector<1x64xf32> to vector<64x64xf32>
    %187 = arith.addf %184, %186 : vector<64x64xf32>
    %cst_19 = arith.constant 0.000000e+00 : f32
    %188 = vector.broadcast %cst_19 : f32 to vector<64x64xf32>
    %189 = arith.maximumf %187, %188 : vector<64x64xf32>
    %190 = arith.truncf %189 : vector<64x64xf32> to vector<64x64xbf16>
    %c0_20 = arith.constant 0 : index
    %c0_21 = arith.constant 0 : index
    %191 = vector.load %arg8[%c0_20, %c0_21] : memref<64x256xbf16, #tpu.memory_space<vmem>>, vector<64x256xbf16>
    %cst_22 = arith.constant dense<0.000000e+00> : vector<64x256xf32>
    %192 = tpu.matmul %190, %191, %cst_22 {dimension_numbers = #tpu.dot_dimension_numbers<[1], [0], [0], [1], [0, 0, 1, 1], [], []>} : vector<64x64xbf16>, vector<64x256xbf16>, vector<64x256xf32> -> vector<64x256xf32>
    %c0_23 = arith.constant 0 : index
    %c0_24 = arith.constant 0 : index
    %193 = vector.load %arg9[%c0_23, %c0_24] : memref<1x256xf32, #tpu.memory_space<vmem>>, vector<1x256xf32>
    %194 = vector.broadcast %193 : vector<1x256xf32> to vector<64x256xf32>
    %195 = arith.addf %192, %194 : vector<64x256xf32>
    %c0_25 = arith.constant 0 : index
    %c0_26 = arith.constant 0 : index
    %196 = vector.load %arg10[%c0_25, %c0_26] : memref<64x256xbf16, #tpu.memory_space<vmem>>, vector<64x256xbf16>
    %cst_27 = arith.constant dense<0.000000e+00> : vector<64x256xf32>
    %197 = tpu.matmul %150, %196, %cst_27 {dimension_numbers = #tpu.dot_dimension_numbers<[1], [0], [0], [1], [0, 0, 1, 1], [], []>} : vector<64x64xbf16>, vector<64x256xbf16>, vector<64x256xf32> -> vector<64x256xf32>
    %c0_28 = arith.constant 0 : index
    %c0_29 = arith.constant 0 : index
    %198 = vector.load %arg11[%c0_28, %c0_29] : memref<1x256xf32, #tpu.memory_space<vmem>>, vector<1x256xf32>
    %199 = vector.broadcast %198 : vector<1x256xf32> to vector<64x256xf32>
    %200 = arith.addf %197, %199 : vector<64x256xf32>
    %201 = arith.addf %195, %200 : vector<64x256xf32>
    %cst_30 = arith.constant 0.000000e+00 : f32
    %202 = vector.broadcast %cst_30 : f32 to vector<64x256xf32>
    %203 = arith.maximumf %201, %202 : vector<64x256xf32>
    %204 = arith.truncf %203 : vector<64x256xf32> to vector<64x256xbf16>
    %c0_31 = arith.constant 0 : index
    %c0_32 = arith.constant 0 : index
    %205 = vector.load %arg12[%c0_31, %c0_32] : memref<256x64xbf16, #tpu.memory_space<vmem>>, vector<256x64xbf16>
    %cst_33 = arith.constant dense<0.000000e+00> : vector<64x64xf32>
    %206 = tpu.matmul %204, %205, %cst_33 {dimension_numbers = #tpu.dot_dimension_numbers<[1], [0], [0], [1], [0, 0, 1, 1], [], []>} : vector<64x256xbf16>, vector<256x64xbf16>, vector<64x64xf32> -> vector<64x64xf32>
    %c0_34 = arith.constant 0 : index
    %c0_35 = arith.constant 0 : index
    %207 = vector.load %arg13[%c0_34, %c0_35] : memref<1x64xf32, #tpu.memory_space<vmem>>, vector<1x64xf32>
    %208 = vector.broadcast %207 : vector<1x64xf32> to vector<64x64xf32>
    %209 = arith.addf %206, %208 : vector<64x64xf32>
    %cst_36 = arith.constant 0.000000e+00 : f32
    %210 = vector.broadcast %cst_36 : f32 to vector<64x64xf32>
    %211 = arith.maximumf %209, %210 : vector<64x64xf32>
    %212 = arith.truncf %211 : vector<64x64xf32> to vector<64x64xbf16>
    %213 = vector.shape_cast %212 : vector<64x64xbf16> to vector<8x8x64xbf16>
    %cst_37 = arith.constant 0.000000e+00 : bf16
    %214 = vector.broadcast %cst_37 : bf16 to vector<8x1x64xbf16>
    %cst_38 = arith.constant 0.000000e+00 : bf16
    %215 = vector.broadcast %cst_38 : bf16 to vector<1x10x64xbf16>
    %216 = tpu.concatenate %214, %213, %214 in 1 : vector<8x1x64xbf16>, vector<8x8x64xbf16>, vector<8x1x64xbf16> -> vector<8x10x64xbf16>
    %217 = tpu.concatenate %215, %216, %215 in 0 : vector<1x10x64xbf16>, vector<8x10x64xbf16>, vector<1x10x64xbf16> -> vector<10x10x64xbf16>
    %218 = vector.extract_strided_slice %217 {offsets = [0, 0, 0], sizes = [8, 8, 64], strides = [1, 1, 1]} : vector<10x10x64xbf16> to vector<8x8x64xbf16>
    %219 = vector.shape_cast %218 : vector<8x8x64xbf16> to vector<64x64xbf16>
    %220 = vector.extract_strided_slice %217 {offsets = [0, 1, 0], sizes = [8, 8, 64], strides = [1, 1, 1]} : vector<10x10x64xbf16> to vector<8x8x64xbf16>
    %221 = vector.shape_cast %220 : vector<8x8x64xbf16> to vector<64x64xbf16>
    %222 = vector.extract_strided_slice %217 {offsets = [0, 2, 0], sizes = [8, 8, 64], strides = [1, 1, 1]} : vector<10x10x64xbf16> to vector<8x8x64xbf16>
    %223 = vector.shape_cast %222 : vector<8x8x64xbf16> to vector<64x64xbf16>
    %224 = vector.extract_strided_slice %217 {offsets = [1, 0, 0], sizes = [8, 8, 64], strides = [1, 1, 1]} : vector<10x10x64xbf16> to vector<8x8x64xbf16>
    %225 = vector.shape_cast %224 : vector<8x8x64xbf16> to vector<64x64xbf16>
    %226 = vector.extract_strided_slice %217 {offsets = [1, 1, 0], sizes = [8, 8, 64], strides = [1, 1, 1]} : vector<10x10x64xbf16> to vector<8x8x64xbf16>
    %227 = vector.shape_cast %226 : vector<8x8x64xbf16> to vector<64x64xbf16>
    %228 = vector.extract_strided_slice %217 {offsets = [1, 2, 0], sizes = [8, 8, 64], strides = [1, 1, 1]} : vector<10x10x64xbf16> to vector<8x8x64xbf16>
    %229 = vector.shape_cast %228 : vector<8x8x64xbf16> to vector<64x64xbf16>
    %230 = vector.extract_strided_slice %217 {offsets = [2, 0, 0], sizes = [8, 8, 64], strides = [1, 1, 1]} : vector<10x10x64xbf16> to vector<8x8x64xbf16>
    %231 = vector.shape_cast %230 : vector<8x8x64xbf16> to vector<64x64xbf16>
    %232 = vector.extract_strided_slice %217 {offsets = [2, 1, 0], sizes = [8, 8, 64], strides = [1, 1, 1]} : vector<10x10x64xbf16> to vector<8x8x64xbf16>
    %233 = vector.shape_cast %232 : vector<8x8x64xbf16> to vector<64x64xbf16>
    %234 = vector.extract_strided_slice %217 {offsets = [2, 2, 0], sizes = [8, 8, 64], strides = [1, 1, 1]} : vector<10x10x64xbf16> to vector<8x8x64xbf16>
    %235 = vector.shape_cast %234 : vector<8x8x64xbf16> to vector<64x64xbf16>
    %236 = tpu.concatenate %219, %221, %223, %225, %227, %229, %231, %233, %235 in 1 : vector<64x64xbf16>, vector<64x64xbf16>, vector<64x64xbf16>, vector<64x64xbf16>, vector<64x64xbf16>, vector<64x64xbf16>, vector<64x64xbf16>, vector<64x64xbf16>, vector<64x64xbf16> -> vector<64x576xbf16>
    %c0_39 = arith.constant 0 : index
    %c0_40 = arith.constant 0 : index
    %237 = vector.load %arg14[%c0_39, %c0_40] : memref<576x64xbf16, #tpu.memory_space<vmem>>, vector<576x64xbf16>
    %cst_41 = arith.constant dense<0.000000e+00> : vector<64x64xf32>
    %238 = tpu.matmul %236, %237, %cst_41 {dimension_numbers = #tpu.dot_dimension_numbers<[1], [0], [0], [1], [0, 0, 1, 1], [], []>} : vector<64x576xbf16>, vector<576x64xbf16>, vector<64x64xf32> -> vector<64x64xf32>
    %c0_42 = arith.constant 0 : index
    %c0_43 = arith.constant 0 : index
    %239 = vector.load %arg15[%c0_42, %c0_43] : memref<1x64xf32, #tpu.memory_space<vmem>>, vector<1x64xf32>
    %240 = vector.broadcast %239 : vector<1x64xf32> to vector<64x64xf32>
    %241 = arith.addf %238, %240 : vector<64x64xf32>
    %cst_44 = arith.constant 0.000000e+00 : f32
    %242 = vector.broadcast %cst_44 : f32 to vector<64x64xf32>
    %243 = arith.maximumf %241, %242 : vector<64x64xf32>
    %244 = arith.truncf %243 : vector<64x64xf32> to vector<64x64xbf16>
    %c0_45 = arith.constant 0 : index
    %c0_46 = arith.constant 0 : index
    %245 = vector.load %arg16[%c0_45, %c0_46] : memref<64x256xbf16, #tpu.memory_space<vmem>>, vector<64x256xbf16>
    %cst_47 = arith.constant dense<0.000000e+00> : vector<64x256xf32>
    %246 = tpu.matmul %244, %245, %cst_47 {dimension_numbers = #tpu.dot_dimension_numbers<[1], [0], [0], [1], [0, 0, 1, 1], [], []>} : vector<64x64xbf16>, vector<64x256xbf16>, vector<64x256xf32> -> vector<64x256xf32>
    %c0_48 = arith.constant 0 : index
    %c0_49 = arith.constant 0 : index
    %247 = vector.load %arg17[%c0_48, %c0_49] : memref<1x256xf32, #tpu.memory_space<vmem>>, vector<1x256xf32>
    %248 = vector.broadcast %247 : vector<1x256xf32> to vector<64x256xf32>
    %249 = arith.addf %246, %248 : vector<64x256xf32>
    %250 = arith.extf %204 : vector<64x256xbf16> to vector<64x256xf32>
    %251 = arith.addf %249, %250 : vector<64x256xf32>
    %cst_50 = arith.constant 0.000000e+00 : f32
    %252 = vector.broadcast %cst_50 : f32 to vector<64x256xf32>
    %253 = arith.maximumf %251, %252 : vector<64x256xf32>
    %254 = arith.truncf %253 : vector<64x256xf32> to vector<64x256xbf16>
    %c0_51 = arith.constant 0 : index
    %c0_52 = arith.constant 0 : index
    %255 = vector.load %arg18[%c0_51, %c0_52] : memref<256x64xbf16, #tpu.memory_space<vmem>>, vector<256x64xbf16>
    %cst_53 = arith.constant dense<0.000000e+00> : vector<64x64xf32>
    %256 = tpu.matmul %254, %255, %cst_53 {dimension_numbers = #tpu.dot_dimension_numbers<[1], [0], [0], [1], [0, 0, 1, 1], [], []>} : vector<64x256xbf16>, vector<256x64xbf16>, vector<64x64xf32> -> vector<64x64xf32>
    %c0_54 = arith.constant 0 : index
    %c0_55 = arith.constant 0 : index
    %257 = vector.load %arg19[%c0_54, %c0_55] : memref<1x64xf32, #tpu.memory_space<vmem>>, vector<1x64xf32>
    %258 = vector.broadcast %257 : vector<1x64xf32> to vector<64x64xf32>
    %259 = arith.addf %256, %258 : vector<64x64xf32>
    %cst_56 = arith.constant 0.000000e+00 : f32
    %260 = vector.broadcast %cst_56 : f32 to vector<64x64xf32>
    %261 = arith.maximumf %259, %260 : vector<64x64xf32>
    %262 = arith.truncf %261 : vector<64x64xf32> to vector<64x64xbf16>
    %263 = vector.shape_cast %262 : vector<64x64xbf16> to vector<8x8x64xbf16>
    %cst_57 = arith.constant 0.000000e+00 : bf16
    %264 = vector.broadcast %cst_57 : bf16 to vector<8x1x64xbf16>
    %cst_58 = arith.constant 0.000000e+00 : bf16
    %265 = vector.broadcast %cst_58 : bf16 to vector<1x10x64xbf16>
    %266 = tpu.concatenate %264, %263, %264 in 1 : vector<8x1x64xbf16>, vector<8x8x64xbf16>, vector<8x1x64xbf16> -> vector<8x10x64xbf16>
    %267 = tpu.concatenate %265, %266, %265 in 0 : vector<1x10x64xbf16>, vector<8x10x64xbf16>, vector<1x10x64xbf16> -> vector<10x10x64xbf16>
    %268 = vector.extract_strided_slice %267 {offsets = [0, 0, 0], sizes = [8, 8, 64], strides = [1, 1, 1]} : vector<10x10x64xbf16> to vector<8x8x64xbf16>
    %269 = vector.shape_cast %268 : vector<8x8x64xbf16> to vector<64x64xbf16>
    %270 = vector.extract_strided_slice %267 {offsets = [0, 1, 0], sizes = [8, 8, 64], strides = [1, 1, 1]} : vector<10x10x64xbf16> to vector<8x8x64xbf16>
    %271 = vector.shape_cast %270 : vector<8x8x64xbf16> to vector<64x64xbf16>
    %272 = vector.extract_strided_slice %267 {offsets = [0, 2, 0], sizes = [8, 8, 64], strides = [1, 1, 1]} : vector<10x10x64xbf16> to vector<8x8x64xbf16>
    %273 = vector.shape_cast %272 : vector<8x8x64xbf16> to vector<64x64xbf16>
    %274 = vector.extract_strided_slice %267 {offsets = [1, 0, 0], sizes = [8, 8, 64], strides = [1, 1, 1]} : vector<10x10x64xbf16> to vector<8x8x64xbf16>
    %275 = vector.shape_cast %274 : vector<8x8x64xbf16> to vector<64x64xbf16>
    %276 = vector.extract_strided_slice %267 {offsets = [1, 1, 0], sizes = [8, 8, 64], strides = [1, 1, 1]} : vector<10x10x64xbf16> to vector<8x8x64xbf16>
    %277 = vector.shape_cast %276 : vector<8x8x64xbf16> to vector<64x64xbf16>
    %278 = vector.extract_strided_slice %267 {offsets = [1, 2, 0], sizes = [8, 8, 64], strides = [1, 1, 1]} : vector<10x10x64xbf16> to vector<8x8x64xbf16>
    %279 = vector.shape_cast %278 : vector<8x8x64xbf16> to vector<64x64xbf16>
    %280 = vector.extract_strided_slice %267 {offsets = [2, 0, 0], sizes = [8, 8, 64], strides = [1, 1, 1]} : vector<10x10x64xbf16> to vector<8x8x64xbf16>
    %281 = vector.shape_cast %280 : vector<8x8x64xbf16> to vector<64x64xbf16>
    %282 = vector.extract_strided_slice %267 {offsets = [2, 1, 0], sizes = [8, 8, 64], strides = [1, 1, 1]} : vector<10x10x64xbf16> to vector<8x8x64xbf16>
    %283 = vector.shape_cast %282 : vector<8x8x64xbf16> to vector<64x64xbf16>
    %284 = vector.extract_strided_slice %267 {offsets = [2, 2, 0], sizes = [8, 8, 64], strides = [1, 1, 1]} : vector<10x10x64xbf16> to vector<8x8x64xbf16>
    %285 = vector.shape_cast %284 : vector<8x8x64xbf16> to vector<64x64xbf16>
    %286 = tpu.concatenate %269, %271, %273, %275, %277, %279, %281, %283, %285 in 1 : vector<64x64xbf16>, vector<64x64xbf16>, vector<64x64xbf16>, vector<64x64xbf16>, vector<64x64xbf16>, vector<64x64xbf16>, vector<64x64xbf16>, vector<64x64xbf16>, vector<64x64xbf16> -> vector<64x576xbf16>
    %c0_59 = arith.constant 0 : index
    %c0_60 = arith.constant 0 : index
    %287 = vector.load %arg20[%c0_59, %c0_60] : memref<576x64xbf16, #tpu.memory_space<vmem>>, vector<576x64xbf16>
    %cst_61 = arith.constant dense<0.000000e+00> : vector<64x64xf32>
    %288 = tpu.matmul %286, %287, %cst_61 {dimension_numbers = #tpu.dot_dimension_numbers<[1], [0], [0], [1], [0, 0, 1, 1], [], []>} : vector<64x576xbf16>, vector<576x64xbf16>, vector<64x64xf32> -> vector<64x64xf32>
    %c0_62 = arith.constant 0 : index
    %c0_63 = arith.constant 0 : index
    %289 = vector.load %arg21[%c0_62, %c0_63] : memref<1x64xf32, #tpu.memory_space<vmem>>, vector<1x64xf32>
    %290 = vector.broadcast %289 : vector<1x64xf32> to vector<64x64xf32>
    %291 = arith.addf %288, %290 : vector<64x64xf32>
    %cst_64 = arith.constant 0.000000e+00 : f32
    %292 = vector.broadcast %cst_64 : f32 to vector<64x64xf32>
    %293 = arith.maximumf %291, %292 : vector<64x64xf32>
    %294 = arith.truncf %293 : vector<64x64xf32> to vector<64x64xbf16>
    %c0_65 = arith.constant 0 : index
    %c0_66 = arith.constant 0 : index
    %295 = vector.load %arg22[%c0_65, %c0_66] : memref<64x256xbf16, #tpu.memory_space<vmem>>, vector<64x256xbf16>
    %cst_67 = arith.constant dense<0.000000e+00> : vector<64x256xf32>
    %296 = tpu.matmul %294, %295, %cst_67 {dimension_numbers = #tpu.dot_dimension_numbers<[1], [0], [0], [1], [0, 0, 1, 1], [], []>} : vector<64x64xbf16>, vector<64x256xbf16>, vector<64x256xf32> -> vector<64x256xf32>
    %c0_68 = arith.constant 0 : index
    %c0_69 = arith.constant 0 : index
    %297 = vector.load %arg23[%c0_68, %c0_69] : memref<1x256xf32, #tpu.memory_space<vmem>>, vector<1x256xf32>
    %298 = vector.broadcast %297 : vector<1x256xf32> to vector<64x256xf32>
    %299 = arith.addf %296, %298 : vector<64x256xf32>
    %300 = arith.extf %254 : vector<64x256xbf16> to vector<64x256xf32>
    %301 = arith.addf %299, %300 : vector<64x256xf32>
    %cst_70 = arith.constant 0.000000e+00 : f32
    %302 = vector.broadcast %cst_70 : f32 to vector<64x256xf32>
    %303 = arith.maximumf %301, %302 : vector<64x256xf32>
    %c0_71 = arith.constant 0 : index
    %c0_72 = arith.constant 0 : index
    %304 = vector.load %arg24[%c0_71, %c0_72] : memref<64x256xf32, #tpu.memory_space<vmem>>, vector<64x256xf32>
    tpu.vector_store %arg24[%c0_71, %c0_72], %303 {strides = array<i32>} : memref<64x256xf32, #tpu.memory_space<vmem>>, vector<64x256xf32>,
    return
  }
  func.func @transform_0(%arg0: i32) -> (i32, i32) {
    %c0_i32 = arith.constant 0 : i32
    %c0_i32_0 = arith.constant 0 : i32
    return %arg0, %c0_i32 : i32, i32
  }
  func.func @transform_1(%arg0: i32) -> (i32, i32) {
    %c0_i32 = arith.constant 0 : i32
    %c0_i32_0 = arith.constant 0 : i32
    %c0_i32_1 = arith.constant 0 : i32
    return %c0_i32, %c0_i32_0 : i32, i32
  }
  func.func @transform_2(%arg0: i32) -> (i32, i32) {
    %c0_i32 = arith.constant 0 : i32
    %c0_i32_0 = arith.constant 0 : i32
    %c0_i32_1 = arith.constant 0 : i32
    return %c0_i32, %c0_i32_0 : i32, i32
  }
  func.func @transform_3(%arg0: i32) -> (i32, i32) {
    %c0_i32 = arith.constant 0 : i32
    %c0_i32_0 = arith.constant 0 : i32
    %c0_i32_1 = arith.constant 0 : i32
    return %c0_i32, %c0_i32_0 : i32, i32
  }
  func.func @transform_4(%arg0: i32) -> (i32, i32) {
    %c0_i32 = arith.constant 0 : i32
    %c0_i32_0 = arith.constant 0 : i32
    %c0_i32_1 = arith.constant 0 : i32
    return %c0_i32, %c0_i32_0 : i32, i32
  }
  func.func @transform_5(%arg0: i32) -> (i32, i32) {
    %c0_i32 = arith.constant 0 : i32
    %c0_i32_0 = arith.constant 0 : i32
    %c0_i32_1 = arith.constant 0 : i32
    return %c0_i32, %c0_i32_0 : i32, i32
  }
  func.func @transform_6(%arg0: i32) -> (i32, i32) {
    %c0_i32 = arith.constant 0 : i32
    %c0_i32_0 = arith.constant 0 : i32
    %c0_i32_1 = arith.constant 0 : i32
    return %c0_i32, %c0_i32_0 : i32, i32
  }
  func.func @transform_7(%arg0: i32) -> (i32, i32) {
    %c0_i32 = arith.constant 0 : i32
    %c0_i32_0 = arith.constant 0 : i32
    %c0_i32_1 = arith.constant 0 : i32
    return %c0_i32, %c0_i32_0 : i32, i32
  }
  func.func @transform_8(%arg0: i32) -> (i32, i32) {
    %c0_i32 = arith.constant 0 : i32
    %c0_i32_0 = arith.constant 0 : i32
    %c0_i32_1 = arith.constant 0 : i32
    return %c0_i32, %c0_i32_0 : i32, i32
  }
  func.func @transform_9(%arg0: i32) -> (i32, i32) {
    %c0_i32 = arith.constant 0 : i32
    %c0_i32_0 = arith.constant 0 : i32
    %c0_i32_1 = arith.constant 0 : i32
    return %c0_i32, %c0_i32_0 : i32, i32
  }
  func.func @transform_10(%arg0: i32) -> (i32, i32) {
    %c0_i32 = arith.constant 0 : i32
    %c0_i32_0 = arith.constant 0 : i32
    %c0_i32_1 = arith.constant 0 : i32
    return %c0_i32, %c0_i32_0 : i32, i32
  }
  func.func @transform_11(%arg0: i32) -> (i32, i32) {
    %c0_i32 = arith.constant 0 : i32
    %c0_i32_0 = arith.constant 0 : i32
    %c0_i32_1 = arith.constant 0 : i32
    return %c0_i32, %c0_i32_0 : i32, i32
  }
  func.func @transform_12(%arg0: i32) -> (i32, i32) {
    %c0_i32 = arith.constant 0 : i32
    %c0_i32_0 = arith.constant 0 : i32
    %c0_i32_1 = arith.constant 0 : i32
    return %c0_i32, %c0_i32_0 : i32, i32
  }
  func.func @transform_13(%arg0: i32) -> (i32, i32) {
    %c0_i32 = arith.constant 0 : i32
    %c0_i32_0 = arith.constant 0 : i32
    %c0_i32_1 = arith.constant 0 : i32
    return %c0_i32, %c0_i32_0 : i32, i32
  }
  func.func @transform_14(%arg0: i32) -> (i32, i32) {
    %c0_i32 = arith.constant 0 : i32
    %c0_i32_0 = arith.constant 0 : i32
    %c0_i32_1 = arith.constant 0 : i32
    return %c0_i32, %c0_i32_0 : i32, i32
  }
  func.func @transform_15(%arg0: i32) -> (i32, i32) {
    %c0_i32 = arith.constant 0 : i32
    %c0_i32_0 = arith.constant 0 : i32
    %c0_i32_1 = arith.constant 0 : i32
    return %c0_i32, %c0_i32_0 : i32, i32
  }
  func.func @transform_16(%arg0: i32) -> (i32, i32) {
    %c0_i32 = arith.constant 0 : i32
    %c0_i32_0 = arith.constant 0 : i32
    %c0_i32_1 = arith.constant 0 : i32
    return %c0_i32, %c0_i32_0 : i32, i32
  }
  func.func @transform_17(%arg0: i32) -> (i32, i32) {
    %c0_i32 = arith.constant 0 : i32
    %c0_i32_0 = arith.constant 0 : i32
    %c0_i32_1 = arith.constant 0 : i32
    return %c0_i32, %c0_i32_0 : i32, i32
  }
  func.func @transform_18(%arg0: i32) -> (i32, i32) {
    %c0_i32 = arith.constant 0 : i32
    %c0_i32_0 = arith.constant 0 : i32
    %c0_i32_1 = arith.constant 0 : i32
    return %c0_i32, %c0_i32_0 : i32, i32
  }
  func.func @transform_19(%arg0: i32) -> (i32, i32) {
    %c0_i32 = arith.constant 0 : i32
    %c0_i32_0 = arith.constant 0 : i32
    %c0_i32_1 = arith.constant 0 : i32
    return %c0_i32, %c0_i32_0 : i32, i32
  }
  func.func @transform_20(%arg0: i32) -> (i32, i32) {
    %c0_i32 = arith.constant 0 : i32
    %c0_i32_0 = arith.constant 0 : i32
    %c0_i32_1 = arith.constant 0 : i32
    return %c0_i32, %c0_i32_0 : i32, i32
  }
  func.func @transform_21(%arg0: i32) -> (i32, i32) {
    %c0_i32 = arith.constant 0 : i32
    %c0_i32_0 = arith.constant 0 : i32
    %c0_i32_1 = arith.constant 0 : i32
    return %c0_i32, %c0_i32_0 : i32, i32
  }
  func.func @transform_22(%arg0: i32) -> (i32, i32) {
    %c0_i32 = arith.constant 0 : i32
    %c0_i32_0 = arith.constant 0 : i32
    %c0_i32_1 = arith.constant 0 : i32
    return %c0_i32, %c0_i32_0 : i32, i32
  }
  func.func @transform_23(%arg0: i32) -> (i32, i32) {
    %c0_i32 = arith.constant 0 : i32
    %c0_i32_0 = arith.constant 0 : i32
    return %arg0, %c0_i32 : i32, i32
  }
}

</mosaic_0001>

<llo_original>
// kernel: my_resnet50_forward.1
$region0: #{my_resnet50_forward.1}
  #allocation0 [shape = 'u32[]', space=smem, size = 0x4, offset = 0x4, fixed_abs, tag = 'smem constant byte address 0x4 - core index']
  #allocation1 [shape = 'u32[144,128]{1,0:T(1,128)}', space=vmem, size = 0x12000, scoped, tag = 'internal scratch']
  %s0 = inlined_call_operand.vmem [shape: bf16[512,256], index: 0, kind: input, shape index: {}]
  %s1 = inlined_call_operand.vmem [shape: bf16[256,64], index: 1, kind: input, shape index: {}]
  %s2 = inlined_call_operand.vmem [shape: f32[1,64], index: 2, kind: input, shape index: {}]
  %s3 = inlined_call_operand.vmem [shape: bf16[64,64], index: 3, kind: input, shape index: {}]
  %s4 = inlined_call_operand.vmem [shape: f32[1,64], index: 4, kind: input, shape index: {}]
  %s5 = inlined_call_operand.vmem [shape: bf16[576,64], index: 5, kind: input, shape index: {}]
  %s6 = inlined_call_operand.vmem [shape: f32[1,64], index: 6, kind: input, shape index: {}]
  %s7 = inlined_call_operand.vmem [shape: bf16[64,256], index: 7, kind: input, shape index: {}]
  %s8 = inlined_call_operand.vmem [shape: f32[1,256], index: 8, kind: input, shape index: {}]
  %s9 = inlined_call_operand.vmem [shape: bf16[64,256], index: 9, kind: input, shape index: {}]
  %s10 = inlined_call_operand.vmem [shape: f32[1,256], index: 10, kind: input, shape index: {}]
  %s11 = inlined_call_operand.vmem [shape: bf16[256,64], index: 11, kind: input, shape index: {}]
  %s12 = inlined_call_operand.vmem [shape: f32[1,64], index: 12, kind: input, shape index: {}]
  %s13 = inlined_call_operand.vmem [shape: bf16[576,64], index: 13, kind: input, shape index: {}]
  %s14 = inlined_call_operand.vmem [shape: f32[1,64], index: 14, kind: input, shape index: {}]
  %s15 = inlined_call_operand.vmem [shape: bf16[64,256], index: 15, kind: input, shape index: {}]
  %s16 = inlined_call_operand.vmem [shape: f32[1,256], index: 16, kind: input, shape index: {}]
  %s17 = inlined_call_operand.vmem [shape: bf16[256,64], index: 17, kind: input, shape index: {}]
  %s18 = inlined_call_operand.vmem [shape: f32[1,64], index: 18, kind: input, shape index: {}]
  %s19 = inlined_call_operand.vmem [shape: bf16[576,64], index: 19, kind: input, shape index: {}]
  %s20 = inlined_call_operand.vmem [shape: f32[1,64], index: 20, kind: input, shape index: {}]
  %s21 = inlined_call_operand.vmem [shape: bf16[64,256], index: 21, kind: input, shape index: {}]
  %s22 = inlined_call_operand.vmem [shape: f32[1,256], index: 22, kind: input, shape index: {}]
  %s23 = inlined_call_operand.hbm [shape: f32[128,256], index: 23, kind: output, shape index: {}]
  %s24 = sld [smem:[#allocation0]]
  $region125: #{my_resnet50_forward.1} parent=0
    _
  %s26 = ssub.s32 1, %s24
  %s27 = scalar_select 0, %s26, %s24
  $region1: #{my_resnet50_forward.1} parent=0
    #allocation2 [shape = 'u8[131072]{0}', space=vmem, size = 0x20000, scoped, tag = 'output window, operand 0']
    #allocation3 [shape = 's32[2]{0}', space=sflag, size = 0x8, scoped, tag = 'scoped memory for my_resnet50_forward.1']
    %28 = vsyncpa [#allocation3], 0
    %s29 = scalar_lea.sflag [#allocation3], 1
    %30 = vsyncpa %s29, 0
    loop: start=0, step=1, limit=4
    $region2: #{my_resnet50_forward.1} parent=1 // loop_pre_header
      _
    $region3: #{my_resnet50_forward.1} parent=1 // loop_header
      %s32 = sphi 0, %s36
      %p33 = scmp.ge.s32.totalorder %s32, 4
      %s42 = sphi 0, %s44
      %s45 = sphi 0, %s42
      %s46 = sphi 0, %s45
      %s62 = sphi 0, %s46
      %s66 = sphi 0, %s66
      %s68 = sphi 0, %s66
      %s69 = sphi 0, %s68
      %s83 = sphi 0, %s69
      %s87 = sphi 0, %s87
      %s89 = sphi 0, %s87
      %s90 = sphi 0, %s89
      %s104 = sphi 0, %s90
      %s108 = sphi 0, %s108
      %s110 = sphi 0, %s108
      %s111 = sphi 0, %s110
      %s125 = sphi 0, %s111
      %s129 = sphi 0, %s129
      %s131 = sphi 0, %s129
      %s132 = sphi 0, %s131
      %s146 = sphi 0, %s132
      %s150 = sphi 0, %s150
      %s152 = sphi 0, %s150
      %s153 = sphi 0, %s152
      %s167 = sphi 0, %s153
      %s171 = sphi 0, %s171
      %s173 = sphi 0, %s171
      %s174 = sphi 0, %s173
      %s188 = sphi 0, %s174
      %s192 = sphi 0, %s192
      %s194 = sphi 0, %s192
      %s195 = sphi 0, %s194
      %s209 = sphi 0, %s195
      %s213 = sphi 0, %s213
      %s215 = sphi 0, %s213
      %s216 = sphi 0, %s215
      %s230 = sphi 0, %s216
      %s234 = sphi 0, %s234
      %s236 = sphi 0, %s234
      %s237 = sphi 0, %s236
      %s251 = sphi 0, %s237
      %s255 = sphi 0, %s255
      %s257 = sphi 0, %s255
      %s258 = sphi 0, %s257
      %s272 = sphi 0, %s258
      %s276 = sphi 0, %s276
      %s278 = sphi 0, %s276
      %s279 = sphi 0, %s278
      %s293 = sphi 0, %s279
      %s297 = sphi 0, %s297
      %s299 = sphi 0, %s297
      %s300 = sphi 0, %s299
      %s314 = sphi 0, %s300
      %s318 = sphi 0, %s318
      %s320 = sphi 0, %s318
      %s321 = sphi 0, %s320
      %s335 = sphi 0, %s321
      %s339 = sphi 0, %s339
      %s341 = sphi 0, %s339
      %s342 = sphi 0, %s341
      %s356 = sphi 0, %s342
      %s360 = sphi 0, %s360
      %s362 = sphi 0, %s360
      %s363 = sphi 0, %s362
      %s377 = sphi 0, %s363
      %s381 = sphi 0, %s381
      %s383 = sphi 0, %s381
      %s384 = sphi 0, %s383
      %s398 = sphi 0, %s384
      %s402 = sphi 0, %s402
      %s404 = sphi 0, %s402
      %s405 = sphi 0, %s404
      %s419 = sphi 0, %s405
      %s423 = sphi 0, %s423
      %s425 = sphi 0, %s423
      %s426 = sphi 0, %s425
      %s440 = sphi 0, %s426
      %s444 = sphi 0, %s444
      %s446 = sphi 0, %s444
      %s447 = sphi 0, %s446
      %s461 = sphi 0, %s447
      %s465 = sphi 0, %s465
      %s467 = sphi 0, %s465
      %s468 = sphi 0, %s467
      %s482 = sphi 0, %s468
      %s486 = sphi 0, %s486
      %s488 = sphi 0, %s486
      %s489 = sphi 0, %s488
      %s503 = sphi 0, %s489
      %s507 = sphi 0, %s507
      %s509 = sphi 0, %s507
      %s510 = sphi 0, %s509
      %s524 = sphi 0, %s510
      %s530 = sphi 0, %s532
      %s533 = sphi 0, %s530
      %s534 = sphi 0, %s533
      %s550 = sphi 0, %s534
    $region4: #{my_resnet50_forward.1} parent=1 // loop_header_branch
      %35 = sbr.rel (%p33) target = $region8
    $region5: #{my_resnet50_forward.1} parent=1 // loop_body
      %s37 = ssub.s32 %s32, 1
      %s38 = ssub.s32 %s32, 2
      %s39 = sadd.s32 %s32, 1
      %s40 = ssub.s32 %s32, %s39
      %p41 = scmp.eq.s32.totalorder %s40, 0
      %s43 = sadd.s32 %s42, 1
      %s44 = scalar_select %p41, %s42, %s43
      %p47 = pneg %p41
      %p48 = scmp.eq.s32.totalorder %s32, 1
      %p49 = por %p47, %p48
      %p50 = scmp.ne.s32.totalorder %s42, %s45
      %p51 = scmp.eq.s32.totalorder %s32, 0
      %p52 = por %p50, %p51
      %p53 = scmp.ne.s32.totalorder %s42, %s45
      %p54 = scmp.eq.s32.totalorder %s37, 1
      %p55 = por %p53, %p54
      %p56 = scmp.ne.s32.totalorder %s45, %s46
      %p57 = scmp.eq.s32.totalorder %s37, 0
      %p58 = por %p56, %p57
      %p59 = scmp.ne.s32.totalorder %s45, %s46
      %p60 = scmp.eq.s32.totalorder %s38, 1
      %p61 = por %p59, %p60
      %p63 = scmp.ne.s32.totalorder %s46, %s62
      %p64 = scmp.eq.s32.totalorder %s38, 0
      %p65 = por %p63, %p64
      %s67 = sadd.s32 %s66, 1
      %p70 = scmp.eq.s32.totalorder %s32, 1
      %p71 = scmp.ne.s32.totalorder %s66, %s68
      %p72 = scmp.eq.s32.totalorder %s32, 0
      %p73 = por %p71, %p72
      %p74 = scmp.ne.s32.totalorder %s66, %s68
      %p75 = scmp.eq.s32.totalorder %s37, 1
      %p76 = por %p74, %p75
      %p77 = scmp.ne.s32.totalorder %s68, %s69
      %p78 = scmp.eq.s32.totalorder %s37, 0
      %p79 = por %p77, %p78
      %p80 = scmp.ne.s32.totalorder %s68, %s69
      %p81 = scmp.eq.s32.totalorder %s38, 1
      %p82 = por %p80, %p81
      %p84 = scmp.ne.s32.totalorder %s69, %s83
      %p85 = scmp.eq.s32.totalorder %s38, 0
      %p86 = por %p84, %p85
      %s88 = sadd.s32 %s87, 1
      %p91 = scmp.eq.s32.totalorder %s32, 1
      %p92 = scmp.ne.s32.totalorder %s87, %s89
      %p93 = scmp.eq.s32.totalorder %s32, 0
      %p94 = por %p92, %p93
      %p95 = scmp.ne.s32.totalorder %s87, %s89
      %p96 = scmp.eq.s32.totalorder %s37, 1
      %p97 = por %p95, %p96
      %p98 = scmp.ne.s32.totalorder %s89, %s90
      %p99 = scmp.eq.s32.totalorder %s37, 0
      %p100 = por %p98, %p99
      %p101 = scmp.ne.s32.totalorder %s89, %s90
      %p102 = scmp.eq.s32.totalorder %s38, 1
      %p103 = por %p101, %p102
      %p105 = scmp.ne.s32.totalorder %s90, %s104
      %p106 = scmp.eq.s32.totalorder %s38, 0
      %p107 = por %p105, %p106
      %s109 = sadd.s32 %s108, 1
      %p112 = scmp.eq.s32.totalorder %s32, 1
      %p113 = scmp.ne.s32.totalorder %s108, %s110
      %p114 = scmp.eq.s32.totalorder %s32, 0
      %p115 = por %p113, %p114
      %p116 = scmp.ne.s32.totalorder %s108, %s110
      %p117 = scmp.eq.s32.totalorder %s37, 1
      %p118 = por %p116, %p117
      %p119 = scmp.ne.s32.totalorder %s110, %s111
      %p120 = scmp.eq.s32.totalorder %s37, 0
      %p121 = por %p119, %p120
      %p122 = scmp.ne.s32.totalorder %s110, %s111
      %p123 = scmp.eq.s32.totalorder %s38, 1
      %p124 = por %p122, %p123
      %p126 = scmp.ne.s32.totalorder %s111, %s125
      %p127 = scmp.eq.s32.totalorder %s38, 0
      %p128 = por %p126, %p127
      %s130 = sadd.s32 %s129, 1
      %p133 = scmp.eq.s32.totalorder %s32, 1
      %p134 = scmp.ne.s32.totalorder %s129, %s131
      %p135 = scmp.eq.s32.totalorder %s32, 0
      %p136 = por %p134, %p135
      %p137 = scmp.ne.s32.totalorder %s129, %s131
      %p138 = scmp.eq.s32.totalorder %s37, 1
      %p139 = por %p137, %p138
      %p140 = scmp.ne.s32.totalorder %s131, %s132
      %p141 = scmp.eq.s32.totalorder %s37, 0
      %p142 = por %p140, %p141
      %p143 = scmp.ne.s32.totalorder %s131, %s132
      %p144 = scmp.eq.s32.totalorder %s38, 1
      %p145 = por %p143, %p144
      %p147 = scmp.ne.s32.totalorder %s132, %s146
      %p148 = scmp.eq.s32.totalorder %s38, 0
      %p149 = por %p147, %p148
      %s151 = sadd.s32 %s150, 1
      %p154 = scmp.eq.s32.totalorder %s32, 1
      %p155 = scmp.ne.s32.totalorder %s150, %s152
      %p156 = scmp.eq.s32.totalorder %s32, 0
      %p157 = por %p155, %p156
      %p158 = scmp.ne.s32.totalorder %s150, %s152
      %p159 = scmp.eq.s32.totalorder %s37, 1
      %p160 = por %p158, %p159
      %p161 = scmp.ne.s32.totalorder %s152, %s153
      %p162 = scmp.eq.s32.totalorder %s37, 0
      %p163 = por %p161, %p162
      %p164 = scmp.ne.s32.totalorder %s152, %s153
      %p165 = scmp.eq.s32.totalorder %s38, 1
      %p166 = por %p164, %p165
      %p168 = scmp.ne.s32.totalorder %s153, %s167
      %p169 = scmp.eq.s32.totalorder %s38, 0
      %p170 = por %p168, %p169
      %s172 = sadd.s32 %s171, 1
      %p175 = scmp.eq.s32.totalorder %s32, 1
      %p176 = scmp.ne.s32.totalorder %s171, %s173
      %p177 = scmp.eq.s32.totalorder %s32, 0
      %p178 = por %p176, %p177
      %p179 = scmp.ne.s32.totalorder %s171, %s173
      %p180 = scmp.eq.s32.totalorder %s37, 1
      %p181 = por %p179, %p180
      %p182 = scmp.ne.s32.totalorder %s173, %s174
      %p183 = scmp.eq.s32.totalorder %s37, 0
      %p184 = por %p182, %p183
      %p185 = scmp.ne.s32.totalorder %s173, %s174
      %p186 = scmp.eq.s32.totalorder %s38, 1
      %p187 = por %p185, %p186
      %p189 = scmp.ne.s32.totalorder %s174, %s188
      %p190 = scmp.eq.s32.totalorder %s38, 0
      %p191 = por %p189, %p190
      %s193 = sadd.s32 %s192, 1
      %p196 = scmp.eq.s32.totalorder %s32, 1
      %p197 = scmp.ne.s32.totalorder %s192, %s194
      %p198 = scmp.eq.s32.totalorder %s32, 0
      %p199 = por %p197, %p198
      %p200 = scmp.ne.s32.totalorder %s192, %s194
      %p201 = scmp.eq.s32.totalorder %s37, 1
      %p202 = por %p200, %p201
      %p203 = scmp.ne.s32.totalorder %s194, %s195
      %p204 = scmp.eq.s32.totalorder %s37, 0
      %p205 = por %p203, %p204
      %p206 = scmp.ne.s32.totalorder %s194, %s195
      %p207 = scmp.eq.s32.totalorder %s38, 1
      %p208 = por %p206, %p207
      %p210 = scmp.ne.s32.totalorder %s195, %s209
      %p211 = scmp.eq.s32.totalorder %s38, 0
      %p212 = por %p210, %p211
      %s214 = sadd.s32 %s213, 1
      %p217 = scmp.eq.s32.totalorder %s32, 1
      %p218 = scmp.ne.s32.totalorder %s213, %s215
      %p219 = scmp.eq.s32.totalorder %s32, 0
      %p220 = por %p218, %p219
      %p221 = scmp.ne.s32.totalorder %s213, %s215
      %p222 = scmp.eq.s32.totalorder %s37, 1
      %p223 = por %p221, %p222
      %p224 = scmp.ne.s32.totalorder %s215, %s216
      %p225 = scmp.eq.s32.totalorder %s37, 0
      %p226 = por %p224, %p225
      %p227 = scmp.ne.s32.totalorder %s215, %s216
      %p228 = scmp.eq.s32.totalorder %s38, 1
      %p229 = por %p227, %p228
      %p231 = scmp.ne.s32.totalorder %s216, %s230
      %p232 = scmp.eq.s32.totalorder %s38, 0
      %p233 = por %p231, %p232
      %s235 = sadd.s32 %s234, 1
      %p238 = scmp.eq.s32.totalorder %s32, 1
      %p239 = scmp.ne.s32.totalorder %s234, %s236
      %p240 = scmp.eq.s32.totalorder %s32, 0
      %p241 = por %p239, %p240
      %p242 = scmp.ne.s32.totalorder %s234, %s236
      %p243 = scmp.eq.s32.totalorder %s37, 1
      %p244 = por %p242, %p243
      %p245 = scmp.ne.s32.totalorder %s236, %s237
      %p246 = scmp.eq.s32.totalorder %s37, 0
      %p247 = por %p245, %p246
      %p248 = scmp.ne.s32.totalorder %s236, %s237
      %p249 = scmp.eq.s32.totalorder %s38, 1
      %p250 = por %p248, %p249
      %p252 = scmp.ne.s32.totalorder %s237, %s251
      %p253 = scmp.eq.s32.totalorder %s38, 0
      %p254 = por %p252, %p253
      %s256 = sadd.s32 %s255, 1
      %p259 = scmp.eq.s32.totalorder %s32, 1
      %p260 = scmp.ne.s32.totalorder %s255, %s257
      %p261 = scmp.eq.s32.totalorder %s32, 0
      %p262 = por %p260, %p261
      %p263 = scmp.ne.s32.totalorder %s255, %s257
      %p264 = scmp.eq.s32.totalorder %s37, 1
      %p265 = por %p263, %p264
      %p266 = scmp.ne.s32.totalorder %s257, %s258
      %p267 = scmp.eq.s32.totalorder %s37, 0
      %p268 = por %p266, %p267
      %p269 = scmp.ne.s32.totalorder %s257, %s258
      %p270 = scmp.eq.s32.totalorder %s38, 1
      %p271 = por %p269, %p270
      %p273 = scmp.ne.s32.totalorder %s258, %s272
      %p274 = scmp.eq.s32.totalorder %s38, 0
      %p275 = por %p273, %p274
      %s277 = sadd.s32 %s276, 1
      %p280 = scmp.eq.s32.totalorder %s32, 1
      %p281 = scmp.ne.s32.totalorder %s276, %s278
      %p282 = scmp.eq.s32.totalorder %s32, 0
      %p283 = por %p281, %p282
      %p284 = scmp.ne.s32.totalorder %s276, %s278
      %p285 = scmp.eq.s32.totalorder %s37, 1
      %p286 = por %p284, %p285
      %p287 = scmp.ne.s32.totalorder %s278, %s279
      %p288 = scmp.eq.s32.totalorder %s37, 0
      %p289 = por %p287, %p288
      %p290 = scmp.ne.s32.totalorder %s278, %s279
      %p291 = scmp.eq.s32.totalorder %s38, 1
      %p292 = por %p290, %p291
      %p294 = scmp.ne.s32.totalorder %s279, %s293
      %p295 = scmp.eq.s32.totalorder %s38, 0
      %p296 = por %p294, %p295
      %s298 = sadd.s32 %s297, 1
      %p301 = scmp.eq.s32.totalorder %s32, 1
      %p302 = scmp.ne.s32.totalorder %s297, %s299
      %p303 = scmp.eq.s32.totalorder %s32, 0
      %p304 = por %p302, %p303
      %p305 = scmp.ne.s32.totalorder %s297, %s299
      %p306 = scmp.eq.s32.totalorder %s37, 1
      %p307 = por %p305, %p306
      %p308 = scmp.ne.s32.totalorder %s299, %s300
      %p309 = scmp.eq.s32.totalorder %s37, 0
      %p310 = por %p308, %p309
      %p311 = scmp.ne.s32.totalorder %s299, %s300
      %p312 = scmp.eq.s32.totalorder %s38, 1
      %p313 = por %p311, %p312
      %p315 = scmp.ne.s32.totalorder %s300, %s314
      %p316 = scmp.eq.s32.totalorder %s38, 0
      %p317 = por %p315, %p316
      %s319 = sadd.s32 %s318, 1
      %p322 = scmp.eq.s32.totalorder %s32, 1
      %p323 = scmp.ne.s32.totalorder %s318, %s320
      %p324 = scmp.eq.s32.totalorder %s32, 0
      %p325 = por %p323, %p324
      %p326 = scmp.ne.s32.totalorder %s318, %s320
      %p327 = scmp.eq.s32.totalorder %s37, 1
      %p328 = por %p326, %p327
      %p329 = scmp.ne.s32.totalorder %s320, %s321
      %p330 = scmp.eq.s32.totalorder %s37, 0
      %p331 = por %p329, %p330
      %p332 = scmp.ne.s32.totalorder %s320, %s321
      %p333 = scmp.eq.s32.totalorder %s38, 1
      %p334 = por %p332, %p333
      %p336 = scmp.ne.s32.totalorder %s321, %s335
      %p337 = scmp.eq.s32.totalorder %s38, 0
      %p338 = por %p336, %p337
      %s340 = sadd.s32 %s339, 1
      %p343 = scmp.eq.s32.totalorder %s32, 1
      %p344 = scmp.ne.s32.totalorder %s339, %s341
      %p345 = scmp.eq.s32.totalorder %s32, 0
      %p346 = por %p344, %p345
      %p347 = scmp.ne.s32.totalorder %s339, %s341
      %p348 = scmp.eq.s32.totalorder %s37, 1
      %p349 = por %p347, %p348
      %p350 = scmp.ne.s32.totalorder %s341, %s342
      %p351 = scmp.eq.s32.totalorder %s37, 0
      %p352 = por %p350, %p351
      %p353 = scmp.ne.s32.totalorder %s341, %s342
      %p354 = scmp.eq.s32.totalorder %s38, 1
      %p355 = por %p353, %p354
      %p357 = scmp.ne.s32.totalorder %s342, %s356
      %p358 = scmp.eq.s32.totalorder %s38, 0
      %p359 = por %p357, %p358
      %s361 = sadd.s32 %s360, 1
      %p364 = scmp.eq.s32.totalorder %s32, 1
      %p365 = scmp.ne.s32.totalorder %s360, %s362
      %p366 = scmp.eq.s32.totalorder %s32, 0
      %p367 = por %p365, %p366
      %p368 = scmp.ne.s32.totalorder %s360, %s362
      %p369 = scmp.eq.s32.totalorder %s37, 1
      %p370 = por %p368, %p369
      %p371 = scmp.ne.s32.totalorder %s362, %s363
      %p372 = scmp.eq.s32.totalorder %s37, 0
      %p373 = por %p371, %p372
      %p374 = scmp.ne.s32.totalorder %s362, %s363
      %p375 = scmp.eq.s32.totalorder %s38, 1
      %p376 = por %p374, %p375
      %p378 = scmp.ne.s32.totalorder %s363, %s377
      %p379 = scmp.eq.s32.totalorder %s38, 0
      %p380 = por %p378, %p379
      %s382 = sadd.s32 %s381, 1
      %p385 = scmp.eq.s32.totalorder %s32, 1
      %p386 = scmp.ne.s32.totalorder %s381, %s383
      %p387 = scmp.eq.s32.totalorder %s32, 0
      %p388 = por %p386, %p387
      %p389 = scmp.ne.s32.totalorder %s381, %s383
      %p390 = scmp.eq.s32.totalorder %s37, 1
      %p391 = por %p389, %p390
      %p392 = scmp.ne.s32.totalorder %s383, %s384
      %p393 = scmp.eq.s32.totalorder %s37, 0
      %p394 = por %p392, %p393
      %p395 = scmp.ne.s32.totalorder %s383, %s384
      %p396 = scmp.eq.s32.totalorder %s38, 1
      %p397 = por %p395, %p396
      %p399 = scmp.ne.s32.totalorder %s384, %s398
      %p400 = scmp.eq.s32.totalorder %s38, 0
      %p401 = por %p399, %p400
      %s403 = sadd.s32 %s402, 1
      %p406 = scmp.eq.s32.totalorder %s32, 1
      %p407 = scmp.ne.s32.totalorder %s402, %s404
      %p408 = scmp.eq.s32.totalorder %s32, 0
      %p409 = por %p407, %p408
      %p410 = scmp.ne.s32.totalorder %s402, %s404
      %p411 = scmp.eq.s32.totalorder %s37, 1
      %p412 = por %p410, %p411
      %p413 = scmp.ne.s32.totalorder %s404, %s405
      %p414 = scmp.eq.s32.totalorder %s37, 0
      %p415 = por %p413, %p414
      %p416 = scmp.ne.s32.totalorder %s404, %s405
      %p417 = scmp.eq.s32.totalorder %s38, 1
      %p418 = por %p416, %p417
      %p420 = scmp.ne.s32.totalorder %s405, %s419
      %p421 = scmp.eq.s32.totalorder %s38, 0
      %p422 = por %p420, %p421
      %s424 = sadd.s32 %s423, 1
      %p427 = scmp.eq.s32.totalorder %s32, 1
      %p428 = scmp.ne.s32.totalorder %s423, %s425
      %p429 = scmp.eq.s32.totalorder %s32, 0
      %p430 = por %p428, %p429
      %p431 = scmp.ne.s32.totalorder %s423, %s425
      %p432 = scmp.eq.s32.totalorder %s37, 1
      %p433 = por %p431, %p432
      %p434 = scmp.ne.s32.totalorder %s425, %s426
      %p435 = scmp.eq.s32.totalorder %s37, 0
      %p436 = por %p434, %p435
      %p437 = scmp.ne.s32.totalorder %s425, %s426
      %p438 = scmp.eq.s32.totalorder %s38, 1
      %p439 = por %p437, %p438
      %p441 = scmp.ne.s32.totalorder %s426, %s440
      %p442 = scmp.eq.s32.totalorder %s38, 0
      %p443 = por %p441, %p442
      %s445 = sadd.s32 %s444, 1
      %p448 = scmp.eq.s32.totalorder %s32, 1
      %p449 = scmp.ne.s32.totalorder %s444, %s446
      %p450 = scmp.eq.s32.totalorder %s32, 0
      %p451 = por %p449, %p450
      %p452 = scmp.ne.s32.totalorder %s444, %s446
      %p453 = scmp.eq.s32.totalorder %s37, 1
      %p454 = por %p452, %p453
      %p455 = scmp.ne.s32.totalorder %s446, %s447
      %p456 = scmp.eq.s32.totalorder %s37, 0
      %p457 = por %p455, %p456
      %p458 = scmp.ne.s32.totalorder %s446, %s447
      %p459 = scmp.eq.s32.totalorder %s38, 1
      %p460 = por %p458, %p459
      %p462 = scmp.ne.s32.totalorder %s447, %s461
      %p463 = scmp.eq.s32.totalorder %s38, 0
      %p464 = por %p462, %p463
      %s466 = sadd.s32 %s465, 1
      %p469 = scmp.eq.s32.totalorder %s32, 1
      %p470 = scmp.ne.s32.totalorder %s465, %s467
      %p471 = scmp.eq.s32.totalorder %s32, 0
      %p472 = por %p470, %p471
      %p473 = scmp.ne.s32.totalorder %s465, %s467
      %p474 = scmp.eq.s32.totalorder %s37, 1
      %p475 = por %p473, %p474
      %p476 = scmp.ne.s32.totalorder %s467, %s468
      %p477 = scmp.eq.s32.totalorder %s37, 0
      %p478 = por %p476, %p477
      %p479 = scmp.ne.s32.totalorder %s467, %s468
      %p480 = scmp.eq.s32.totalorder %s38, 1
      %p481 = por %p479, %p480
      %p483 = scmp.ne.s32.totalorder %s468, %s482
      %p484 = scmp.eq.s32.totalorder %s38, 0
      %p485 = por %p483, %p484
      %s487 = sadd.s32 %s486, 1
      %p490 = scmp.eq.s32.totalorder %s32, 1
      %p491 = scmp.ne.s32.totalorder %s486, %s488
      %p492 = scmp.eq.s32.totalorder %s32, 0
      %p493 = por %p491, %p492
      %p494 = scmp.ne.s32.totalorder %s486, %s488
      %p495 = scmp.eq.s32.totalorder %s37, 1
      %p496 = por %p494, %p495
      %p497 = scmp.ne.s32.totalorder %s488, %s489
      %p498 = scmp.eq.s32.totalorder %s37, 0
      %p499 = por %p497, %p498
      %p500 = scmp.ne.s32.totalorder %s488, %s489
      %p501 = scmp.eq.s32.totalorder %s38, 1
      %p502 = por %p500, %p501
      %p504 = scmp.ne.s32.totalorder %s489, %s503
      %p505 = scmp.eq.s32.totalorder %s38, 0
      %p506 = por %p504, %p505
      %s508 = sadd.s32 %s507, 1
      %p511 = scmp.eq.s32.totalorder %s32, 1
      %p512 = scmp.ne.s32.totalorder %s507, %s509
      %p513 = scmp.eq.s32.totalorder %s32, 0
      %p514 = por %p512, %p513
      %p515 = scmp.ne.s32.totalorder %s507, %s509
      %p516 = scmp.eq.s32.totalorder %s37, 1
      %p517 = por %p515, %p516
      %p518 = scmp.ne.s32.totalorder %s509, %s510
      %p519 = scmp.eq.s32.totalorder %s37, 0
      %p520 = por %p518, %p519
      %p521 = scmp.ne.s32.totalorder %s509, %s510
      %p522 = scmp.eq.s32.totalorder %s38, 1
      %p523 = por %p521, %p522
      %p525 = scmp.ne.s32.totalorder %s510, %s524
      %p526 = scmp.eq.s32.totalorder %s38, 0
      %p527 = por %p525, %p526
      %s528 = ssub.s32 %s32, %s39
      %p529 = scmp.eq.s32.totalorder %s528, 0
      %s531 = sadd.s32 %s530, 1
      %s532 = scalar_select %p529, %s530, %s531
      %p535 = pneg %p529
      %p536 = scmp.eq.s32.totalorder %s32, 1
      %p537 = por %p535, %p536
      %p538 = scmp.ne.s32.totalorder %s530, %s533
      %p539 = scmp.eq.s32.totalorder %s32, 0
      %p540 = por %p538, %p539
      %p541 = scmp.ne.s32.totalorder %s530, %s533
      %p542 = scmp.eq.s32.totalorder %s37, 1
      %p543 = por %p541, %p542
      %p544 = scmp.ne.s32.totalorder %s533, %s534
      %p545 = scmp.eq.s32.totalorder %s37, 0
      %p546 = por %p544, %p545
      %p547 = scmp.ne.s32.totalorder %s533, %s534
      %p548 = scmp.eq.s32.totalorder %s38, 1
      %p549 = por %p547, %p548
      %p551 = scmp.ne.s32.totalorder %s534, %s550
      %p552 = scmp.eq.s32.totalorder %s38, 0
      %p553 = por %p551, %p552
      %p554 = scmp.le.s32.totalorder 1, %s32
      %p555 = scmp.lt.s32.totalorder %s32, 3
      %p556 = pnand %p554, %p555
      %p557 = pneg %p556
      // Predicated region
      $region9: #{my_resnet50_forward.1} parent=5 // pred_check
        _
      $region10: #{my_resnet50_forward.1} parent=5 // pred_check_branch
        %559 = sbr.rel (%p556) target = $region12
      $region11: #{my_resnet50_forward.1} parent=5 // pred_region
        %s560 = ssub.s32 %s32, 1
        // Predicated region
        $region13: #{my_resnet50_forward.1} parent=11 // pred_check
          %p561 = pneg %p79
        $region14: #{my_resnet50_forward.1} parent=11 // pred_check_branch
          %563 = sbr.rel (%p561) target = $region16
        $region15: #{my_resnet50_forward.1} parent=11 // pred_region
          _
        $region16: #{my_resnet50_forward.1} parent=11 // pred_fallthru
          _
        // Predicated region
        $region17: #{my_resnet50_forward.1} parent=11 // pred_check
          %p564 = pneg %p100
        $region18: #{my_resnet50_forward.1} parent=11 // pred_check_branch
          %566 = sbr.rel (%p564) target = $region20
        $region19: #{my_resnet50_forward.1} parent=11 // pred_region
          _
        $region20: #{my_resnet50_forward.1} parent=11 // pred_fallthru
          _
        // Predicated region
        $region21: #{my_resnet50_forward.1} parent=11 // pred_check
          %p567 = pneg %p121
        $region22: #{my_resnet50_forward.1} parent=11 // pred_check_branch
          %569 = sbr.rel (%p567) target = $region24
        $region23: #{my_resnet50_forward.1} parent=11 // pred_region
          _
        $region24: #{my_resnet50_forward.1} parent=11 // pred_fallthru
          _
        // Predicated region
        $region25: #{my_resnet50_forward.1} parent=11 // pred_check
          %p570 = pneg %p142
        $region26: #{my_resnet50_forward.1} parent=11 // pred_check_branch
          %572 = sbr.rel (%p570) target = $region28
        $region27: #{my_resnet50_forward.1} parent=11 // pred_region
          _
        $region28: #{my_resnet50_forward.1} parent=11 // pred_fallthru
          _
        // Predicated region
        $region29: #{my_resnet50_forward.1} parent=11 // pred_check
          %p573 = pneg %p163
        $region30: #{my_resnet50_forward.1} parent=11 // pred_check_branch
          %575 = sbr.rel (%p573) target = $region32
        $region31: #{my_resnet50_forward.1} parent=11 // pred_region
          _
        $region32: #{my_resnet50_forward.1} parent=11 // pred_fallthru
          _
        // Predicated region
        $region33: #{my_resnet50_forward.1} parent=11 // pred_check
          %p576 = pneg %p184
        $region34: #{my_resnet50_forward.1} parent=11 // pred_check_branch
          %578 = sbr.rel (%p576) target = $region36
        $region35: #{my_resnet50_forward.1} parent=11 // pred_region
          _
        $region36: #{my_resnet50_forward.1} parent=11 // pred_fallthru
          _
        // Predicated region
        $region37: #{my_resnet50_forward.1} parent=11 // pred_check
          %p579 = pneg %p205
        $region38: #{my_resnet50_forward.1} parent=11 // pred_check_branch
          %581 = sbr.rel (%p579) target = $region40
        $region39: #{my_resnet50_forward.1} parent=11 // pred_region
          _
        $region40: #{my_resnet50_forward.1} parent=11 // pred_fallthru
          _
        // Predicated region
        $region41: #{my_resnet50_forward.1} parent=11 // pred_check
          %p582 = pneg %p226
        $region42: #{my_resnet50_forward.1} parent=11 // pred_check_branch
          %584 = sbr.rel (%p582) target = $region44
        $region43: #{my_resnet50_forward.1} parent=11 // pred_region
          _
        $region44: #{my_resnet50_forward.1} parent=11 // pred_fallthru
          _
        // Predicated region
        $region45: #{my_resnet50_forward.1} parent=11 // pred_check
          %p585 = pneg %p247
        $region46: #{my_resnet50_forward.1} parent=11 // pred_check_branch
          %587 = sbr.rel (%p585) target = $region48
        $region47: #{my_resnet50_forward.1} parent=11 // pred_region
          _
        $region48: #{my_resnet50_forward.1} parent=11 // pred_fallthru
          _
        // Predicated region
        $region49: #{my_resnet50_forward.1} parent=11 // pred_check
          %p588 = pneg %p268
        $region50: #{my_resnet50_forward.1} parent=11 // pred_check_branch
          %590 = sbr.rel (%p588) target = $region52
        $region51: #{my_resnet50_forward.1} parent=11 // pred_region
          _
        $region52: #{my_resnet50_forward.1} parent=11 // pred_fallthru
          _
        // Predicated region
        $region53: #{my_resnet50_forward.1} parent=11 // pred_check
          %p591 = pneg %p289
        $region54: #{my_resnet50_forward.1} parent=11 // pred_check_branch
          %593 = sbr.rel (%p591) target = $region56
        $region55: #{my_resnet50_forward.1} parent=11 // pred_region
          _
        $region56: #{my_resnet50_forward.1} parent=11 // pred_fallthru
          _
        // Predicated region
        $region57: #{my_resnet50_forward.1} parent=11 // pred_check
          %p594 = pneg %p310
        $region58: #{my_resnet50_forward.1} parent=11 // pred_check_branch
          %596 = sbr.rel (%p594) target = $region60
        $region59: #{my_resnet50_forward.1} parent=11 // pred_region
          _
        $region60: #{my_resnet50_forward.1} parent=11 // pred_fallthru
          _
        // Predicated region
        $region61: #{my_resnet50_forward.1} parent=11 // pred_check
          %p597 = pneg %p331
        $region62: #{my_resnet50_forward.1} parent=11 // pred_check_branch
          %599 = sbr.rel (%p597) target = $region64
        $region63: #{my_resnet50_forward.1} parent=11 // pred_region
          _
        $region64: #{my_resnet50_forward.1} parent=11 // pred_fallthru
          _
        // Predicated region
        $region65: #{my_resnet50_forward.1} parent=11 // pred_check
          %p600 = pneg %p352
        $region66: #{my_resnet50_forward.1} parent=11 // pred_check_branch
          %602 = sbr.rel (%p600) target = $region68
        $region67: #{my_resnet50_forward.1} parent=11 // pred_region
          _
        $region68: #{my_resnet50_forward.1} parent=11 // pred_fallthru
          _
        // Predicated region
        $region69: #{my_resnet50_forward.1} parent=11 // pred_check
          %p603 = pneg %p373
        $region70: #{my_resnet50_forward.1} parent=11 // pred_check_branch
          %605 = sbr.rel (%p603) target = $region72
        $region71: #{my_resnet50_forward.1} parent=11 // pred_region
          _
        $region72: #{my_resnet50_forward.1} parent=11 // pred_fallthru
          _
        // Predicated region
        $region73: #{my_resnet50_forward.1} parent=11 // pred_check
          %p606 = pneg %p394
        $region74: #{my_resnet50_forward.1} parent=11 // pred_check_branch
          %608 = sbr.rel (%p606) target = $region76
        $region75: #{my_resnet50_forward.1} parent=11 // pred_region
          _
        $region76: #{my_resnet50_forward.1} parent=11 // pred_fallthru
          _
        // Predicated region
        $region77: #{my_resnet50_forward.1} parent=11 // pred_check
          %p609 = pneg %p415
        $region78: #{my_resnet50_forward.1} parent=11 // pred_check_branch
          %611 = sbr.rel (%p609) target = $region80
        $region79: #{my_resnet50_forward.1} parent=11 // pred_region
          _
        $region80: #{my_resnet50_forward.1} parent=11 // pred_fallthru
          _
        // Predicated region
        $region81: #{my_resnet50_forward.1} parent=11 // pred_check
          %p612 = pneg %p436
        $region82: #{my_resnet50_forward.1} parent=11 // pred_check_branch
          %614 = sbr.rel (%p612) target = $region84
        $region83: #{my_resnet50_forward.1} parent=11 // pred_region
          _
        $region84: #{my_resnet50_forward.1} parent=11 // pred_fallthru
          _
        // Predicated region
        $region85: #{my_resnet50_forward.1} parent=11 // pred_check
          %p615 = pneg %p457
        $region86: #{my_resnet50_forward.1} parent=11 // pred_check_branch
          %617 = sbr.rel (%p615) target = $region88
        $region87: #{my_resnet50_forward.1} parent=11 // pred_region
          _
        $region88: #{my_resnet50_forward.1} parent=11 // pred_fallthru
          _
        // Predicated region
        $region89: #{my_resnet50_forward.1} parent=11 // pred_check
          %p618 = pneg %p478
        $region90: #{my_resnet50_forward.1} parent=11 // pred_check_branch
          %620 = sbr.rel (%p618) target = $region92
        $region91: #{my_resnet50_forward.1} parent=11 // pred_region
          _
        $region92: #{my_resnet50_forward.1} parent=11 // pred_fallthru
          _
        // Predicated region
        $region93: #{my_resnet50_forward.1} parent=11 // pred_check
          %p621 = pneg %p499
        $region94: #{my_resnet50_forward.1} parent=11 // pred_check_branch
          %623 = sbr.rel (%p621) target = $region96
        $region95: #{my_resnet50_forward.1} parent=11 // pred_region
          _
        $region96: #{my_resnet50_forward.1} parent=11 // pred_fallthru
          _
        // Predicated region
        $region97: #{my_resnet50_forward.1} parent=11 // pred_check
          %p624 = pneg %p520
        $region98: #{my_resnet50_forward.1} parent=11 // pred_check_branch
          %626 = sbr.rel (%p624) target = $region100
        $region99: #{my_resnet50_forward.1} parent=11 // pred_region
          _
        $region100: #{my_resnet50_forward.1} parent=11 // pred_fallthru
          _
      $region12: #{my_resnet50_forward.1} parent=5 // pred_fallthru
        _
      %p627 = scmp.lt.s32.totalorder %s32, 2
      // Predicated region
      $region101: #{my_resnet50_forward.1} parent=5 // pred_check
        %p628 = pneg %p627
      $region102: #{my_resnet50_forward.1} parent=5 // pred_check_branch
        %630 = sbr.rel (%p628) target = $region104
      $region103: #{my_resnet50_forward.1} parent=5 // pred_region
        // Predicated region
        $region105: #{my_resnet50_forward.1} parent=103 // pred_check
          %p631 = pneg %p52
        $region106: #{my_resnet50_forward.1} parent=103 // pred_check_branch
          %633 = sbr.rel (%p631) target = $region108
        $region107: #{my_resnet50_forward.1} parent=103 // pred_region
          %s634 = smul.u32 32, %s32
          %p635 = scmp.lt.s32.totalorder %s634, 63
          %s636 = scalar_select %p635, %s634, 63
          %s637 = smul.addr %s636, 2
          %s638 = smul.addr %s637, 4
          %s639 = scalar_lea.vmem %s0, %s638
          %s640 = smul.u32 32, %s32
        $region108: #{my_resnet50_forward.1} parent=103 // pred_fallthru
          _
      $region104: #{my_resnet50_forward.1} parent=5 // pred_fallthru
        _
      %p641 = scmp.le.s32.totalorder 1, %s32
      %p642 = scmp.lt.s32.totalorder %s32, 3
      %p643 = pnand %p641, %p642
      %p644 = pneg %p643
      // Predicated region
      $region109: #{my_resnet50_forward.1} parent=5 // pred_check
        _
      $region110: #{my_resnet50_forward.1} parent=5 // pred_check_branch
        %646 = sbr.rel (%p643) target = $region112
      $region111: #{my_resnet50_forward.1} parent=5 // pred_region
        %s647 = ssub.s32 %s32, 1
        %s648 = smul.u32 32, %s37
        %p649 = scmp.lt.s32.totalorder %s648, 63
        %s650 = scalar_select %p649, %s648, 63
        %s651 = smul.addr %s650, 2
        %s652 = smul.addr %s651, 4
        %s653 = scalar_lea.vmem %s0, %s652
        %p654 = pneg %p58
        %p655 = pneg %p55
        %p656 = pneg %p79
        %p657 = pneg %p76
        %p658 = pneg %p100
        %p659 = pneg %p97
        %p660 = pneg %p121
        %p661 = pneg %p118
        %p662 = pneg %p142
        %p663 = pneg %p139
        %p664 = pneg %p163
        %p665 = pneg %p160
        %p666 = pneg %p184
        %p667 = pneg %p181
        %p668 = pneg %p205
        %p669 = pneg %p202
        %p670 = pneg %p226
        %p671 = pneg %p223
        %p672 = pneg %p247
        %p673 = pneg %p244
        %p674 = pneg %p268
        %p675 = pneg %p265
        %p676 = pneg %p289
        %p677 = pneg %p286
        %p678 = pneg %p310
        %p679 = pneg %p307
        %p680 = pneg %p331
        %p681 = pneg %p328
        %p682 = pneg %p352
        %p683 = pneg %p349
        %p684 = pneg %p373
        %p685 = pneg %p370
        %p686 = pneg %p394
        %p687 = pneg %p391
        %p688 = pneg %p415
        %p689 = pneg %p412
        %p690 = pneg %p436
        %p691 = pneg %p433
        %p692 = pneg %p457
        %p693 = pneg %p454
        %p694 = pneg %p478
        %p695 = pneg %p475
        %p696 = pneg %p499
        %p697 = pneg %p496
        %p698 = pneg %p520
        %p699 = pneg %p517
        %p700 = pneg %p546
        %p701 = pneg %p543
        %s702 = sand.u32 %s533, 1
        %s703 = scalar_lea.sflag [#allocation3], %s702
        %s704 = sand.u32 %s533, 1
        %s705 = smul.addr %s704, 128
        %s706 = scalar_lea.vmem [#allocation2], %s705
        %s707 = smul.u32 32, %s37
        %p708 = scmp.lt.s32.totalorder %s707, 63
        %s709 = scalar_select %p708, %s707, 63
        %s710 = smul.addr %s709, 2
        %s711 = smul.addr %s710, 4
        %s712 = scalar_lea.vmem %s0, %s711
        %s713 = smul.u32 32, %s37
        %s714 = smul.u32 8, %s37
        %v716 = vld [vmem:[%s712] sm:$0xff]
        %v717 = vld [vmem:[%s712 + $0x8] sm:$0xff]
        %v718 = vld [vmem:[%s712 + $0x10] sm:$0xff]
        %v719 = vld [vmem:[%s712 + $0x18] sm:$0xff]
        %v720 = vld [vmem:[%s712 + $0x20] sm:$0xff]
        %v721 = vld [vmem:[%s712 + $0x28] sm:$0xff]
        %v722 = vld [vmem:[%s712 + $0x30] sm:$0xff]
        %v723 = vld [vmem:[%s712 + $0x38] sm:$0xff]
        %v724 = vld [vmem:[%s712 + $0x40] sm:$0xff]
        %v725 = vld [vmem:[%s712 + $0x48] sm:$0xff]
        %v726 = vld [vmem:[%s712 + $0x50] sm:$0xff]
        %v727 = vld [vmem:[%s712 + $0x58] sm:$0xff]
        %v728 = vld [vmem:[%s712 + $0x60] sm:$0xff]
        %v729 = vld [vmem:[%s712 + $0x68] sm:$0xff]
        %v730 = vld [vmem:[%s712 + $0x70] sm:$0xff]
        %v731 = vld [vmem:[%s712 + $0x78] sm:$0xff]
        %v732 = vld [vmem:[%s712 + $0x80] sm:$0xff]
        %v733 = vld [vmem:[%s712 + $0x88] sm:$0xff]
        %v734 = vld [vmem:[%s712 + $0x90] sm:$0xff]
        %v735 = vld [vmem:[%s712 + $0x98] sm:$0xff]
        %v736 = vld [vmem:[%s712 + $0xa0] sm:$0xff]
        %v737 = vld [vmem:[%s712 + $0xa8] sm:$0xff]
        %v738 = vld [vmem:[%s712 + $0xb0] sm:$0xff]
        %v739 = vld [vmem:[%s712 + $0xb8] sm:$0xff]
        %v740 = vld [vmem:[%s712 + $0xc0] sm:$0xff]
        %v741 = vld [vmem:[%s712 + $0xc8] sm:$0xff]
        %v742 = vld [vmem:[%s712 + $0xd0] sm:$0xff]
        %v743 = vld [vmem:[%s712 + $0xd8] sm:$0xff]
        %v744 = vld [vmem:[%s712 + $0xe0] sm:$0xff]
        %v745 = vld [vmem:[%s712 + $0xe8] sm:$0xff]
        %v746 = vld [vmem:[%s712 + $0xf0] sm:$0xff]
        %v747 = vld [vmem:[%s712 + $0xf8] sm:$0xff]
        %v748 = vld [vmem:[%s1] sm:$0xf]
        %v749 = vld [vmem:[%s1 + $0x4] sm:$0xf]
        %v750 = vld [vmem:[%s1 + $0x8] sm:$0xf]
        %v751 = vld [vmem:[%s1 + $0xc] sm:$0xf]
        %v752 = vld [vmem:[%s1 + $0x10] sm:$0xf]
        %v753 = vld [vmem:[%s1 + $0x14] sm:$0xf]
        %v754 = vld [vmem:[%s1 + $0x18] sm:$0xf]
        %v755 = vld [vmem:[%s1 + $0x1c] sm:$0xf]
        %v756 = vld [vmem:[%s1 + $0x20] sm:$0xf]
        %v757 = vld [vmem:[%s1 + $0x24] sm:$0xf]
        %v758 = vld [vmem:[%s1 + $0x28] sm:$0xf]
        %v759 = vld [vmem:[%s1 + $0x2c] sm:$0xf]
        %v760 = vld [vmem:[%s1 + $0x30] sm:$0xf]
        %v761 = vld [vmem:[%s1 + $0x34] sm:$0xf]
        %v762 = vld [vmem:[%s1 + $0x38] sm:$0xf]
        %v763 = vld [vmem:[%s1 + $0x3c] sm:$0xf]
        %v764 = vld [vmem:[%s1 + $0x40] sm:$0xf]
        %v765 = vld [vmem:[%s1 + $0x44] sm:$0xf]
        %v766 = vld [vmem:[%s1 + $0x48] sm:$0xf]
        %v767 = vld [vmem:[%s1 + $0x4c] sm:$0xf]
        %v768 = vld [vmem:[%s1 + $0x50] sm:$0xf]
        %v769 = vld [vmem:[%s1 + $0x54] sm:$0xf]
        %v770 = vld [vmem:[%s1 + $0x58] sm:$0xf]
        %v771 = vld [vmem:[%s1 + $0x5c] sm:$0xf]
        %v772 = vld [vmem:[%s1 + $0x60] sm:$0xf]
        %v773 = vld [vmem:[%s1 + $0x64] sm:$0xf]
        %v774 = vld [vmem:[%s1 + $0x68] sm:$0xf]
        %v775 = vld [vmem:[%s1 + $0x6c] sm:$0xf]
        %v776 = vld [vmem:[%s1 + $0x70] sm:$0xf]
        %v777 = vld [vmem:[%s1 + $0x74] sm:$0xf]
        %v778 = vld [vmem:[%s1 + $0x78] sm:$0xf]
        %v779 = vld [vmem:[%s1 + $0x7c] sm:$0xf]
        %v780 = vld [vmem:[%s2] sm:$0x1]
        %v782 = vlaneseq
        %v783 = vshrl.u32 %v782, 7
        %v784 = vsub.s32 0, %v783
        %v785 = vrot.slane %v780, %v784
        %v819 = vunpack.c.l.b16 %v716
        %v820 = vunpack.c.h.b16 %v716
        %v821 = vunpack.c.l.b16 %v717
        %v822 = vunpack.c.h.b16 %v717
        %v823 = vunpack.c.l.b16 %v718
        %v824 = vunpack.c.h.b16 %v718
        %v825 = vunpack.c.l.b16 %v719
        %v826 = vunpack.c.h.b16 %v719
        %v827 = vunpack.c.l.b16 %v720
        %v828 = vunpack.c.h.b16 %v720
        %v829 = vunpack.c.l.b16 %v721
        %v830 = vunpack.c.h.b16 %v721
        %v831 = vunpack.c.l.b16 %v722
        %v832 = vunpack.c.h.b16 %v722
        %v833 = vunpack.c.l.b16 %v723
        %v834 = vunpack.c.h.b16 %v723
        %v835 = vunpack.c.l.b16 %v724
        %v836 = vunpack.c.h.b16 %v724
        %v837 = vunpack.c.l.b16 %v725
        %v838 = vunpack.c.h.b16 %v725
        %v839 = vunpack.c.l.b16 %v726
        %v840 = vunpack.c.h.b16 %v726
        %v841 = vunpack.c.l.b16 %v727
        %v842 = vunpack.c.h.b16 %v727
        %v843 = vunpack.c.l.b16 %v728
        %v844 = vunpack.c.h.b16 %v728
        %v845 = vunpack.c.l.b16 %v729
        %v846 = vunpack.c.h.b16 %v729
        %v847 = vunpack.c.l.b16 %v730
        %v848 = vunpack.c.h.b16 %v730
        %v849 = vunpack.c.l.b16 %v731
        %v850 = vunpack.c.h.b16 %v731
        %v851 = vunpack.c.l.b16 %v732
        %v852 = vunpack.c.h.b16 %v732
        %v853 = vunpack.c.l.b16 %v733
        %v854 = vunpack.c.h.b16 %v733
        %v855 = vunpack.c.l.b16 %v734
        %v856 = vunpack.c.h.b16 %v734
        %v857 = vunpack.c.l.b16 %v735
        %v858 = vunpack.c.h.b16 %v735
        %v859 = vunpack.c.l.b16 %v736
        %v860 = vunpack.c.h.b16 %v736
        %v861 = vunpack.c.l.b16 %v737
        %v862 = vunpack.c.h.b16 %v737
        %v863 = vunpack.c.l.b16 %v738
        %v864 = vunpack.c.h.b16 %v738
        %v865 = vunpack.c.l.b16 %v739
        %v866 = vunpack.c.h.b16 %v739
        %v867 = vunpack.c.l.b16 %v740
        %v868 = vunpack.c.h.b16 %v740
        %v869 = vunpack.c.l.b16 %v741
        %v870 = vunpack.c.h.b16 %v741
        %v871 = vunpack.c.l.b16 %v742
        %v872 = vunpack.c.h.b16 %v742
        %v873 = vunpack.c.l.b16 %v743
        %v874 = vunpack.c.h.b16 %v743
        %v875 = vunpack.c.l.b16 %v744
        %v876 = vunpack.c.h.b16 %v744
        %v877 = vunpack.c.l.b16 %v745
        %v878 = vunpack.c.h.b16 %v745
        %v879 = vunpack.c.l.b16 %v746
        %v880 = vunpack.c.h.b16 %v746
        %v881 = vunpack.c.l.b16 %v747
        %v882 = vunpack.c.h.b16 %v747
        %v883 = vpack.c.b16 %v821, %v819
        %v884 = vpack.c.b16 %v822, %v820
        %v885 = vpack.c.b16 %v825, %v823
        %v886 = vpack.c.b16 %v826, %v824
        %v887 = vpack.c.b16 %v829, %v827
        %v888 = vpack.c.b16 %v830, %v828
        %v889 = vpack.c.b16 %v833, %v831
        %v890 = vpack.c.b16 %v834, %v832
        %v891 = vpack.c.b16 %v837, %v835
        %v892 = vpack.c.b16 %v838, %v836
        %v893 = vpack.c.b16 %v841, %v839
        %v894 = vpack.c.b16 %v842, %v840
        %v895 = vpack.c.b16 %v845, %v843
        %v896 = vpack.c.b16 %v846, %v844
        %v897 = vpack.c.b16 %v849, %v847
        %v898 = vpack.c.b16 %v850, %v848
        %v899 = vpack.c.b16 %v853, %v851
        %v900 = vpack.c.b16 %v854, %v852
        %v901 = vpack.c.b16 %v857, %v855
        %v902 = vpack.c.b16 %v858, %v856
        %v903 = vpack.c.b16 %v861, %v859
        %v904 = vpack.c.b16 %v862, %v860
        %v905 = vpack.c.b16 %v865, %v863
        %v906 = vpack.c.b16 %v866, %v864
        %v907 = vpack.c.b16 %v869, %v867
        %v908 = vpack.c.b16 %v870, %v868
        %v909 = vpack.c.b16 %v873, %v871
        %v910 = vpack.c.b16 %v874, %v872
        %v911 = vpack.c.b16 %v877, %v875
        %v912 = vpack.c.b16 %v878, %v876
        %v913 = vpack.c.b16 %v881, %v879
        %v914 = vpack.c.b16 %v882, %v880
        %v979 = vunpack.c.l.b16 %v748
        %v980 = vunpack.c.l.b16 %v749
        %v981 = vunpack.c.l.b16 %v750
        %v982 = vunpack.c.l.b16 %v751
        %v983 = vunpack.c.l.b16 %v752
        %v984 = vunpack.c.l.b16 %v753
        %v985 = vunpack.c.l.b16 %v754
        %v986 = vunpack.c.l.b16 %v755
        %v987 = vunpack.c.l.b16 %v756
        %v988 = vunpack.c.l.b16 %v757
        %v989 = vunpack.c.l.b16 %v758
        %v990 = vunpack.c.l.b16 %v759
        %v991 = vunpack.c.l.b16 %v760
        %v992 = vunpack.c.l.b16 %v761
        %v993 = vunpack.c.l.b16 %v762
        %v994 = vunpack.c.l.b16 %v763
        %v995 = vunpack.c.l.b16 %v764
        %v996 = vunpack.c.l.b16 %v765
        %v997 = vunpack.c.l.b16 %v766
        %v998 = vunpack.c.l.b16 %v767
        %v999 = vunpack.c.l.b16 %v768
        %v1000 = vunpack.c.l.b16 %v769
        %v1001 = vunpack.c.l.b16 %v770
        %v1002 = vunpack.c.l.b16 %v771
        %v1003 = vunpack.c.l.b16 %v772
        %v1004 = vunpack.c.l.b16 %v773
        %v1005 = vunpack.c.l.b16 %v774
        %v1006 = vunpack.c.l.b16 %v775
        %v1007 = vunpack.c.l.b16 %v776
        %v1008 = vunpack.c.l.b16 %v777
        %v1009 = vunpack.c.l.b16 %v778
        %v1010 = vunpack.c.l.b16 %v779
        %v1011 = vpack.c.b16 %v980, %v979
        %v1012 = vpack.c.b16 %v982, %v981
        %v1013 = vpack.c.b16 %v984, %v983
        %v1014 = vpack.c.b16 %v986, %v985
        %v1015 = vpack.c.b16 %v988, %v987
        %v1016 = vpack.c.b16 %v990, %v989
        %v1017 = vpack.c.b16 %v992, %v991
        %v1018 = vpack.c.b16 %v994, %v993
        %v1019 = vpack.c.b16 %v996, %v995
        %v1020 = vpack.c.b16 %v998, %v997
        %v1021 = vpack.c.b16 %v1000, %v999
        %v1022 = vpack.c.b16 %v1002, %v1001
        %v1023 = vpack.c.b16 %v1004, %v1003
        %v1024 = vpack.c.b16 %v1006, %v1005
        %v1025 = vpack.c.b16 %v1008, %v1007
        %v1026 = vpack.c.b16 %v1010, %v1009
        %1043 = vmatprep.subr.bf16.mxu0 0
        %1044 = vmatpush1.bf16.msra.mxu0 %v1011
        %1045 = vmatprep.subr.bf16.mxu0 0
        %1046 = vmatpush1.bf16.msra.mxu0 %v1012
        %1047 = vmatprep.subr.bf16.mxu0 0
        %1048 = vmatpush1.bf16.msra.mxu0 %v1013
        %1049 = vmatprep.subr.bf16.mxu0 0
        %1050 = vmatpush1.bf16.msra.mxu0 %v1014
        %1051 = vmatprep.subr.bf16.mxu0 0
        %1052 = vmatpush1.bf16.msra.mxu0 %v1015
        %1053 = vmatprep.subr.bf16.mxu0 0
        %1054 = vmatpush1.bf16.msra.mxu0 %v1016
        %1055 = vmatprep.subr.bf16.mxu0 0
        %1056 = vmatpush1.bf16.msra.mxu0 %v1017
        %1057 = vmatprep.subr.bf16.mxu0 0
        %1058 = vmatpush1.bf16.msra.mxu0 %v1018
        %1059 = vmatprep.subr.bf16.mxu0 0
        %1060 = vmatpush1.bf16.msra.mxu0 %v1019
        %1061 = vmatprep.subr.bf16.mxu0 0
        %1062 = vmatpush1.bf16.msra.mxu0 %v1020
        %1063 = vmatprep.subr.bf16.mxu0 0
        %1064 = vmatpush1.bf16.msra.mxu0 %v1021
        %1065 = vmatprep.subr.bf16.mxu0 0
        %1066 = vmatpush1.bf16.msra.mxu0 %v1022
        %1067 = vmatprep.subr.bf16.mxu0 0
        %1068 = vmatpush1.bf16.msra.mxu0 %v1023
        %1069 = vmatprep.subr.bf16.mxu0 0
        %1070 = vmatpush1.bf16.msra.mxu0 %v1024
        %1071 = vmatprep.subr.bf16.mxu0 0
        %1072 = vmatpush1.bf16.msra.mxu0 %v1025
        %1073 = vmatprep.subr.bf16.mxu0 0
        %1074 = vmatpush1.bf16.msra.mxu0 %v1026
        %1075 = vmatprep.mubr.bf16.mxu0 %v884
        %1076 = vmatmul.mubr.bf16.gmra.mrb[0].mxu0 %v883
        %v1077 = vpop.f32.mrb[0].mxu0
        %v1078 = vadd.f32 %v785, %v1077
        %v1079 = vpop.f32.mrb[0].mxu0
        %v1080 = vpop.f32.mrb[0].mxu0
        %v1081 = vadd.f32 %v785, %v1080
        %v1082 = vpop.f32.mrb[0].mxu0
        %1083 = vmatprep.mubr.bf16.mxu0 %v886
        %1084 = vmatmul.mubr.bf16.gmra.mrb[0].mxu0 %v885
        %v1085 = vpop.f32.mrb[0].mxu0
        %v1086 = vadd.f32 %v785, %v1085
        %v1087 = vpop.f32.mrb[0].mxu0
        %v1088 = vpop.f32.mrb[0].mxu0
        %v1089 = vadd.f32 %v785, %v1088
        %v1090 = vpop.f32.mrb[0].mxu0
        %1091 = vmatprep.mubr.bf16.mxu0 %v888
        %1092 = vmatmul.mubr.bf16.gmra.mrb[0].mxu0 %v887
        %v1093 = vpop.f32.mrb[0].mxu0
        %v1094 = vadd.f32 %v785, %v1093
        %v1095 = vpop.f32.mrb[0].mxu0
        %v1096 = vpop.f32.mrb[0].mxu0
        %v1097 = vadd.f32 %v785, %v1096
        %v1098 = vpop.f32.mrb[0].mxu0
        %1099 = vmatprep.mubr.bf16.mxu0 %v890
        %1100 = vmatmul.mubr.bf16.gmra.mrb[0].mxu0 %v889
        %v1101 = vpop.f32.mrb[0].mxu0
        %v1102 = vadd.f32 %v785, %v1101
        %v1103 = vpop.f32.mrb[0].mxu0
        %v1104 = vpop.f32.mrb[0].mxu0
        %v1105 = vadd.f32 %v785, %v1104
        %v1106 = vpop.f32.mrb[0].mxu0
        %1107 = vmatprep.mubr.bf16.mxu0 %v892
        %1108 = vmatmul.mubr.bf16.gmra.mrb[0].mxu0 %v891
        %v1109 = vpop.f32.mrb[0].mxu0
        %v1110 = vadd.f32 %v785, %v1109
        %v1111 = vpop.f32.mrb[0].mxu0
        %v1112 = vpop.f32.mrb[0].mxu0
        %v1113 = vadd.f32 %v785, %v1112
        %v1114 = vpop.f32.mrb[0].mxu0
        %1115 = vmatprep.mubr.bf16.mxu0 %v894
        %1116 = vmatmul.mubr.bf16.gmra.mrb[0].mxu0 %v893
        %v1117 = vpop.f32.mrb[0].mxu0
        %v1118 = vadd.f32 %v785, %v1117
        %v1119 = vpop.f32.mrb[0].mxu0
        %v1120 = vpop.f32.mrb[0].mxu0
        %v1121 = vadd.f32 %v785, %v1120
        %v1122 = vpop.f32.mrb[0].mxu0
        %1123 = vmatprep.mubr.bf16.mxu0 %v896
        %1124 = vmatmul.mubr.bf16.gmra.mrb[0].mxu0 %v895
        %v1125 = vpop.f32.mrb[0].mxu0
        %v1126 = vadd.f32 %v785, %v1125
        %v1127 = vpop.f32.mrb[0].mxu0
        %v1128 = vpop.f32.mrb[0].mxu0
        %v1129 = vadd.f32 %v785, %v1128
        %v1130 = vpop.f32.mrb[0].mxu0
        %1131 = vmatprep.mubr.bf16.mxu0 %v898
        %1132 = vmatmul.mubr.bf16.gmra.mrb[0].mxu0 %v897
        %v1133 = vpop.f32.mrb[0].mxu0
        %v1134 = vadd.f32 %v785, %v1133
        %v1135 = vpop.f32.mrb[0].mxu0
        %v1136 = vpop.f32.mrb[0].mxu0
        %v1137 = vadd.f32 %v785, %v1136
        %v1138 = vpop.f32.mrb[0].mxu0
        %1139 = vmatprep.mubr.bf16.mxu0 %v900
        %1140 = vmatmul.mubr.bf16.gmra.mrb[0].mxu0 %v899
        %v1141 = vpop.f32.mrb[0].mxu0
        %v1142 = vadd.f32 %v785, %v1141
        %v1143 = vpop.f32.mrb[0].mxu0
        %v1144 = vpop.f32.mrb[0].mxu0
        %v1145 = vadd.f32 %v785, %v1144
        %v1146 = vpop.f32.mrb[0].mxu0
        %1147 = vmatprep.mubr.bf16.mxu0 %v902
        %1148 = vmatmul.mubr.bf16.gmra.mrb[0].mxu0 %v901
        %v1149 = vpop.f32.mrb[0].mxu0
        %v1150 = vadd.f32 %v785, %v1149
        %v1151 = vpop.f32.mrb[0].mxu0
        %v1152 = vpop.f32.mrb[0].mxu0
        %v1153 = vadd.f32 %v785, %v1152
        %v1154 = vpop.f32.mrb[0].mxu0
        %1155 = vmatprep.mubr.bf16.mxu0 %v904
        %1156 = vmatmul.mubr.bf16.gmra.mrb[0].mxu0 %v903
        %v1157 = vpop.f32.mrb[0].mxu0
        %v1158 = vadd.f32 %v785, %v1157
        %v1159 = vpop.f32.mrb[0].mxu0
        %v1160 = vpop.f32.mrb[0].mxu0
        %v1161 = vadd.f32 %v785, %v1160
        %v1162 = vpop.f32.mrb[0].mxu0
        %1163 = vmatprep.mubr.bf16.mxu0 %v906
        %1164 = vmatmul.mubr.bf16.gmra.mrb[0].mxu0 %v905
        %v1165 = vpop.f32.mrb[0].mxu0
        %v1166 = vadd.f32 %v785, %v1165
        %v1167 = vpop.f32.mrb[0].mxu0
        %v1168 = vpop.f32.mrb[0].mxu0
        %v1169 = vadd.f32 %v785, %v1168
        %v1170 = vpop.f32.mrb[0].mxu0
        %1171 = vmatprep.mubr.bf16.mxu0 %v908
        %1172 = vmatmul.mubr.bf16.gmra.mrb[0].mxu0 %v907
        %v1173 = vpop.f32.mrb[0].mxu0
        %v1174 = vadd.f32 %v785, %v1173
        %v1175 = vpop.f32.mrb[0].mxu0
        %v1176 = vpop.f32.mrb[0].mxu0
        %v1177 = vadd.f32 %v785, %v1176
        %v1178 = vpop.f32.mrb[0].mxu0
        %1179 = vmatprep.mubr.bf16.mxu0 %v910
        %1180 = vmatmul.mubr.bf16.gmra.mrb[0].mxu0 %v909
        %v1181 = vpop.f32.mrb[0].mxu0
        %v1182 = vadd.f32 %v785, %v1181
        %v1183 = vpop.f32.mrb[0].mxu0
        %v1184 = vpop.f32.mrb[0].mxu0
        %v1185 = vadd.f32 %v785, %v1184
        %v1186 = vpop.f32.mrb[0].mxu0
        %1187 = vmatprep.mubr.bf16.mxu0 %v912
        %1188 = vmatmul.mubr.bf16.gmra.mrb[0].mxu0 %v911
        %v1189 = vpop.f32.mrb[0].mxu0
        %v1190 = vadd.f32 %v785, %v1189
        %v1191 = vpop.f32.mrb[0].mxu0
        %v1192 = vpop.f32.mrb[0].mxu0
        %v1193 = vadd.f32 %v785, %v1192
        %v1194 = vpop.f32.mrb[0].mxu0
        %1195 = vmatprep.mubr.bf16.mxu0 %v914
        %1196 = vmatmul.mubr.bf16.gmra.mrb[0].mxu0 %v913
        %v1197 = vpop.f32.mrb[0].mxu0
        %v1198 = vadd.f32 %v785, %v1197
        %v1199 = vpop.f32.mrb[0].mxu0
        %v1200 = vpop.f32.mrb[0].mxu0
        %v1201 = vadd.f32 %v785, %v1200
        %v1202 = vpop.f32.mrb[0].mxu0
        %1203 = vdwg.mxu0
        %v1204 = vmax.f32 %v1078, 0.0
        %v1205 = vmax.f32 %v1081, 0.0
        %v1206 = vmax.f32 %v1086, 0.0
        %v1207 = vmax.f32 %v1089, 0.0
        %v1208 = vmax.f32 %v1094, 0.0
        %v1209 = vmax.f32 %v1097, 0.0
        %v1210 = vmax.f32 %v1102, 0.0
        %v1211 = vmax.f32 %v1105, 0.0
        %v1212 = vmax.f32 %v1110, 0.0
        %v1213 = vmax.f32 %v1113, 0.0
        %v1214 = vmax.f32 %v1118, 0.0
        %v1215 = vmax.f32 %v1121, 0.0
        %v1216 = vmax.f32 %v1126, 0.0
        %v1217 = vmax.f32 %v1129, 0.0
        %v1218 = vmax.f32 %v1134, 0.0
        %v1219 = vmax.f32 %v1137, 0.0
        %v1220 = vmax.f32 %v1142, 0.0
        %v1221 = vmax.f32 %v1145, 0.0
        %v1222 = vmax.f32 %v1150, 0.0
        %v1223 = vmax.f32 %v1153, 0.0
        %v1224 = vmax.f32 %v1158, 0.0
        %v1225 = vmax.f32 %v1161, 0.0
        %v1226 = vmax.f32 %v1166, 0.0
        %v1227 = vmax.f32 %v1169, 0.0
        %v1228 = vmax.f32 %v1174, 0.0
        %v1229 = vmax.f32 %v1177, 0.0
        %v1230 = vmax.f32 %v1182, 0.0
        %v1231 = vmax.f32 %v1185, 0.0
        %v1232 = vmax.f32 %v1190, 0.0
        %v1233 = vmax.f32 %v1193, 0.0
        %v1234 = vmax.f32 %v1198, 0.0
        %v1235 = vmax.f32 %v1201, 0.0
        %v1236 = vmax.f32 %v1204, %v1206
        %v1237 = vmax.f32 %v1205, %v1207
        %v1238 = vmax.f32 %v1206, %v1208
        %v1239 = vmax.f32 %v1207, %v1209
        %v1240 = vmax.f32 %v1238, %v1210
        %v1241 = vmax.f32 %v1239, %v1211
        %v1242 = vmax.f32 %v1210, %v1212
        %v1243 = vmax.f32 %v1211, %v1213
        %v1244 = vmax.f32 %v1242, %v1214
        %v1245 = vmax.f32 %v1243, %v1215
        %v1246 = vmax.f32 %v1214, %v1216
        %v1247 = vmax.f32 %v1215, %v1217
        %v1248 = vmax.f32 %v1246, %v1218
        %v1249 = vmax.f32 %v1247, %v1219
        %v1250 = vmax.f32 %v1218, %v1220
        %v1251 = vmax.f32 %v1219, %v1221
        %v1252 = vmax.f32 %v1250, %v1222
        %v1253 = vmax.f32 %v1251, %v1223
        %v1254 = vmax.f32 %v1222, %v1224
        %v1255 = vmax.f32 %v1223, %v1225
        %v1256 = vmax.f32 %v1254, %v1226
        %v1257 = vmax.f32 %v1255, %v1227
        %v1258 = vmax.f32 %v1226, %v1228
        %v1259 = vmax.f32 %v1227, %v1229
        %v1260 = vmax.f32 %v1258, %v1230
        %v1261 = vmax.f32 %v1259, %v1231
        %v1262 = vmax.f32 %v1230, %v1232
        %v1263 = vmax.f32 %v1231, %v1233
        %v1264 = vmax.f32 %v1262, %v1234
        %v1265 = vmax.f32 %v1263, %v1235
        %v1274 = vrot.slane %v1236, 1
        %v1275 = vrot.slane %v1240, 1
        %v1276 = vrot.slane %v1244, 1
        %v1277 = vrot.slane %v1248, 1
        %v1278 = vrot.slane %v1252, 1
        %v1279 = vrot.slane %v1256, 1
        %v1280 = vrot.slane %v1260, 1
        %v1281 = vrot.slane %v1264, 1
        %v1290 = vmax.f32 %v1236, %v1274
        %v1291 = vmax.f32 %v1240, %v1275
        %v1292 = vmax.f32 %v1244, %v1276
        %v1293 = vmax.f32 %v1248, %v1277
        %v1294 = vmax.f32 %v1252, %v1278
        %v1295 = vmax.f32 %v1256, %v1279
        %v1296 = vmax.f32 %v1260, %v1280
        %v1297 = vmax.f32 %v1264, %v1281
        %v1298 = vrot.slane %v1236, 2
        %v1299 = vrot.slane %v1240, 2
        %v1300 = vrot.slane %v1244, 2
        %v1301 = vrot.slane %v1248, 2
        %v1302 = vrot.slane %v1252, 2
        %v1303 = vrot.slane %v1256, 2
        %v1304 = vrot.slane %v1260, 2
        %v1305 = vrot.slane %v1264, 2
        %v1314 = vmax.f32 %v1290, %v1298
        %v1315 = vmax.f32 %v1291, %v1299
        %v1316 = vmax.f32 %v1292, %v1300
        %v1317 = vmax.f32 %v1293, %v1301
        %v1318 = vmax.f32 %v1294, %v1302
        %v1319 = vmax.f32 %v1295, %v1303
        %v1320 = vmax.f32 %v1296, %v1304
        %v1321 = vmax.f32 %v1297, %v1305
        %v1330 = vrot.slane %v1237, 1
        %v1331 = vrot.slane %v1241, 1
        %v1332 = vrot.slane %v1245, 1
        %v1333 = vrot.slane %v1249, 1
        %v1334 = vrot.slane %v1253, 1
        %v1335 = vrot.slane %v1257, 1
        %v1336 = vrot.slane %v1261, 1
        %v1337 = vrot.slane %v1265, 1
        %v1346 = vmax.f32 %v1236, %v1330
        %v1347 = vmax.f32 %v1240, %v1331
        %v1348 = vmax.f32 %v1244, %v1332
        %v1349 = vmax.f32 %v1248, %v1333
        %v1350 = vmax.f32 %v1252, %v1334
        %v1351 = vmax.f32 %v1256, %v1335
        %v1352 = vmax.f32 %v1260, %v1336
        %v1353 = vmax.f32 %v1264, %v1337
        %v1354 = vrot.slane %v1237, 2
        %v1355 = vrot.slane %v1241, 2
        %v1356 = vrot.slane %v1245, 2
        %v1357 = vrot.slane %v1249, 2
        %v1358 = vrot.slane %v1253, 2
        %v1359 = vrot.slane %v1257, 2
        %v1360 = vrot.slane %v1261, 2
        %v1361 = vrot.slane %v1265, 2
        %v1370 = vmax.f32 %v1346, %v1354
        %v1371 = vmax.f32 %v1347, %v1355
        %v1372 = vmax.f32 %v1348, %v1356
        %v1373 = vmax.f32 %v1349, %v1357
        %v1374 = vmax.f32 %v1350, %v1358
        %v1375 = vmax.f32 %v1351, %v1359
        %v1376 = vmax.f32 %v1352, %v1360
        %v1377 = vmax.f32 %v1353, %v1361
        %v1378 = vmax.f32 %v1237, %v1330
        %v1379 = vmax.f32 %v1241, %v1331
        %v1380 = vmax.f32 %v1245, %v1332
        %v1381 = vmax.f32 %v1249, %v1333
        %v1382 = vmax.f32 %v1253, %v1334
        %v1383 = vmax.f32 %v1257, %v1335
        %v1384 = vmax.f32 %v1261, %v1336
        %v1385 = vmax.f32 %v1265, %v1337
        %v1386 = vmax.f32 %v1378, %v1354
        %v1387 = vmax.f32 %v1379, %v1355
        %v1388 = vmax.f32 %v1380, %v1356
        %v1389 = vmax.f32 %v1381, %v1357
        %v1390 = vmax.f32 %v1382, %v1358
        %v1391 = vmax.f32 %v1383, %v1359
        %v1392 = vmax.f32 %v1384, %v1360
        %v1393 = vmax.f32 %v1385, %v1361
        %v1402 = vrot.slane %v1314, 1
        %v1403 = vrot.slane %v1315, 1
        %v1404 = vrot.slane %v1316, 1
        %v1405 = vrot.slane %v1317, 1
        %v1406 = vrot.slane %v1318, 1
        %v1407 = vrot.slane %v1319, 1
        %v1408 = vrot.slane %v1320, 1
        %v1409 = vrot.slane %v1321, 1
        %v1418 = vrot.slane %v1314, 2
        %v1419 = vrot.slane %v1315, 2
        %v1420 = vrot.slane %v1316, 2
        %v1421 = vrot.slane %v1317, 2
        %v1422 = vrot.slane %v1318, 2
        %v1423 = vrot.slane %v1319, 2
        %v1424 = vrot.slane %v1320, 2
        %v1425 = vrot.slane %v1321, 2
        %v1442 = vrot.slane %v1370, 3
        %v1443 = vrot.slane %v1371, 3
        %v1444 = vrot.slane %v1372, 3
        %v1445 = vrot.slane %v1373, 3
        %v1446 = vrot.slane %v1374, 3
        %v1447 = vrot.slane %v1375, 3
        %v1448 = vrot.slane %v1376, 3
        %v1449 = vrot.slane %v1377, 3
        %v1466 = vrot.slane %v1386, 4
        %v1467 = vrot.slane %v1387, 4
        %v1468 = vrot.slane %v1388, 4
        %v1469 = vrot.slane %v1389, 4
        %v1470 = vrot.slane %v1390, 4
        %v1471 = vrot.slane %v1391, 4
        %v1472 = vrot.slane %v1392, 4
        %v1473 = vrot.slane %v1393, 4
        %v1482 = vrot.slane %v1386, 5
        %v1483 = vrot.slane %v1387, 5
        %v1484 = vrot.slane %v1388, 5
        %v1485 = vrot.slane %v1389, 5
        %v1486 = vrot.slane %v1390, 5
        %v1487 = vrot.slane %v1391, 5
        %v1488 = vrot.slane %v1392, 5
        %v1489 = vrot.slane %v1393, 5
        %v1498 = vrot.slane %v1386, 6
        %v1499 = vrot.slane %v1387, 6
        %v1500 = vrot.slane %v1388, 6
        %v1501 = vrot.slane %v1389, 6
        %v1502 = vrot.slane %v1390, 6
        %v1503 = vrot.slane %v1391, 6
        %v1504 = vrot.slane %v1392, 6
        %v1505 = vrot.slane %v1393, 6
        %vm1514 = vcmask 1040384
        %v1515 = vsel %vm1514, %v1290, %v1314
        %v1516 = vsel %vm1514, %v1291, %v1315
        %v1517 = vsel %vm1514, %v1292, %v1316
        %v1518 = vsel %vm1514, %v1293, %v1317
        %v1519 = vsel %vm1514, %v1294, %v1318
        %v1520 = vsel %vm1514, %v1295, %v1319
        %v1521 = vsel %vm1514, %v1296, %v1320
        %v1522 = vsel %vm1514, %v1297, %v1321
        %vm1523 = vcmask 1041408
        %v1524 = vsel %vm1523, %v1515, %v1402
        %v1525 = vsel %vm1523, %v1516, %v1403
        %v1526 = vsel %vm1523, %v1517, %v1404
        %v1527 = vsel %vm1523, %v1518, %v1405
        %v1528 = vsel %vm1523, %v1519, %v1406
        %v1529 = vsel %vm1523, %v1520, %v1407
        %v1530 = vsel %vm1523, %v1521, %v1408
        %v1531 = vsel %vm1523, %v1522, %v1409
        %vm1532 = vcmask 1042432
        %v1533 = vsel %vm1532, %v1524, %v1418
        %v1534 = vsel %vm1532, %v1525, %v1419
        %v1535 = vsel %vm1532, %v1526, %v1420
        %v1536 = vsel %vm1532, %v1527, %v1421
        %v1537 = vsel %vm1532, %v1528, %v1422
        %v1538 = vsel %vm1532, %v1529, %v1423
        %v1539 = vsel %vm1532, %v1530, %v1424
        %v1540 = vsel %vm1532, %v1531, %v1425
        %vm1541 = vcmask 1043456
        %v1542 = vsel %vm1541, %v1533, %v1442
        %v1543 = vsel %vm1541, %v1534, %v1443
        %v1544 = vsel %vm1541, %v1535, %v1444
        %v1545 = vsel %vm1541, %v1536, %v1445
        %v1546 = vsel %vm1541, %v1537, %v1446
        %v1547 = vsel %vm1541, %v1538, %v1447
        %v1548 = vsel %vm1541, %v1539, %v1448
        %v1549 = vsel %vm1541, %v1540, %v1449
        %vm1550 = vcmask 1044480
        %v1551 = vsel %vm1550, %v1542, %v1466
        %v1552 = vsel %vm1550, %v1543, %v1467
        %v1553 = vsel %vm1550, %v1544, %v1468
        %v1554 = vsel %vm1550, %v1545, %v1469
        %v1555 = vsel %vm1550, %v1546, %v1470
        %v1556 = vsel %vm1550, %v1547, %v1471
        %v1557 = vsel %vm1550, %v1548, %v1472
        %v1558 = vsel %vm1550, %v1549, %v1473
        %vm1559 = vcmask 1045504
        %v1560 = vsel %vm1559, %v1551, %v1482
        %v1561 = vsel %vm1559, %v1552, %v1483
        %v1562 = vsel %vm1559, %v1553, %v1484
        %v1563 = vsel %vm1559, %v1554, %v1485
        %v1564 = vsel %vm1559, %v1555, %v1486
        %v1565 = vsel %vm1559, %v1556, %v1487
        %v1566 = vsel %vm1559, %v1557, %v1488
        %v1567 = vsel %vm1559, %v1558, %v1489
        %vm1568 = vcmask 1046528
        %v1569 = vsel %vm1568, %v1560, %v1498
        %v1570 = vsel %vm1568, %v1561, %v1499
        %v1571 = vsel %vm1568, %v1562, %v1500
        %v1572 = vsel %vm1568, %v1563, %v1501
        %v1573 = vsel %vm1568, %v1564, %v1502
        %v1574 = vsel %vm1568, %v1565, %v1503
        %v1575 = vsel %vm1568, %v1566, %v1504
        %v1576 = vsel %vm1568, %v1567, %v1505
        %v1577 = vpack.c.bf16 %v1570, %v1569
        %v1578 = vpack.c.bf16 %v1572, %v1571
        %v1579 = vpack.c.bf16 %v1574, %v1573
        %v1580 = vpack.c.bf16 %v1576, %v1575
        %v1581 = vld [vmem:[%s3] sm:$0xf]
        %v1582 = vld [vmem:[%s3 + $0x4] sm:$0xf]
        %v1583 = vld [vmem:[%s3 + $0x8] sm:$0xf]
        %v1584 = vld [vmem:[%s3 + $0xc] sm:$0xf]
        %v1585 = vld [vmem:[%s3 + $0x10] sm:$0xf]
        %v1586 = vld [vmem:[%s3 + $0x14] sm:$0xf]
        %v1587 = vld [vmem:[%s3 + $0x18] sm:$0xf]
        %v1588 = vld [vmem:[%s3 + $0x1c] sm:$0xf]
        %v1589 = vld [vmem:[%s4] sm:$0x1]
        %v1591 = vlaneseq
        %v1592 = vshrl.u32 %v1591, 7
        %v1593 = vsub.s32 0, %v1592
        %v1594 = vrot.slane %v1589, %v1593
        %v1604 = vunpack.c.l.b16 %v1581
        %v1605 = vunpack.c.l.b16 %v1582
        %v1606 = vunpack.c.l.b16 %v1583
        %v1607 = vunpack.c.l.b16 %v1584
        %v1608 = vunpack.c.l.b16 %v1585
        %v1609 = vunpack.c.l.b16 %v1586
        %v1610 = vunpack.c.l.b16 %v1587
        %v1611 = vunpack.c.l.b16 %v1588
        %v1612 = vpack.c.b16 %v1605, %v1604
        %v1613 = vpack.c.b16 %v1607, %v1606
        %v1614 = vpack.c.b16 %v1609, %v1608
        %v1615 = vpack.c.b16 %v1611, %v1610
        %vm1620 = vcmask 523264
        %v1622 = vsel %vm1620, %v1577, 0
        %v1625 = vsel %vm1620, %v1578, 0
        %v1628 = vsel %vm1620, %v1579, 0
        %v1631 = vsel %vm1620, %v1580, 0
        %1633 = vmatprep.subr.bf16.mxu0 0
        %1634 = vmatpush1.bf16.msra.mxu0 %v1612
        %1635 = vmatprep.subr.bf16.mxu0 0
        %1636 = vmatpush1.bf16.msra.mxu0 %v1613
        %1637 = vmatprep.subr.bf16.mxu0 0
        %1638 = vmatpush1.bf16.msra.mxu0 %v1614
        %1639 = vmatprep.subr.bf16.mxu0 0
        %1640 = vmatpush1.bf16.msra.mxu0 %v1615
        %1641 = vmatprep.subr.bf16.mxu0 0
        %1642 = vmatpush1.bf16.msra.mxu0 0
        %1643 = vmatprep.subr.bf16.mxu0 0
        %1644 = vmatpush1.bf16.msra.mxu0 0
        %1645 = vmatprep.subr.bf16.mxu0 0
        %1646 = vmatpush1.bf16.msra.mxu0 0
        %1647 = vmatprep.subr.bf16.mxu0 0
        %1648 = vmatpush1.bf16.msra.mxu0 0
        %1649 = vmatprep.subr.bf16.mxu0 0
        %1650 = vmatpush1.bf16.msra.mxu0 0
        %1651 = vmatprep.subr.bf16.mxu0 0
        %1652 = vmatpush1.bf16.msra.mxu0 0
        %1653 = vmatprep.subr.bf16.mxu0 0
        %1654 = vmatpush1.bf16.msra.mxu0 0
        %1655 = vmatprep.subr.bf16.mxu0 0
        %1656 = vmatpush1.bf16.msra.mxu0 0
        %1657 = vmatprep.subr.bf16.mxu0 0
        %1658 = vmatpush1.bf16.msra.mxu0 0
        %1659 = vmatprep.subr.bf16.mxu0 0
        %1660 = vmatpush1.bf16.msra.mxu0 0
        %1661 = vmatprep.subr.bf16.mxu0 0
        %1662 = vmatpush1.bf16.msra.mxu0 0
        %1663 = vmatprep.subr.bf16.mxu0 0
        %1664 = vmatpush1.bf16.msra.mxu0 0
        %1665 = vmatprep.mubr.bf16.mxu0 0
        %1666 = vmatmul.mubr.bf16.gmra.mrb[0].mxu0 %v1622
        %v1667 = vpop.f32.mrb[0].mxu0
        %v1668 = vadd.f32 %v1594, %v1667
        %v1669 = vpop.f32.mrb[0].mxu0
        %v1670 = vpop.f32.mrb[0].mxu0
        %v1671 = vadd.f32 %v1594, %v1670
        %v1672 = vpop.f32.mrb[0].mxu0
        %1673 = vmatprep.mubr.bf16.mxu0 0
        %1674 = vmatmul.mubr.bf16.gmra.mrb[0].mxu0 %v1625
        %v1675 = vpop.f32.mrb[0].mxu0
        %v1676 = vadd.f32 %v1594, %v1675
        %v1677 = vpop.f32.mrb[0].mxu0
        %v1678 = vpop.f32.mrb[0].mxu0
        %v1679 = vadd.f32 %v1594, %v1678
        %v1680 = vpop.f32.mrb[0].mxu0
        %1681 = vmatprep.mubr.bf16.mxu0 0
        %1682 = vmatmul.mubr.bf16.gmra.mrb[0].mxu0 %v1628
        %v1683 = vpop.f32.mrb[0].mxu0
        %v1684 = vadd.f32 %v1594, %v1683
        %v1685 = vpop.f32.mrb[0].mxu0
        %v1686 = vpop.f32.mrb[0].mxu0
        %v1687 = vadd.f32 %v1594, %v1686
        %v1688 = vpop.f32.mrb[0].mxu0
        %1689 = vmatprep.mubr.bf16.mxu0 0
        %1690 = vmatmul.mubr.bf16.gmra.mrb[0].mxu0 %v1631
        %v1691 = vpop.f32.mrb[0].mxu0
        %v1692 = vadd.f32 %v1594, %v1691
        %v1693 = vpop.f32.mrb[0].mxu0
        %v1694 = vpop.f32.mrb[0].mxu0
        %v1695 = vadd.f32 %v1594, %v1694
        %v1696 = vpop.f32.mrb[0].mxu0
        %1697 = vdwg.mxu0
        %v1698 = vmax.f32 %v1668, 0.0
        %v1699 = vmax.f32 %v1671, 0.0
        %v1700 = vmax.f32 %v1676, 0.0
        %v1701 = vmax.f32 %v1679, 0.0
        %v1702 = vmax.f32 %v1684, 0.0
        %v1703 = vmax.f32 %v1687, 0.0
        %v1704 = vmax.f32 %v1692, 0.0
        %v1705 = vmax.f32 %v1695, 0.0
        %v1706 = vpack.c.bf16 %v1699, %v1698
        %v1707 = vpack.c.bf16 %v1701, %v1700
        %v1708 = vpack.c.bf16 %v1703, %v1702
        %v1709 = vpack.c.bf16 %v1705, %v1704
        %v1714 = vunpack.c.l.b16 %v1706
        %v1715 = vunpack.c.h.b16 %v1706
        %v1716 = vunpack.c.l.b16 %v1707
        %v1717 = vunpack.c.h.b16 %v1707
        %v1718 = vunpack.c.l.b16 %v1708
        %v1719 = vunpack.c.h.b16 %v1708
        %v1720 = vunpack.c.l.b16 %v1709
        %v1721 = vunpack.c.h.b16 %v1709
        %v1722 = vpack.c.b16 %v1714, %v1714
        %v1723 = vpack.c.b16 %v1715, %v1715
        %v1724 = vpack.c.b16 %v1716, %v1716
        %v1725 = vpack.c.b16 %v1717, %v1717
        %v1726 = vpack.c.b16 %v1718, %v1718
        %v1727 = vpack.c.b16 %v1719, %v1719
        %v1728 = vpack.c.b16 %v1720, %v1720
        %v1729 = vpack.c.b16 %v1721, %v1721
        %v1731 = vshrl.u32 %v1722, 16
        %v1733 = vrot.slane %v1731, 7
        %v1734 = vshll.u32 %v1722, 16
        %v1736 = vor.u32 %v1733, %v1734
        %v1738 = vshrl.u32 %v1723, 16
        %v1740 = vrot.slane %v1738, 7
        %v1741 = vshll.u32 %v1723, 16
        %v1743 = vor.u32 %v1740, %v1741
        %v1745 = vshrl.u32 %v1724, 16
        %v1747 = vrot.slane %v1745, 7
        %v1748 = vshll.u32 %v1724, 16
        %v1750 = vor.u32 %v1747, %v1748
        %v1752 = vshrl.u32 %v1725, 16
        %v1754 = vrot.slane %v1752, 7
        %v1755 = vshll.u32 %v1725, 16
        %v1757 = vor.u32 %v1754, %v1755
        %v1759 = vshrl.u32 %v1726, 16
        %v1761 = vrot.slane %v1759, 7
        %v1762 = vshll.u32 %v1726, 16
        %v1764 = vor.u32 %v1761, %v1762
        %v1766 = vshrl.u32 %v1727, 16
        %v1768 = vrot.slane %v1766, 7
        %v1769 = vshll.u32 %v1727, 16
        %v1771 = vor.u32 %v1768, %v1769
        %v1773 = vshrl.u32 %v1728, 16
        %v1775 = vrot.slane %v1773, 7
        %v1776 = vshll.u32 %v1728, 16
        %v1778 = vor.u32 %v1775, %v1776
        %v1780 = vshrl.u32 %v1729, 16
        %v1782 = vrot.slane %v1780, 7
        %v1783 = vshll.u32 %v1729, 16
        %v1785 = vor.u32 %v1782, %v1783
        %vm1794 = vcmask 1040384
        %vm1795 = vsmask.f32 256
        %vm1796 = vmand %vm1794, %vm1795
        %v1797 = vsel %vm1796, 0, %v1736
        %v1798 = vsel %vm1796, 0, %v1743
        %v1799 = vsel %vm1796, 0, %v1750
        %v1800 = vsel %vm1796, 0, %v1757
        %v1801 = vsel %vm1796, 0, %v1764
        %v1802 = vsel %vm1796, 0, %v1771
        %v1803 = vsel %vm1796, 0, %v1778
        %v1804 = vsel %vm1796, 0, %v1785
        %vm1805 = vcmask 1044480
        %vm1806 = vsmask.f32 4352
        %vm1807 = vmand %vm1805, %vm1806
        %v1808 = vsel %vm1807, %v1797, 0
        %v1809 = vsel %vm1807, %v1798, 0
        %v1810 = vsel %vm1807, %v1799, 0
        %v1811 = vsel %vm1807, %v1800, 0
        %v1812 = vsel %vm1807, %v1801, 0
        %v1813 = vsel %vm1807, %v1802, 0
        %v1814 = vsel %vm1807, %v1803, 0
        %v1815 = vsel %vm1807, %v1804, 0
        %v1824 = vunpack.c.l.b16 0
        %v1825 = vunpack.c.h.b16 0
        %v1826 = vunpack.c.l.b16 %v1808
        %v1827 = vunpack.c.h.b16 %v1808
        %v1828 = vunpack.c.l.b16 %v1809
        %v1829 = vunpack.c.h.b16 %v1809
        %v1830 = vunpack.c.l.b16 %v1810
        %v1831 = vunpack.c.h.b16 %v1810
        %v1832 = vunpack.c.l.b16 %v1811
        %v1833 = vunpack.c.h.b16 %v1811
        %v1834 = vunpack.c.l.b16 %v1812
        %v1835 = vunpack.c.h.b16 %v1812
        %v1836 = vunpack.c.l.b16 %v1813
        %v1837 = vunpack.c.h.b16 %v1813
        %v1838 = vunpack.c.l.b16 %v1814
        %v1839 = vunpack.c.h.b16 %v1814
        %v1840 = vpack.c.b16 %v1824, %v1824
        %v1841 = vpack.c.b16 %v1825, %v1825
        %v1842 = vpack.c.b16 %v1826, %v1826
        %v1843 = vpack.c.b16 %v1827, %v1827
        %v1844 = vpack.c.b16 %v1828, %v1828
        %v1845 = vpack.c.b16 %v1829, %v1829
        %v1846 = vpack.c.b16 %v1830, %v1830
        %v1847 = vpack.c.b16 %v1831, %v1831
        %v1848 = vpack.c.b16 %v1832, %v1832
        %v1849 = vpack.c.b16 %v1833, %v1833
        %v1850 = vpack.c.b16 %v1834, %v1834
        %v1851 = vpack.c.b16 %v1835, %v1835
        %v1852 = vpack.c.b16 %v1836, %v1836
        %v1853 = vpack.c.b16 %v1837, %v1837
        %v1854 = vpack.c.b16 %v1838, %v1838
        %v1855 = vpack.c.b16 %v1839, %v1839
        %vm1856 = vsmask.f32 3328
        %vm1857 = vsmask.f32 7440
        %vm1858 = vmor %vm1856, %vm1857
        %v1860 = vshrl.u32 %v1840, 16
        %v1862 = vrot.slane %v1860, 4
        %v1863 = vshll.u32 %v1840, 16
        %v1865 = vrot.slane %v1863, 5
        %v1866 = vor.u32 %v1862, %v1865
        %v1867 = vrot.slane %v1866, 4
        %v1869 = vshll.u32 %v1841, 16
        %v1871 = vrot.slane %v1869, 5
        %v1872 = vsel %vm1858, %v1867, %v1871
        %v1874 = vshrl.u32 %v1842, 16
        %v1876 = vrot.slane %v1874, 4
        %v1877 = vshll.u32 %v1842, 16
        %v1879 = vrot.slane %v1877, 5
        %v1880 = vor.u32 %v1876, %v1879
        %v1881 = vrot.slane %v1880, 4
        %v1883 = vshll.u32 %v1843, 16
        %v1885 = vrot.slane %v1883, 5
        %v1886 = vsel %vm1858, %v1881, %v1885
        %v1888 = vshrl.u32 %v1844, 16
        %v1890 = vrot.slane %v1888, 4
        %v1891 = vshll.u32 %v1844, 16
        %v1893 = vrot.slane %v1891, 5
        %v1894 = vor.u32 %v1890, %v1893
        %v1895 = vrot.slane %v1894, 4
        %v1897 = vshll.u32 %v1845, 16
        %v1899 = vrot.slane %v1897, 5
        %v1900 = vsel %vm1858, %v1895, %v1899
        %v1902 = vshrl.u32 %v1846, 16
        %v1904 = vrot.slane %v1902, 4
        %v1905 = vshll.u32 %v1846, 16
        %v1907 = vrot.slane %v1905, 5
        %v1908 = vor.u32 %v1904, %v1907
        %v1909 = vrot.slane %v1908, 4
        %v1911 = vshll.u32 %v1847, 16
        %v1913 = vrot.slane %v1911, 5
        %v1914 = vsel %vm1858, %v1909, %v1913
        %v1916 = vshrl.u32 %v1848, 16
        %v1918 = vrot.slane %v1916, 4
        %v1919 = vshll.u32 %v1848, 16
        %v1921 = vrot.slane %v1919, 5
        %v1922 = vor.u32 %v1918, %v1921
        %v1923 = vrot.slane %v1922, 4
        %v1925 = vshll.u32 %v1849, 16
        %v1927 = vrot.slane %v1925, 5
        %v1928 = vsel %vm1858, %v1923, %v1927
        %v1930 = vshrl.u32 %v1850, 16
        %v1932 = vrot.slane %v1930, 4
        %v1933 = vshll.u32 %v1850, 16
        %v1935 = vrot.slane %v1933, 5
        %v1936 = vor.u32 %v1932, %v1935
        %v1937 = vrot.slane %v1936, 4
        %v1939 = vshll.u32 %v1851, 16
        %v1941 = vrot.slane %v1939, 5
        %v1942 = vsel %vm1858, %v1937, %v1941
        %v1944 = vshrl.u32 %v1852, 16
        %v1946 = vrot.slane %v1944, 4
        %v1947 = vshll.u32 %v1852, 16
        %v1949 = vrot.slane %v1947, 5
        %v1950 = vor.u32 %v1946, %v1949
        %v1951 = vrot.slane %v1950, 4
        %v1953 = vshll.u32 %v1853, 16
        %v1955 = vrot.slane %v1953, 5
        %v1956 = vsel %vm1858, %v1951, %v1955
        %v1958 = vshrl.u32 %v1854, 16
        %v1960 = vrot.slane %v1958, 4
        %v1961 = vshll.u32 %v1854, 16
        %v1963 = vrot.slane %v1961, 5
        %v1964 = vor.u32 %v1960, %v1963
        %v1965 = vrot.slane %v1964, 4
        %v1967 = vshll.u32 %v1855, 16
        %v1969 = vrot.slane %v1967, 5
        %v1970 = vsel %vm1858, %v1965, %v1969
        %vm1971 = vcmask 1042432
        %vm1972 = vcmask 1046532
        %vm1973 = vmor %vm1971, %vm1972
        %v1974 = vrot.slane %v1840, 5
        %v1975 = vrot.slane %v1974, 4
        %v1976 = vrot.slane %v1841, 5
        %v1977 = vsel %vm1973, %v1975, %v1976
        %v1978 = vrot.slane %v1842, 5
        %v1979 = vrot.slane %v1978, 4
        %v1980 = vrot.slane %v1843, 5
        %v1981 = vsel %vm1973, %v1979, %v1980
        %v1982 = vrot.slane %v1844, 5
        %v1983 = vrot.slane %v1982, 4
        %v1984 = vrot.slane %v1845, 5
        %v1985 = vsel %vm1973, %v1983, %v1984
        %v1986 = vrot.slane %v1846, 5
        %v1987 = vrot.slane %v1986, 4
        %v1988 = vrot.slane %v1847, 5
        %v1989 = vsel %vm1973, %v1987, %v1988
        %v1990 = vrot.slane %v1848, 5
        %v1991 = vrot.slane %v1990, 4
        %v1992 = vrot.slane %v1849, 5
        %v1993 = vsel %vm1973, %v1991, %v1992
        %v1994 = vrot.slane %v1850, 5
        %v1995 = vrot.slane %v1994, 4
        %v1996 = vrot.slane %v1851, 5
        %v1997 = vsel %vm1973, %v1995, %v1996
        %v1998 = vrot.slane %v1852, 5
        %v1999 = vrot.slane %v1998, 4
        %v2000 = vrot.slane %v1853, 5
        %v2001 = vsel %vm1973, %v1999, %v2000
        %v2002 = vrot.slane %v1854, 5
        %v2003 = vrot.slane %v2002, 4
        %v2004 = vrot.slane %v1855, 5
        %v2005 = vsel %vm1973, %v2003, %v2004
        %v2007 = vunpack.c.l.b16 %v1815
        %v2008 = vunpack.c.h.b16 %v1815
        %v2009 = vpack.c.b16 %v2007, %v2007
        %v2010 = vpack.c.b16 %v2008, %v2008
        %v2012 = vshrl.u32 %v2009, 16
        %v2014 = vrot.slane %v2012, 4
        %v2015 = vshll.u32 %v2009, 16
        %v2017 = vrot.slane %v2015, 5
        %v2018 = vor.u32 %v2014, %v2017
        %v2019 = vrot.slane %v2018, 4
        %v2021 = vshll.u32 %v2010, 16
        %v2023 = vrot.slane %v2021, 5
        %v2024 = vsel %vm1858, %v2019, %v2023
        %v2025 = vrot.slane %v2009, 5
        %v2026 = vrot.slane %v2025, 4
        %v2027 = vrot.slane %v2010, 5
        %v2028 = vsel %vm1973, %v2026, %v2027
        %v2029 = vpack.c.b16 %v1826, %v1824
        %v2030 = vpack.c.b16 %v1830, %v1828
        %v2031 = vpack.c.b16 %v1834, %v1832
        %v2032 = vpack.c.b16 %v1838, %v1836
        %v2033 = vunpack.c.l.b16 %v1872
        %v2034 = vunpack.c.l.b16 %v1886
        %v2035 = vunpack.c.l.b16 %v1900
        %v2036 = vunpack.c.l.b16 %v1914
        %v2037 = vunpack.c.l.b16 %v1928
        %v2038 = vunpack.c.l.b16 %v1942
        %v2039 = vunpack.c.l.b16 %v1956
        %v2040 = vunpack.c.l.b16 %v1970
        %v2041 = vpack.c.b16 %v2034, %v2033
        %v2042 = vpack.c.b16 %v2036, %v2035
        %v2043 = vpack.c.b16 %v2038, %v2037
        %v2044 = vpack.c.b16 %v2040, %v2039
        %2045 = vrot.lane.b32.xlu0 %v2041, 64
        %v2046 = vpop.permute.xlu0 %2045
        %2047 = vrot.lane.b32.xlu0 %v2042, 64
        %v2048 = vpop.permute.xlu0 %2047
        %2049 = vrot.lane.b32.xlu0 %v2043, 64
        %v2050 = vpop.permute.xlu0 %2049
        %2051 = vrot.lane.b32.xlu0 %v2044, 64
        %v2052 = vpop.permute.xlu0 %2051
        %v2053 = vunpack.c.l.b16 %v1977
        %v2054 = vunpack.c.l.b16 %v1981
        %v2055 = vunpack.c.l.b16 %v1985
        %v2056 = vunpack.c.l.b16 %v1989
        %v2057 = vunpack.c.l.b16 %v1993
        %v2058 = vunpack.c.l.b16 %v1997
        %v2059 = vunpack.c.l.b16 %v2001
        %v2060 = vunpack.c.l.b16 %v2005
        %v2061 = vpack.c.b16 %v2054, %v2053
        %v2062 = vpack.c.b16 %v2056, %v2055
        %v2063 = vpack.c.b16 %v2058, %v2057
        %v2064 = vpack.c.b16 %v2060, %v2059
        %v2065 = vpack.c.b16 %v1828, %v1826
        %v2066 = vpack.c.b16 %v1832, %v1830
        %v2067 = vpack.c.b16 %v1836, %v1834
        %v2068 = vpack.c.b16 %v2007, %v1838
        %2069 = vrot.lane.b32.xlu0 %v2065, 64
        %v2070 = vpop.permute.xlu0 %2069
        %2071 = vrot.lane.b32.xlu0 %v2066, 64
        %v2072 = vpop.permute.xlu0 %2071
        %2073 = vrot.lane.b32.xlu0 %v2067, 64
        %v2074 = vpop.permute.xlu0 %2073
        %2075 = vrot.lane.b32.xlu0 %v2068, 64
        %v2076 = vpop.permute.xlu0 %2075
        %v2077 = vunpack.c.l.b16 %v2024
        %v2078 = vpack.c.b16 %v2035, %v2034
        %v2079 = vpack.c.b16 %v2037, %v2036
        %v2080 = vpack.c.b16 %v2039, %v2038
        %v2081 = vpack.c.b16 %v2077, %v2040
        %v2082 = vunpack.c.l.b16 %v2028
        %v2083 = vpack.c.b16 %v2055, %v2054
        %v2084 = vpack.c.b16 %v2057, %v2056
        %v2085 = vpack.c.b16 %v2059, %v2058
        %v2086 = vpack.c.b16 %v2082, %v2060
        %2087 = vrot.lane.b32.xlu0 %v2083, 64
        %v2088 = vpop.permute.xlu0 %2087
        %2089 = vrot.lane.b32.xlu0 %v2084, 64
        %v2090 = vpop.permute.xlu0 %2089
        %2091 = vrot.lane.b32.xlu0 %v2085, 64
        %v2092 = vpop.permute.xlu0 %2091
        %2093 = vrot.lane.b32.xlu0 %v2086, 64
        %v2094 = vpop.permute.xlu0 %2093
        %v2095 = vpack.c.b16 %v1824, %v2007
        %v2096 = vpack.c.b16 %v2033, %v2077
        %2097 = vrot.lane.b32.xlu0 %v2096, 64
        %v2098 = vpop.permute.xlu0 %2097
        %v2099 = vpack.c.b16 %v2053, %v2082
        %v2102 = vsel %vm1620, %v2029, %v2046
        %v2106 = vsel %vm1620, %v2030, %v2048
        %v2110 = vsel %vm1620, %v2031, %v2050
        %v2114 = vsel %vm1620, %v2032, %v2052
        %v2118 = vsel %vm1620, %v2061, %v2070
        %v2122 = vsel %vm1620, %v2062, %v2072
        %v2126 = vsel %vm1620, %v2063, %v2074
        %v2130 = vsel %vm1620, %v2064, %v2076
        %v2134 = vsel %vm1620, %v2078, %v2088
        %v2138 = vsel %vm1620, %v2079, %v2090
        %v2142 = vsel %vm1620, %v2080, %v2092
        %v2146 = vsel %vm1620, %v2081, %v2094
        %v2150 = vsel %vm1620, %v2095, %v2098
        %v2152 = vld [vmem:[%s5] sm:$0xf]
        %v2153 = vld [vmem:[%s5 + $0x4] sm:$0xf]
        %v2154 = vld [vmem:[%s5 + $0x8] sm:$0xf]
        %v2155 = vld [vmem:[%s5 + $0xc] sm:$0xf]
        %v2156 = vld [vmem:[%s5 + $0x10] sm:$0xf]
        %v2157 = vld [vmem:[%s5 + $0x14] sm:$0xf]
        %v2158 = vld [vmem:[%s5 + $0x18] sm:$0xf]
        %v2159 = vld [vmem:[%s5 + $0x1c] sm:$0xf]
        %v2160 = vld [vmem:[%s5 + $0x20] sm:$0xf]
        %v2161 = vld [vmem:[%s5 + $0x24] sm:$0xf]
        %v2162 = vld [vmem:[%s5 + $0x28] sm:$0xf]
        %v2163 = vld [vmem:[%s5 + $0x2c] sm:$0xf]
        %v2164 = vld [vmem:[%s5 + $0x30] sm:$0xf]
        %v2165 = vld [vmem:[%s5 + $0x34] sm:$0xf]
        %v2166 = vld [vmem:[%s5 + $0x38] sm:$0xf]
        %v2167 = vld [vmem:[%s5 + $0x3c] sm:$0xf]
        %v2168 = vld [vmem:[%s5 + $0x40] sm:$0xf]
        %v2169 = vld [vmem:[%s5 + $0x44] sm:$0xf]
        %v2170 = vld [vmem:[%s5 + $0x48] sm:$0xf]
        %v2171 = vld [vmem:[%s5 + $0x4c] sm:$0xf]
        %v2172 = vld [vmem:[%s5 + $0x50] sm:$0xf]
        %v2173 = vld [vmem:[%s5 + $0x54] sm:$0xf]
        %v2174 = vld [vmem:[%s5 + $0x58] sm:$0xf]
        %v2175 = vld [vmem:[%s5 + $0x5c] sm:$0xf]
        %v2176 = vld [vmem:[%s5 + $0x60] sm:$0xf]
        %v2177 = vld [vmem:[%s5 + $0x64] sm:$0xf]
        %v2178 = vld [vmem:[%s5 + $0x68] sm:$0xf]
        %v2179 = vld [vmem:[%s5 + $0x6c] sm:$0xf]
        %v2180 = vld [vmem:[%s5 + $0x70] sm:$0xf]
        %v2181 = vld [vmem:[%s5 + $0x74] sm:$0xf]
        %v2182 = vld [vmem:[%s5 + $0x78] sm:$0xf]
        %v2183 = vld [vmem:[%s5 + $0x7c] sm:$0xf]
        %v2184 = vld [vmem:[%s5 + $0x80] sm:$0xf]
        %v2185 = vld [vmem:[%s5 + $0x84] sm:$0xf]
        %v2186 = vld [vmem:[%s5 + $0x88] sm:$0xf]
        %v2187 = vld [vmem:[%s5 + $0x8c] sm:$0xf]
        %v2188 = vld [vmem:[%s5 + $0x90] sm:$0xf]
        %v2189 = vld [vmem:[%s5 + $0x94] sm:$0xf]
        %v2190 = vld [vmem:[%s5 + $0x98] sm:$0xf]
        %v2191 = vld [vmem:[%s5 + $0x9c] sm:$0xf]
        %v2192 = vld [vmem:[%s5 + $0xa0] sm:$0xf]
        %v2193 = vld [vmem:[%s5 + $0xa4] sm:$0xf]
        %v2194 = vld [vmem:[%s5 + $0xa8] sm:$0xf]
        %v2195 = vld [vmem:[%s5 + $0xac] sm:$0xf]
        %v2196 = vld [vmem:[%s5 + $0xb0] sm:$0xf]
        %v2197 = vld [vmem:[%s5 + $0xb4] sm:$0xf]
        %v2198 = vld [vmem:[%s5 + $0xb8] sm:$0xf]
        %v2199 = vld [vmem:[%s5 + $0xbc] sm:$0xf]
        %v2200 = vld [vmem:[%s5 + $0xc0] sm:$0xf]
        %v2201 = vld [vmem:[%s5 + $0xc4] sm:$0xf]
        %v2202 = vld [vmem:[%s5 + $0xc8] sm:$0xf]
        %v2203 = vld [vmem:[%s5 + $0xcc] sm:$0xf]
        %v2204 = vld [vmem:[%s5 + $0xd0] sm:$0xf]
        %v2205 = vld [vmem:[%s5 + $0xd4] sm:$0xf]
        %v2206 = vld [vmem:[%s5 + $0xd8] sm:$0xf]
        %v2207 = vld [vmem:[%s5 + $0xdc] sm:$0xf]
        %v2208 = vld [vmem:[%s5 + $0xe0] sm:$0xf]
        %v2209 = vld [vmem:[%s5 + $0xe4] sm:$0xf]
        %v2210 = vld [vmem:[%s5 + $0xe8] sm:$0xf]
        %v2211 = vld [vmem:[%s5 + $0xec] sm:$0xf]
        %v2212 = vld [vmem:[%s5 + $0xf0] sm:$0xf]
        %v2213 = vld [vmem:[%s5 + $0xf4] sm:$0xf]
        %v2214 = vld [vmem:[%s5 + $0xf8] sm:$0xf]
        %v2215 = vld [vmem:[%s5 + $0xfc] sm:$0xf]
        %v2216 = vld [vmem:[%s5 + $0x100] sm:$0xf]
        %v2217 = vld [vmem:[%s5 + $0x104] sm:$0xf]
        %v2218 = vld [vmem:[%s5 + $0x108] sm:$0xf]
        %v2219 = vld [vmem:[%s5 + $0x10c] sm:$0xf]
        %v2220 = vld [vmem:[%s5 + $0x110] sm:$0xf]
        %v2221 = vld [vmem:[%s5 + $0x114] sm:$0xf]
        %v2222 = vld [vmem:[%s5 + $0x118] sm:$0xf]
        %v2223 = vld [vmem:[%s5 + $0x11c] sm:$0xf]
        %v2224 = vld [vmem:[%s6] sm:$0x1]
        %v2226 = vlaneseq
        %v2227 = vshrl.u32 %v2226, 7
        %v2228 = vsub.s32 0, %v2227
        %v2229 = vrot.slane %v2224, %v2228
        %v2303 = vunpack.c.l.b16 %v2152
        %v2304 = vunpack.c.l.b16 %v2153
        %v2305 = vunpack.c.l.b16 %v2154
        %v2306 = vunpack.c.l.b16 %v2155
        %v2307 = vunpack.c.l.b16 %v2156
        %v2308 = vunpack.c.l.b16 %v2157
        %v2309 = vunpack.c.l.b16 %v2158
        %v2310 = vunpack.c.l.b16 %v2159
        %v2311 = vunpack.c.l.b16 %v2160
        %v2312 = vunpack.c.l.b16 %v2161
        %v2313 = vunpack.c.l.b16 %v2162
        %v2314 = vunpack.c.l.b16 %v2163
        %v2315 = vunpack.c.l.b16 %v2164
        %v2316 = vunpack.c.l.b16 %v2165
        %v2317 = vunpack.c.l.b16 %v2166
        %v2318 = vunpack.c.l.b16 %v2167
        %v2319 = vunpack.c.l.b16 %v2168
        %v2320 = vunpack.c.l.b16 %v2169
        %v2321 = vunpack.c.l.b16 %v2170
        %v2322 = vunpack.c.l.b16 %v2171
        %v2323 = vunpack.c.l.b16 %v2172
        %v2324 = vunpack.c.l.b16 %v2173
        %v2325 = vunpack.c.l.b16 %v2174
        %v2326 = vunpack.c.l.b16 %v2175
        %v2327 = vunpack.c.l.b16 %v2176
        %v2328 = vunpack.c.l.b16 %v2177
        %v2329 = vunpack.c.l.b16 %v2178
        %v2330 = vunpack.c.l.b16 %v2179
        %v2331 = vunpack.c.l.b16 %v2180
        %v2332 = vunpack.c.l.b16 %v2181
        %v2333 = vunpack.c.l.b16 %v2182
        %v2334 = vunpack.c.l.b16 %v2183
        %v2335 = vunpack.c.l.b16 %v2184
        %v2336 = vunpack.c.l.b16 %v2185
        %v2337 = vunpack.c.l.b16 %v2186
        %v2338 = vunpack.c.l.b16 %v2187
        %v2339 = vunpack.c.l.b16 %v2188
        %v2340 = vunpack.c.l.b16 %v2189
        %v2341 = vunpack.c.l.b16 %v2190
        %v2342 = vunpack.c.l.b16 %v2191
        %v2343 = vunpack.c.l.b16 %v2192
        %v2344 = vunpack.c.l.b16 %v2193
        %v2345 = vunpack.c.l.b16 %v2194
        %v2346 = vunpack.c.l.b16 %v2195
        %v2347 = vunpack.c.l.b16 %v2196
        %v2348 = vunpack.c.l.b16 %v2197
        %v2349 = vunpack.c.l.b16 %v2198
        %v2350 = vunpack.c.l.b16 %v2199
        %v2351 = vunpack.c.l.b16 %v2200
        %v2352 = vunpack.c.l.b16 %v2201
        %v2353 = vunpack.c.l.b16 %v2202
        %v2354 = vunpack.c.l.b16 %v2203
        %v2355 = vunpack.c.l.b16 %v2204
        %v2356 = vunpack.c.l.b16 %v2205
        %v2357 = vunpack.c.l.b16 %v2206
        %v2358 = vunpack.c.l.b16 %v2207
        %v2359 = vunpack.c.l.b16 %v2208
        %v2360 = vunpack.c.l.b16 %v2209
        %v2361 = vunpack.c.l.b16 %v2210
        %v2362 = vunpack.c.l.b16 %v2211
        %v2363 = vunpack.c.l.b16 %v2212
        %v2364 = vunpack.c.l.b16 %v2213
        %v2365 = vunpack.c.l.b16 %v2214
        %v2366 = vunpack.c.l.b16 %v2215
        %v2367 = vunpack.c.l.b16 %v2216
        %v2368 = vunpack.c.l.b16 %v2217
        %v2369 = vunpack.c.l.b16 %v2218
        %v2370 = vunpack.c.l.b16 %v2219
        %v2371 = vunpack.c.l.b16 %v2220
        %v2372 = vunpack.c.l.b16 %v2221
        %v2373 = vunpack.c.l.b16 %v2222
        %v2374 = vunpack.c.l.b16 %v2223
        %v2375 = vpack.c.b16 %v2304, %v2303
        %v2376 = vpack.c.b16 %v2306, %v2305
        %v2377 = vpack.c.b16 %v2308, %v2307
        %v2378 = vpack.c.b16 %v2310, %v2309
        %v2379 = vpack.c.b16 %v2312, %v2311
        %v2380 = vpack.c.b16 %v2314, %v2313
        %v2381 = vpack.c.b16 %v2316, %v2315
        %v2382 = vpack.c.b16 %v2318, %v2317
        %v2383 = vpack.c.b16 %v2320, %v2319
        %v2384 = vpack.c.b16 %v2322, %v2321
        %v2385 = vpack.c.b16 %v2324, %v2323
        %v2386 = vpack.c.b16 %v2326, %v2325
        %v2387 = vpack.c.b16 %v2328, %v2327
        %v2388 = vpack.c.b16 %v2330, %v2329
        %v2389 = vpack.c.b16 %v2332, %v2331
        %v2390 = vpack.c.b16 %v2334, %v2333
        %v2391 = vpack.c.b16 %v2336, %v2335
        %v2392 = vpack.c.b16 %v2338, %v2337
        %v2393 = vpack.c.b16 %v2340, %v2339
        %v2394 = vpack.c.b16 %v2342, %v2341
        %v2395 = vpack.c.b16 %v2344, %v2343
        %v2396 = vpack.c.b16 %v2346, %v2345
        %v2397 = vpack.c.b16 %v2348, %v2347
        %v2398 = vpack.c.b16 %v2350, %v2349
        %v2399 = vpack.c.b16 %v2352, %v2351
        %v2400 = vpack.c.b16 %v2354, %v2353
        %v2401 = vpack.c.b16 %v2356, %v2355
        %v2402 = vpack.c.b16 %v2358, %v2357
        %v2403 = vpack.c.b16 %v2360, %v2359
        %v2404 = vpack.c.b16 %v2362, %v2361
        %v2405 = vpack.c.b16 %v2364, %v2363
        %v2406 = vpack.c.b16 %v2366, %v2365
        %v2407 = vpack.c.b16 %v2368, %v2367
        %v2408 = vpack.c.b16 %v2370, %v2369
        %v2409 = vpack.c.b16 %v2372, %v2371
        %v2410 = vpack.c.b16 %v2374, %v2373
        %v2447 = vsel %vm1620, %v2062, 0
        %v2449 = vsel %vm1620, %v2063, 0
        %v2451 = vsel %vm1620, %v2064, 0
        %v2454 = vsel %vm1620, %v2099, 0
        %2456 = vmatprep.subr.bf16.mxu0 0
        %2457 = vmatpush1.bf16.msra.mxu0 %v2375
        %2458 = vmatprep.subr.bf16.mxu0 0
        %2459 = vmatpush1.bf16.msra.mxu0 %v2376
        %2460 = vmatprep.subr.bf16.mxu0 0
        %2461 = vmatpush1.bf16.msra.mxu0 %v2377
        %2462 = vmatprep.subr.bf16.mxu0 0
        %2463 = vmatpush1.bf16.msra.mxu0 %v2378
        %2464 = vmatprep.subr.bf16.mxu0 0
        %2465 = vmatpush1.bf16.msra.mxu0 %v2379
        %2466 = vmatprep.subr.bf16.mxu0 0
        %2467 = vmatpush1.bf16.msra.mxu0 %v2380
        %2468 = vmatprep.subr.bf16.mxu0 0
        %2469 = vmatpush1.bf16.msra.mxu0 %v2381
        %2470 = vmatprep.subr.bf16.mxu0 0
        %2471 = vmatpush1.bf16.msra.mxu0 %v2382
        %2472 = vmatprep.subr.bf16.mxu0 0
        %2473 = vmatpush1.bf16.msra.mxu0 %v2383
        %2474 = vmatprep.subr.bf16.mxu0 0
        %2475 = vmatpush1.bf16.msra.mxu0 %v2384
        %2476 = vmatprep.subr.bf16.mxu0 0
        %2477 = vmatpush1.bf16.msra.mxu0 %v2385
        %2478 = vmatprep.subr.bf16.mxu0 0
        %2479 = vmatpush1.bf16.msra.mxu0 %v2386
        %2480 = vmatprep.subr.bf16.mxu0 0
        %2481 = vmatpush1.bf16.msra.mxu0 %v2387
        %2482 = vmatprep.subr.bf16.mxu0 0
        %2483 = vmatpush1.bf16.msra.mxu0 %v2388
        %2484 = vmatprep.subr.bf16.mxu0 0
        %2485 = vmatpush1.bf16.msra.mxu0 %v2389
        %2486 = vmatprep.subr.bf16.mxu0 0
        %2487 = vmatpush1.bf16.msra.mxu0 %v2390
        %2488 = vmatprep.mubr.bf16.mxu0 %v2118
        %2489 = vmatmul.mubr.bf16.gmra.mrb[0].mxu0 %v2102
        %v2490 = vpop.f32.mrb[0].mxu0
        %v2491 = vadd.f32 %v2229, %v2490
        %v2492 = vpop.f32.mrb[0].mxu0
        %v2493 = vpop.f32.mrb[0].mxu0
        %v2494 = vadd.f32 %v2229, %v2493
        %v2495 = vpop.f32.mrb[0].mxu0
        %2496 = vmatprep.mubr.bf16.mxu0 %v2122
        %2497 = vmatmul.mubr.bf16.gmra.mrb[0].mxu0 %v2106
        %v2498 = vpop.f32.mrb[0].mxu0
        %v2499 = vadd.f32 %v2229, %v2498
        %v2500 = vpop.f32.mrb[0].mxu0
        %v2501 = vpop.f32.mrb[0].mxu0
        %v2502 = vadd.f32 %v2229, %v2501
        %v2503 = vpop.f32.mrb[0].mxu0
        %2504 = vmatprep.mubr.bf16.mxu0 %v2126
        %2505 = vmatmul.mubr.bf16.gmra.mrb[0].mxu0 %v2110
        %v2506 = vpop.f32.mrb[0].mxu0
        %v2507 = vadd.f32 %v2229, %v2506
        %v2508 = vpop.f32.mrb[0].mxu0
        %v2509 = vpop.f32.mrb[0].mxu0
        %v2510 = vadd.f32 %v2229, %v2509
        %v2511 = vpop.f32.mrb[0].mxu0
        %2512 = vmatprep.mubr.bf16.mxu0 %v2130
        %2513 = vmatmul.mubr.bf16.gmra.mrb[0].mxu0 %v2114
        %v2514 = vpop.f32.mrb[0].mxu0
        %v2515 = vadd.f32 %v2229, %v2514
        %v2516 = vpop.f32.mrb[0].mxu0
        %v2517 = vpop.f32.mrb[0].mxu0
        %v2518 = vadd.f32 %v2229, %v2517
        %v2519 = vpop.f32.mrb[0].mxu0
        %2520 = vdwg.mxu0
        %2521 = vmatprep.subr.bf16.mxu0 0
        %2522 = vmatpush1.bf16.msra.mxu0 %v2391
        %2523 = vmatprep.subr.bf16.mxu0 0
        %2524 = vmatpush1.bf16.msra.mxu0 %v2392
        %2525 = vmatprep.subr.bf16.mxu0 0
        %2526 = vmatpush1.bf16.msra.mxu0 %v2393
        %2527 = vmatprep.subr.bf16.mxu0 0
        %2528 = vmatpush1.bf16.msra.mxu0 %v2394
        %2529 = vmatprep.subr.bf16.mxu0 0
        %2530 = vmatpush1.bf16.msra.mxu0 %v2395
        %2531 = vmatprep.subr.bf16.mxu0 0
        %2532 = vmatpush1.bf16.msra.mxu0 %v2396
        %2533 = vmatprep.subr.bf16.mxu0 0
        %2534 = vmatpush1.bf16.msra.mxu0 %v2397
        %2535 = vmatprep.subr.bf16.mxu0 0
        %2536 = vmatpush1.bf16.msra.mxu0 %v2398
        %2537 = vmatprep.subr.bf16.mxu0 0
        %2538 = vmatpush1.bf16.msra.mxu0 %v2399
        %2539 = vmatprep.subr.bf16.mxu0 0
        %2540 = vmatpush1.bf16.msra.mxu0 %v2400
        %2541 = vmatprep.subr.bf16.mxu0 0
        %2542 = vmatpush1.bf16.msra.mxu0 %v2401
        %2543 = vmatprep.subr.bf16.mxu0 0
        %2544 = vmatpush1.bf16.msra.mxu0 %v2402
        %2545 = vmatprep.subr.bf16.mxu0 0
        %2546 = vmatpush1.bf16.msra.mxu0 %v2403
        %2547 = vmatprep.subr.bf16.mxu0 0
        %2548 = vmatpush1.bf16.msra.mxu0 %v2404
        %2549 = vmatprep.subr.bf16.mxu0 0
        %2550 = vmatpush1.bf16.msra.mxu0 %v2405
        %2551 = vmatprep.subr.bf16.mxu0 0
        %2552 = vmatpush1.bf16.msra.mxu0 %v2406
        %2553 = vmatprep.mubr.bf16.mxu0 %v2106
        %2554 = vmatmul.mubr.bf16.gmra.mrb[0].mxu0 %v2134
        %v2555 = vpop.f32.mrb[0].mxu0
        %v2556 = vadd.f32 %v2491, %v2555
        %v2557 = vpop.f32.mrb[0].mxu0
        %v2558 = vpop.f32.mrb[0].mxu0
        %v2559 = vadd.f32 %v2494, %v2558
        %v2560 = vpop.f32.mrb[0].mxu0
        %2561 = vmatprep.mubr.bf16.mxu0 %v2110
        %2562 = vmatmul.mubr.bf16.gmra.mrb[0].mxu0 %v2138
        %v2563 = vpop.f32.mrb[0].mxu0
        %v2564 = vadd.f32 %v2499, %v2563
        %v2565 = vpop.f32.mrb[0].mxu0
        %v2566 = vpop.f32.mrb[0].mxu0
        %v2567 = vadd.f32 %v2502, %v2566
        %v2568 = vpop.f32.mrb[0].mxu0
        %2569 = vmatprep.mubr.bf16.mxu0 %v2114
        %2570 = vmatmul.mubr.bf16.gmra.mrb[0].mxu0 %v2142
        %v2571 = vpop.f32.mrb[0].mxu0
        %v2572 = vadd.f32 %v2507, %v2571
        %v2573 = vpop.f32.mrb[0].mxu0
        %v2574 = vpop.f32.mrb[0].mxu0
        %v2575 = vadd.f32 %v2510, %v2574
        %v2576 = vpop.f32.mrb[0].mxu0
        %2577 = vmatprep.mubr.bf16.mxu0 %v2150
        %2578 = vmatmul.mubr.bf16.gmra.mrb[0].mxu0 %v2146
        %v2579 = vpop.f32.mrb[0].mxu0
        %v2580 = vadd.f32 %v2515, %v2579
        %v2581 = vpop.f32.mrb[0].mxu0
        %v2582 = vpop.f32.mrb[0].mxu0
        %v2583 = vadd.f32 %v2518, %v2582
        %v2584 = vpop.f32.mrb[0].mxu0
        %2585 = vdwg.mxu0
        %2586 = vmatprep.subr.bf16.mxu0 0
        %2587 = vmatpush1.bf16.msra.mxu0 %v2407
        %2588 = vmatprep.subr.bf16.mxu0 0
        %2589 = vmatpush1.bf16.msra.mxu0 %v2408
        %2590 = vmatprep.subr.bf16.mxu0 0
        %2591 = vmatpush1.bf16.msra.mxu0 %v2409
        %2592 = vmatprep.subr.bf16.mxu0 0
        %2593 = vmatpush1.bf16.msra.mxu0 %v2410
        %2594 = vmatprep.subr.bf16.mxu0 0
        %2595 = vmatpush1.bf16.msra.mxu0 0
        %2596 = vmatprep.subr.bf16.mxu0 0
        %2597 = vmatpush1.bf16.msra.mxu0 0
        %2598 = vmatprep.subr.bf16.mxu0 0
        %2599 = vmatpush1.bf16.msra.mxu0 0
        %2600 = vmatprep.subr.bf16.mxu0 0
        %2601 = vmatpush1.bf16.msra.mxu0 0
        %2602 = vmatprep.subr.bf16.mxu0 0
        %2603 = vmatpush1.bf16.msra.mxu0 0
        %2604 = vmatprep.subr.bf16.mxu0 0
        %2605 = vmatpush1.bf16.msra.mxu0 0
        %2606 = vmatprep.subr.bf16.mxu0 0
        %2607 = vmatpush1.bf16.msra.mxu0 0
        %2608 = vmatprep.subr.bf16.mxu0 0
        %2609 = vmatpush1.bf16.msra.mxu0 0
        %2610 = vmatprep.subr.bf16.mxu0 0
        %2611 = vmatpush1.bf16.msra.mxu0 0
        %2612 = vmatprep.subr.bf16.mxu0 0
        %2613 = vmatpush1.bf16.msra.mxu0 0
        %2614 = vmatprep.subr.bf16.mxu0 0
        %2615 = vmatpush1.bf16.msra.mxu0 0
        %2616 = vmatprep.subr.bf16.mxu0 0
        %2617 = vmatpush1.bf16.msra.mxu0 0
        %2618 = vmatprep.mubr.bf16.mxu0 0
        %2619 = vmatmul.mubr.bf16.gmra.mrb[0].mxu0 %v2447
        %v2620 = vpop.f32.mrb[0].mxu0
        %v2621 = vadd.f32 %v2556, %v2620
        %v2622 = vpop.f32.mrb[0].mxu0
        %v2623 = vpop.f32.mrb[0].mxu0
        %v2624 = vadd.f32 %v2559, %v2623
        %v2625 = vpop.f32.mrb[0].mxu0
        %2626 = vmatprep.mubr.bf16.mxu0 0
        %2627 = vmatmul.mubr.bf16.gmra.mrb[0].mxu0 %v2449
        %v2628 = vpop.f32.mrb[0].mxu0
        %v2629 = vadd.f32 %v2564, %v2628
        %v2630 = vpop.f32.mrb[0].mxu0
        %v2631 = vpop.f32.mrb[0].mxu0
        %v2632 = vadd.f32 %v2567, %v2631
        %v2633 = vpop.f32.mrb[0].mxu0
        %2634 = vmatprep.mubr.bf16.mxu0 0
        %2635 = vmatmul.mubr.bf16.gmra.mrb[0].mxu0 %v2451
        %v2636 = vpop.f32.mrb[0].mxu0
        %v2637 = vadd.f32 %v2572, %v2636
        %v2638 = vpop.f32.mrb[0].mxu0
        %v2639 = vpop.f32.mrb[0].mxu0
        %v2640 = vadd.f32 %v2575, %v2639
        %v2641 = vpop.f32.mrb[0].mxu0
        %2642 = vmatprep.mubr.bf16.mxu0 0
        %2643 = vmatmul.mubr.bf16.gmra.mrb[0].mxu0 %v2454
        %v2644 = vpop.f32.mrb[0].mxu0
        %v2645 = vadd.f32 %v2580, %v2644
        %v2646 = vpop.f32.mrb[0].mxu0
        %v2647 = vpop.f32.mrb[0].mxu0
        %v2648 = vadd.f32 %v2583, %v2647
        %v2649 = vpop.f32.mrb[0].mxu0
        %2650 = vdwg.mxu0
        %v2651 = vmax.f32 %v2621, 0.0
        %v2652 = vmax.f32 %v2624, 0.0
        %v2653 = vmax.f32 %v2629, 0.0
        %v2654 = vmax.f32 %v2632, 0.0
        %v2655 = vmax.f32 %v2637, 0.0
        %v2656 = vmax.f32 %v2640, 0.0
        %v2657 = vmax.f32 %v2645, 0.0
        %v2658 = vmax.f32 %v2648, 0.0
        %v2659 = vpack.c.bf16 %v2652, %v2651
        %v2660 = vpack.c.bf16 %v2654, %v2653
        %v2661 = vpack.c.bf16 %v2656, %v2655
        %v2662 = vpack.c.bf16 %v2658, %v2657
        %v2663 = vld [vmem:[%s7] sm:$0xff]
        %v2664 = vld [vmem:[%s7 + $0x8] sm:$0xff]
        %v2665 = vld [vmem:[%s7 + $0x10] sm:$0xff]
        %v2666 = vld [vmem:[%s7 + $0x18] sm:$0xff]
        %v2667 = vld [vmem:[%s7 + $0x20] sm:$0xff]
        %v2668 = vld [vmem:[%s7 + $0x28] sm:$0xff]
        %v2669 = vld [vmem:[%s7 + $0x30] sm:$0xff]
        %v2670 = vld [vmem:[%s7 + $0x38] sm:$0xff]
        %v2671 = vld [vmem:[%s8] sm:$0x3]
        %v2673 = vlaneseq
        %v2674 = vshrl.u32 %v2673, 7
        %v2675 = vsub.s32 0, %v2674
        %v2676 = vrot.slane %v2671, %v2675
        %v2677 = vlaneseq
        %v2678 = vshrl.u32 %v2677, 7
        %v2679 = vsub.s32 1, %v2678
        %v2680 = vrot.slane %v2671, %v2679
        %v2691 = vunpack.c.l.b16 %v2663
        %v2692 = vunpack.c.h.b16 %v2663
        %v2693 = vunpack.c.l.b16 %v2664
        %v2694 = vunpack.c.h.b16 %v2664
        %v2695 = vunpack.c.l.b16 %v2665
        %v2696 = vunpack.c.h.b16 %v2665
        %v2697 = vunpack.c.l.b16 %v2666
        %v2698 = vunpack.c.h.b16 %v2666
        %v2699 = vunpack.c.l.b16 %v2667
        %v2700 = vunpack.c.h.b16 %v2667
        %v2701 = vunpack.c.l.b16 %v2668
        %v2702 = vunpack.c.h.b16 %v2668
        %v2703 = vunpack.c.l.b16 %v2669
        %v2704 = vunpack.c.h.b16 %v2669
        %v2705 = vunpack.c.l.b16 %v2670
        %v2706 = vunpack.c.h.b16 %v2670
        %v2707 = vpack.c.b16 %v2693, %v2691
        %v2708 = vpack.c.b16 %v2694, %v2692
        %v2709 = vpack.c.b16 %v2697, %v2695
        %v2710 = vpack.c.b16 %v2698, %v2696
        %v2711 = vpack.c.b16 %v2701, %v2699
        %v2712 = vpack.c.b16 %v2702, %v2700
        %v2713 = vpack.c.b16 %v2705, %v2703
        %v2714 = vpack.c.b16 %v2706, %v2704
        %v2724 = vsel %vm1620, %v2659, 0
        %v2727 = vsel %vm1620, %v2660, 0
        %v2730 = vsel %vm1620, %v2661, 0
        %v2733 = vsel %vm1620, %v2662, 0
        %2735 = vmatprep.subr.bf16.mxu0 %v2708
        %2736 = vmatpush1.bf16.msra.mxu0 %v2707
        %2737 = vmatprep.subr.bf16.mxu0 %v2710
        %2738 = vmatpush1.bf16.msra.mxu0 %v2709
        %2739 = vmatprep.subr.bf16.mxu0 %v2712
        %2740 = vmatpush1.bf16.msra.mxu0 %v2711
        %2741 = vmatprep.subr.bf16.mxu0 %v2714
        %2742 = vmatpush1.bf16.msra.mxu0 %v2713
        %2743 = vmatprep.subr.bf16.mxu0 0
        %2744 = vmatpush1.bf16.msra.mxu0 0
        %2745 = vmatprep.subr.bf16.mxu0 0
        %2746 = vmatpush1.bf16.msra.mxu0 0
        %2747 = vmatprep.subr.bf16.mxu0 0
        %2748 = vmatpush1.bf16.msra.mxu0 0
        %2749 = vmatprep.subr.bf16.mxu0 0
        %2750 = vmatpush1.bf16.msra.mxu0 0
        %2751 = vmatprep.subr.bf16.mxu0 0
        %2752 = vmatpush1.bf16.msra.mxu0 0
        %2753 = vmatprep.subr.bf16.mxu0 0
        %2754 = vmatpush1.bf16.msra.mxu0 0
        %2755 = vmatprep.subr.bf16.mxu0 0
        %2756 = vmatpush1.bf16.msra.mxu0 0
        %2757 = vmatprep.subr.bf16.mxu0 0
        %2758 = vmatpush1.bf16.msra.mxu0 0
        %2759 = vmatprep.subr.bf16.mxu0 0
        %2760 = vmatpush1.bf16.msra.mxu0 0
        %2761 = vmatprep.subr.bf16.mxu0 0
        %2762 = vmatpush1.bf16.msra.mxu0 0
        %2763 = vmatprep.subr.bf16.mxu0 0
        %2764 = vmatpush1.bf16.msra.mxu0 0
        %2765 = vmatprep.subr.bf16.mxu0 0
        %2766 = vmatpush1.bf16.msra.mxu0 0
        %2767 = vmatprep.mubr.bf16.mxu0 0
        %2768 = vmatmul.mubr.bf16.gmra.mrb[0].mxu0 %v2724
        %v2769 = vpop.f32.mrb[0].mxu0
        %v2770 = vadd.f32 %v2676, %v2769
        %v2771 = vpop.f32.mrb[0].mxu0
        %v2772 = vadd.f32 %v2680, %v2771
        %v2773 = vpop.f32.mrb[0].mxu0
        %v2774 = vadd.f32 %v2676, %v2773
        %v2775 = vpop.f32.mrb[0].mxu0
        %v2776 = vadd.f32 %v2680, %v2775
        %2777 = vmatprep.mubr.bf16.mxu0 0
        %2778 = vmatmul.mubr.bf16.gmra.mrb[0].mxu0 %v2727
        %v2779 = vpop.f32.mrb[0].mxu0
        %v2780 = vadd.f32 %v2676, %v2779
        %v2781 = vpop.f32.mrb[0].mxu0
        %v2782 = vadd.f32 %v2680, %v2781
        %v2783 = vpop.f32.mrb[0].mxu0
        %v2784 = vadd.f32 %v2676, %v2783
        %v2785 = vpop.f32.mrb[0].mxu0
        %v2786 = vadd.f32 %v2680, %v2785
        %2787 = vmatprep.mubr.bf16.mxu0 0
        %2788 = vmatmul.mubr.bf16.gmra.mrb[0].mxu0 %v2730
        %v2789 = vpop.f32.mrb[0].mxu0
        %v2790 = vadd.f32 %v2676, %v2789
        %v2791 = vpop.f32.mrb[0].mxu0
        %v2792 = vadd.f32 %v2680, %v2791
        %v2793 = vpop.f32.mrb[0].mxu0
        %v2794 = vadd.f32 %v2676, %v2793
        %v2795 = vpop.f32.mrb[0].mxu0
        %v2796 = vadd.f32 %v2680, %v2795
        %2797 = vmatprep.mubr.bf16.mxu0 0
        %2798 = vmatmul.mubr.bf16.gmra.mrb[0].mxu0 %v2733
        %v2799 = vpop.f32.mrb[0].mxu0
        %v2800 = vadd.f32 %v2676, %v2799
        %v2801 = vpop.f32.mrb[0].mxu0
        %v2802 = vadd.f32 %v2680, %v2801
        %v2803 = vpop.f32.mrb[0].mxu0
        %v2804 = vadd.f32 %v2676, %v2803
        %v2805 = vpop.f32.mrb[0].mxu0
        %v2806 = vadd.f32 %v2680, %v2805
        %2807 = vdwg.mxu0
        %v2808 = vld [vmem:[%s9] sm:$0xff]
        %v2809 = vld [vmem:[%s9 + $0x8] sm:$0xff]
        %v2810 = vld [vmem:[%s9 + $0x10] sm:$0xff]
        %v2811 = vld [vmem:[%s9 + $0x18] sm:$0xff]
        %v2812 = vld [vmem:[%s9 + $0x20] sm:$0xff]
        %v2813 = vld [vmem:[%s9 + $0x28] sm:$0xff]
        %v2814 = vld [vmem:[%s9 + $0x30] sm:$0xff]
        %v2815 = vld [vmem:[%s9 + $0x38] sm:$0xff]
        %v2816 = vld [vmem:[%s10] sm:$0x3]
        %v2818 = vlaneseq
        %v2819 = vshrl.u32 %v2818, 7
        %v2820 = vsub.s32 0, %v2819
        %v2821 = vrot.slane %v2816, %v2820
        %v2822 = vlaneseq
        %v2823 = vshrl.u32 %v2822, 7
        %v2824 = vsub.s32 1, %v2823
        %v2825 = vrot.slane %v2816, %v2824
        %v2836 = vunpack.c.l.b16 %v2808
        %v2837 = vunpack.c.h.b16 %v2808
        %v2838 = vunpack.c.l.b16 %v2809
        %v2839 = vunpack.c.h.b16 %v2809
        %v2840 = vunpack.c.l.b16 %v2810
        %v2841 = vunpack.c.h.b16 %v2810
        %v2842 = vunpack.c.l.b16 %v2811
        %v2843 = vunpack.c.h.b16 %v2811
        %v2844 = vunpack.c.l.b16 %v2812
        %v2845 = vunpack.c.h.b16 %v2812
        %v2846 = vunpack.c.l.b16 %v2813
        %v2847 = vunpack.c.h.b16 %v2813
        %v2848 = vunpack.c.l.b16 %v2814
        %v2849 = vunpack.c.h.b16 %v2814
        %v2850 = vunpack.c.l.b16 %v2815
        %v2851 = vunpack.c.h.b16 %v2815
        %v2852 = vpack.c.b16 %v2838, %v2836
        %v2853 = vpack.c.b16 %v2839, %v2837
        %v2854 = vpack.c.b16 %v2842, %v2840
        %v2855 = vpack.c.b16 %v2843, %v2841
        %v2856 = vpack.c.b16 %v2846, %v2844
        %v2857 = vpack.c.b16 %v2847, %v2845
        %v2858 = vpack.c.b16 %v2850, %v2848
        %v2859 = vpack.c.b16 %v2851, %v2849
        %2868 = vmatprep.subr.bf16.mxu0 %v2853
        %2869 = vmatpush1.bf16.msra.mxu0 %v2852
        %2870 = vmatprep.subr.bf16.mxu0 %v2855
        %2871 = vmatpush1.bf16.msra.mxu0 %v2854
        %2872 = vmatprep.subr.bf16.mxu0 %v2857
        %2873 = vmatpush1.bf16.msra.mxu0 %v2856
        %2874 = vmatprep.subr.bf16.mxu0 %v2859
        %2875 = vmatpush1.bf16.msra.mxu0 %v2858
        %2876 = vmatprep.subr.bf16.mxu0 0
        %2877 = vmatpush1.bf16.msra.mxu0 0
        %2878 = vmatprep.subr.bf16.mxu0 0
        %2879 = vmatpush1.bf16.msra.mxu0 0
        %2880 = vmatprep.subr.bf16.mxu0 0
        %2881 = vmatpush1.bf16.msra.mxu0 0
        %2882 = vmatprep.subr.bf16.mxu0 0
        %2883 = vmatpush1.bf16.msra.mxu0 0
        %2884 = vmatprep.subr.bf16.mxu0 0
        %2885 = vmatpush1.bf16.msra.mxu0 0
        %2886 = vmatprep.subr.bf16.mxu0 0
        %2887 = vmatpush1.bf16.msra.mxu0 0
        %2888 = vmatprep.subr.bf16.mxu0 0
        %2889 = vmatpush1.bf16.msra.mxu0 0
        %2890 = vmatprep.subr.bf16.mxu0 0
        %2891 = vmatpush1.bf16.msra.mxu0 0
        %2892 = vmatprep.subr.bf16.mxu0 0
        %2893 = vmatpush1.bf16.msra.mxu0 0
        %2894 = vmatprep.subr.bf16.mxu0 0
        %2895 = vmatpush1.bf16.msra.mxu0 0
        %2896 = vmatprep.subr.bf16.mxu0 0
        %2897 = vmatpush1.bf16.msra.mxu0 0
        %2898 = vmatprep.subr.bf16.mxu0 0
        %2899 = vmatpush1.bf16.msra.mxu0 0
        %2900 = vmatprep.mubr.bf16.mxu0 0
        %2901 = vmatmul.mubr.bf16.gmra.mrb[0].mxu0 %v1622
        %v2902 = vpop.f32.mrb[0].mxu0
        %v2903 = vadd.f32 %v2821, %v2902
        %v2904 = vpop.f32.mrb[0].mxu0
        %v2905 = vadd.f32 %v2825, %v2904
        %v2906 = vpop.f32.mrb[0].mxu0
        %v2907 = vadd.f32 %v2821, %v2906
        %v2908 = vpop.f32.mrb[0].mxu0
        %v2909 = vadd.f32 %v2825, %v2908
        %2910 = vmatprep.mubr.bf16.mxu0 0
        %2911 = vmatmul.mubr.bf16.gmra.mrb[0].mxu0 %v1625
        %v2912 = vpop.f32.mrb[0].mxu0
        %v2913 = vadd.f32 %v2821, %v2912
        %v2914 = vpop.f32.mrb[0].mxu0
        %v2915 = vadd.f32 %v2825, %v2914
        %v2916 = vpop.f32.mrb[0].mxu0
        %v2917 = vadd.f32 %v2821, %v2916
        %v2918 = vpop.f32.mrb[0].mxu0
        %v2919 = vadd.f32 %v2825, %v2918
        %2920 = vmatprep.mubr.bf16.mxu0 0
        %2921 = vmatmul.mubr.bf16.gmra.mrb[0].mxu0 %v1628
        %v2922 = vpop.f32.mrb[0].mxu0
        %v2923 = vadd.f32 %v2821, %v2922
        %v2924 = vpop.f32.mrb[0].mxu0
        %v2925 = vadd.f32 %v2825, %v2924
        %v2926 = vpop.f32.mrb[0].mxu0
        %v2927 = vadd.f32 %v2821, %v2926
        %v2928 = vpop.f32.mrb[0].mxu0
        %v2929 = vadd.f32 %v2825, %v2928
        %2930 = vmatprep.mubr.bf16.mxu0 0
        %2931 = vmatmul.mubr.bf16.gmra.mrb[0].mxu0 %v1631
        %v2932 = vpop.f32.mrb[0].mxu0
        %v2933 = vadd.f32 %v2821, %v2932
        %v2934 = vpop.f32.mrb[0].mxu0
        %v2935 = vadd.f32 %v2825, %v2934
        %v2936 = vpop.f32.mrb[0].mxu0
        %v2937 = vadd.f32 %v2821, %v2936
        %v2938 = vpop.f32.mrb[0].mxu0
        %v2939 = vadd.f32 %v2825, %v2938
        %2940 = vdwg.mxu0
        %v2941 = vadd.f32 %v2770, %v2903
        %v2942 = vadd.f32 %v2772, %v2905
        %v2943 = vadd.f32 %v2774, %v2907
        %v2944 = vadd.f32 %v2776, %v2909
        %v2945 = vadd.f32 %v2780, %v2913
        %v2946 = vadd.f32 %v2782, %v2915
        %v2947 = vadd.f32 %v2784, %v2917
        %v2948 = vadd.f32 %v2786, %v2919
        %v2949 = vadd.f32 %v2790, %v2923
        %v2950 = vadd.f32 %v2792, %v2925
        %v2951 = vadd.f32 %v2794, %v2927
        %v2952 = vadd.f32 %v2796, %v2929
        %v2953 = vadd.f32 %v2800, %v2933
        %v2954 = vadd.f32 %v2802, %v2935
        %v2955 = vadd.f32 %v2804, %v2937
        %v2956 = vadd.f32 %v2806, %v2939
        %v2957 = vmax.f32 %v2941, 0.0
        %v2958 = vmax.f32 %v2942, 0.0
        %v2959 = vmax.f32 %v2943, 0.0
        %v2960 = vmax.f32 %v2944, 0.0
        %v2961 = vmax.f32 %v2945, 0.0
        %v2962 = vmax.f32 %v2946, 0.0
        %v2963 = vmax.f32 %v2947, 0.0
        %v2964 = vmax.f32 %v2948, 0.0
        %v2965 = vmax.f32 %v2949, 0.0
        %v2966 = vmax.f32 %v2950, 0.0
        %v2967 = vmax.f32 %v2951, 0.0
        %v2968 = vmax.f32 %v2952, 0.0
        %v2969 = vmax.f32 %v2953, 0.0
        %v2970 = vmax.f32 %v2954, 0.0
        %v2971 = vmax.f32 %v2955, 0.0
        %v2972 = vmax.f32 %v2956, 0.0
        %v2973 = vpack.c.bf16 %v2959, %v2957
        %v2974 = vpack.c.bf16 %v2960, %v2958
        %v2975 = vpack.c.bf16 %v2963, %v2961
        %v2976 = vpack.c.bf16 %v2964, %v2962
        %v2977 = vpack.c.bf16 %v2967, %v2965
        %v2978 = vpack.c.bf16 %v2968, %v2966
        %v2979 = vpack.c.bf16 %v2971, %v2969
        %v2980 = vpack.c.bf16 %v2972, %v2970
        %v2981 = vld [vmem:[%s11] sm:$0xf]
        %v2982 = vld [vmem:[%s11 + $0x4] sm:$0xf]
        %v2983 = vld [vmem:[%s11 + $0x8] sm:$0xf]
        %v2984 = vld [vmem:[%s11 + $0xc] sm:$0xf]
        %v2985 = vld [vmem:[%s11 + $0x10] sm:$0xf]
        %v2986 = vld [vmem:[%s11 + $0x14] sm:$0xf]
        %v2987 = vld [vmem:[%s11 + $0x18] sm:$0xf]
        %v2988 = vld [vmem:[%s11 + $0x1c] sm:$0xf]
        %v2989 = vld [vmem:[%s11 + $0x20] sm:$0xf]
        %v2990 = vld [vmem:[%s11 + $0x24] sm:$0xf]
        %v2991 = vld [vmem:[%s11 + $0x28] sm:$0xf]
        %v2992 = vld [vmem:[%s11 + $0x2c] sm:$0xf]
        %v2993 = vld [vmem:[%s11 + $0x30] sm:$0xf]
        %v2994 = vld [vmem:[%s11 + $0x34] sm:$0xf]
        %v2995 = vld [vmem:[%s11 + $0x38] sm:$0xf]
        %v2996 = vld [vmem:[%s11 + $0x3c] sm:$0xf]
        %v2997 = vld [vmem:[%s11 + $0x40] sm:$0xf]
        %v2998 = vld [vmem:[%s11 + $0x44] sm:$0xf]
        %v2999 = vld [vmem:[%s11 + $0x48] sm:$0xf]
        %v3000 = vld [vmem:[%s11 + $0x4c] sm:$0xf]
        %v3001 = vld [vmem:[%s11 + $0x50] sm:$0xf]
        %v3002 = vld [vmem:[%s11 + $0x54] sm:$0xf]
        %v3003 = vld [vmem:[%s11 + $0x58] sm:$0xf]
        %v3004 = vld [vmem:[%s11 + $0x5c] sm:$0xf]
        %v3005 = vld [vmem:[%s11 + $0x60] sm:$0xf]
        %v3006 = vld [vmem:[%s11 + $0x64] sm:$0xf]
        %v3007 = vld [vmem:[%s11 + $0x68] sm:$0xf]
        %v3008 = vld [vmem:[%s11 + $0x6c] sm:$0xf]
        %v3009 = vld [vmem:[%s11 + $0x70] sm:$0xf]
        %v3010 = vld [vmem:[%s11 + $0x74] sm:$0xf]
        %v3011 = vld [vmem:[%s11 + $0x78] sm:$0xf]
        %v3012 = vld [vmem:[%s11 + $0x7c] sm:$0xf]
        %v3013 = vld [vmem:[%s12] sm:$0x1]
        %v3015 = vlaneseq
        %v3016 = vshrl.u32 %v3015, 7
        %v3017 = vsub.s32 0, %v3016
        %v3018 = vrot.slane %v3013, %v3017
        %v3052 = vunpack.c.l.b16 %v2981
        %v3053 = vunpack.c.l.b16 %v2982
        %v3054 = vunpack.c.l.b16 %v2983
        %v3055 = vunpack.c.l.b16 %v2984
        %v3056 = vunpack.c.l.b16 %v2985
        %v3057 = vunpack.c.l.b16 %v2986
        %v3058 = vunpack.c.l.b16 %v2987
        %v3059 = vunpack.c.l.b16 %v2988
        %v3060 = vunpack.c.l.b16 %v2989
        %v3061 = vunpack.c.l.b16 %v2990
        %v3062 = vunpack.c.l.b16 %v2991
        %v3063 = vunpack.c.l.b16 %v2992
        %v3064 = vunpack.c.l.b16 %v2993
        %v3065 = vunpack.c.l.b16 %v2994
        %v3066 = vunpack.c.l.b16 %v2995
        %v3067 = vunpack.c.l.b16 %v2996
        %v3068 = vunpack.c.l.b16 %v2997
        %v3069 = vunpack.c.l.b16 %v2998
        %v3070 = vunpack.c.l.b16 %v2999
        %v3071 = vunpack.c.l.b16 %v3000
        %v3072 = vunpack.c.l.b16 %v3001
        %v3073 = vunpack.c.l.b16 %v3002
        %v3074 = vunpack.c.l.b16 %v3003
        %v3075 = vunpack.c.l.b16 %v3004
        %v3076 = vunpack.c.l.b16 %v3005
        %v3077 = vunpack.c.l.b16 %v3006
        %v3078 = vunpack.c.l.b16 %v3007
        %v3079 = vunpack.c.l.b16 %v3008
        %v3080 = vunpack.c.l.b16 %v3009
        %v3081 = vunpack.c.l.b16 %v3010
        %v3082 = vunpack.c.l.b16 %v3011
        %v3083 = vunpack.c.l.b16 %v3012
        %v3084 = vpack.c.b16 %v3053, %v3052
        %v3085 = vpack.c.b16 %v3055, %v3054
        %v3086 = vpack.c.b16 %v3057, %v3056
        %v3087 = vpack.c.b16 %v3059, %v3058
        %v3088 = vpack.c.b16 %v3061, %v3060
        %v3089 = vpack.c.b16 %v3063, %v3062
        %v3090 = vpack.c.b16 %v3065, %v3064
        %v3091 = vpack.c.b16 %v3067, %v3066
        %v3092 = vpack.c.b16 %v3069, %v3068
        %v3093 = vpack.c.b16 %v3071, %v3070
        %v3094 = vpack.c.b16 %v3073, %v3072
        %v3095 = vpack.c.b16 %v3075, %v3074
        %v3096 = vpack.c.b16 %v3077, %v3076
        %v3097 = vpack.c.b16 %v3079, %v3078
        %v3098 = vpack.c.b16 %v3081, %v3080
        %v3099 = vpack.c.b16 %v3083, %v3082
        %3116 = vmatprep.subr.bf16.mxu0 0
        %3117 = vmatpush1.bf16.msra.mxu0 %v3084
        %3118 = vmatprep.subr.bf16.mxu0 0
        %3119 = vmatpush1.bf16.msra.mxu0 %v3085
        %3120 = vmatprep.subr.bf16.mxu0 0
        %3121 = vmatpush1.bf16.msra.mxu0 %v3086
        %3122 = vmatprep.subr.bf16.mxu0 0
        %3123 = vmatpush1.bf16.msra.mxu0 %v3087
        %3124 = vmatprep.subr.bf16.mxu0 0
        %3125 = vmatpush1.bf16.msra.mxu0 %v3088
        %3126 = vmatprep.subr.bf16.mxu0 0
        %3127 = vmatpush1.bf16.msra.mxu0 %v3089
        %3128 = vmatprep.subr.bf16.mxu0 0
        %3129 = vmatpush1.bf16.msra.mxu0 %v3090
        %3130 = vmatprep.subr.bf16.mxu0 0
        %3131 = vmatpush1.bf16.msra.mxu0 %v3091
        %3132 = vmatprep.subr.bf16.mxu0 0
        %3133 = vmatpush1.bf16.msra.mxu0 %v3092
        %3134 = vmatprep.subr.bf16.mxu0 0
        %3135 = vmatpush1.bf16.msra.mxu0 %v3093
        %3136 = vmatprep.subr.bf16.mxu0 0
        %3137 = vmatpush1.bf16.msra.mxu0 %v3094
        %3138 = vmatprep.subr.bf16.mxu0 0
        %3139 = vmatpush1.bf16.msra.mxu0 %v3095
        %3140 = vmatprep.subr.bf16.mxu0 0
        %3141 = vmatpush1.bf16.msra.mxu0 %v3096
        %3142 = vmatprep.subr.bf16.mxu0 0
        %3143 = vmatpush1.bf16.msra.mxu0 %v3097
        %3144 = vmatprep.subr.bf16.mxu0 0
        %3145 = vmatpush1.bf16.msra.mxu0 %v3098
        %3146 = vmatprep.subr.bf16.mxu0 0
        %3147 = vmatpush1.bf16.msra.mxu0 %v3099
        %3148 = vmatprep.mubr.bf16.mxu0 %v2974
        %3149 = vmatmul.mubr.bf16.gmra.mrb[0].mxu0 %v2973
        %v3150 = vpop.f32.mrb[0].mxu0
        %v3151 = vadd.f32 %v3018, %v3150
        %v3152 = vpop.f32.mrb[0].mxu0
        %v3153 = vpop.f32.mrb[0].mxu0
        %v3154 = vadd.f32 %v3018, %v3153
        %v3155 = vpop.f32.mrb[0].mxu0
        %3156 = vmatprep.mubr.bf16.mxu0 %v2976
        %3157 = vmatmul.mubr.bf16.gmra.mrb[0].mxu0 %v2975
        %v3158 = vpop.f32.mrb[0].mxu0
        %v3159 = vadd.f32 %v3018, %v3158
        %v3160 = vpop.f32.mrb[0].mxu0
        %v3161 = vpop.f32.mrb[0].mxu0
        %v3162 = vadd.f32 %v3018, %v3161
        %v3163 = vpop.f32.mrb[0].mxu0
        %3164 = vmatprep.mubr.bf16.mxu0 %v2978
        %3165 = vmatmul.mubr.bf16.gmra.mrb[0].mxu0 %v2977
        %v3166 = vpop.f32.mrb[0].mxu0
        %v3167 = vadd.f32 %v3018, %v3166
        %v3168 = vpop.f32.mrb[0].mxu0
        %v3169 = vpop.f32.mrb[0].mxu0
        %v3170 = vadd.f32 %v3018, %v3169
        %v3171 = vpop.f32.mrb[0].mxu0
        %3172 = vmatprep.mubr.bf16.mxu0 %v2980
        %3173 = vmatmul.mubr.bf16.gmra.mrb[0].mxu0 %v2979
        %v3174 = vpop.f32.mrb[0].mxu0
        %v3175 = vadd.f32 %v3018, %v3174
        %v3176 = vpop.f32.mrb[0].mxu0
        %v3177 = vpop.f32.mrb[0].mxu0
        %v3178 = vadd.f32 %v3018, %v3177
        %v3179 = vpop.f32.mrb[0].mxu0
        %3180 = vdwg.mxu0
        %v3181 = vmax.f32 %v3151, 0.0
        %v3182 = vmax.f32 %v3154, 0.0
        %v3183 = vmax.f32 %v3159, 0.0
        %v3184 = vmax.f32 %v3162, 0.0
        %v3185 = vmax.f32 %v3167, 0.0
        %v3186 = vmax.f32 %v3170, 0.0
        %v3187 = vmax.f32 %v3175, 0.0
        %v3188 = vmax.f32 %v3178, 0.0
        %v3189 = vpack.c.bf16 %v3182, %v3181
        %v3190 = vpack.c.bf16 %v3184, %v3183
        %v3191 = vpack.c.bf16 %v3186, %v3185
        %v3192 = vpack.c.bf16 %v3188, %v3187
        %v3197 = vunpack.c.l.b16 %v3189
        %v3198 = vunpack.c.h.b16 %v3189
        %v3199 = vunpack.c.l.b16 %v3190
        %v3200 = vunpack.c.h.b16 %v3190
        %v3201 = vunpack.c.l.b16 %v3191
        %v3202 = vunpack.c.h.b16 %v3191
        %v3203 = vunpack.c.l.b16 %v3192
        %v3204 = vunpack.c.h.b16 %v3192
        %v3205 = vpack.c.b16 %v3197, %v3197
        %v3206 = vpack.c.b16 %v3198, %v3198
        %v3207 = vpack.c.b16 %v3199, %v3199
        %v3208 = vpack.c.b16 %v3200, %v3200
        %v3209 = vpack.c.b16 %v3201, %v3201
        %v3210 = vpack.c.b16 %v3202, %v3202
        %v3211 = vpack.c.b16 %v3203, %v3203
        %v3212 = vpack.c.b16 %v3204, %v3204
        %v3214 = vshrl.u32 %v3205, 16
        %v3216 = vrot.slane %v3214, 7
        %v3217 = vshll.u32 %v3205, 16
        %v3219 = vor.u32 %v3216, %v3217
        %v3221 = vshrl.u32 %v3206, 16
        %v3223 = vrot.slane %v3221, 7
        %v3224 = vshll.u32 %v3206, 16
        %v3226 = vor.u32 %v3223, %v3224
        %v3228 = vshrl.u32 %v3207, 16
        %v3230 = vrot.slane %v3228, 7
        %v3231 = vshll.u32 %v3207, 16
        %v3233 = vor.u32 %v3230, %v3231
        %v3235 = vshrl.u32 %v3208, 16
        %v3237 = vrot.slane %v3235, 7
        %v3238 = vshll.u32 %v3208, 16
        %v3240 = vor.u32 %v3237, %v3238
        %v3242 = vshrl.u32 %v3209, 16
        %v3244 = vrot.slane %v3242, 7
        %v3245 = vshll.u32 %v3209, 16
        %v3247 = vor.u32 %v3244, %v3245
        %v3249 = vshrl.u32 %v3210, 16
        %v3251 = vrot.slane %v3249, 7
        %v3252 = vshll.u32 %v3210, 16
        %v3254 = vor.u32 %v3251, %v3252
        %v3256 = vshrl.u32 %v3211, 16
        %v3258 = vrot.slane %v3256, 7
        %v3259 = vshll.u32 %v3211, 16
        %v3261 = vor.u32 %v3258, %v3259
        %v3263 = vshrl.u32 %v3212, 16
        %v3265 = vrot.slane %v3263, 7
        %v3266 = vshll.u32 %v3212, 16
        %v3268 = vor.u32 %v3265, %v3266
        %v3277 = vsel %vm1796, 0, %v3219
        %v3278 = vsel %vm1796, 0, %v3226
        %v3279 = vsel %vm1796, 0, %v3233
        %v3280 = vsel %vm1796, 0, %v3240
        %v3281 = vsel %vm1796, 0, %v3247
        %v3282 = vsel %vm1796, 0, %v3254
        %v3283 = vsel %vm1796, 0, %v3261
        %v3284 = vsel %vm1796, 0, %v3268
        %v3285 = vsel %vm1807, %v3277, 0
        %v3286 = vsel %vm1807, %v3278, 0
        %v3287 = vsel %vm1807, %v3279, 0
        %v3288 = vsel %vm1807, %v3280, 0
        %v3289 = vsel %vm1807, %v3281, 0
        %v3290 = vsel %vm1807, %v3282, 0
        %v3291 = vsel %vm1807, %v3283, 0
        %v3292 = vsel %vm1807, %v3284, 0
        %v3300 = vunpack.c.l.b16 %v3285
        %v3301 = vunpack.c.h.b16 %v3285
        %v3302 = vunpack.c.l.b16 %v3286
        %v3303 = vunpack.c.h.b16 %v3286
        %v3304 = vunpack.c.l.b16 %v3287
        %v3305 = vunpack.c.h.b16 %v3287
        %v3306 = vunpack.c.l.b16 %v3288
        %v3307 = vunpack.c.h.b16 %v3288
        %v3308 = vunpack.c.l.b16 %v3289
        %v3309 = vunpack.c.h.b16 %v3289
        %v3310 = vunpack.c.l.b16 %v3290
        %v3311 = vunpack.c.h.b16 %v3290
        %v3312 = vunpack.c.l.b16 %v3291
        %v3313 = vunpack.c.h.b16 %v3291
        %v3314 = vpack.c.b16 %v3300, %v3300
        %v3315 = vpack.c.b16 %v3301, %v3301
        %v3316 = vpack.c.b16 %v3302, %v3302
        %v3317 = vpack.c.b16 %v3303, %v3303
        %v3318 = vpack.c.b16 %v3304, %v3304
        %v3319 = vpack.c.b16 %v3305, %v3305
        %v3320 = vpack.c.b16 %v3306, %v3306
        %v3321 = vpack.c.b16 %v3307, %v3307
        %v3322 = vpack.c.b16 %v3308, %v3308
        %v3323 = vpack.c.b16 %v3309, %v3309
        %v3324 = vpack.c.b16 %v3310, %v3310
        %v3325 = vpack.c.b16 %v3311, %v3311
        %v3326 = vpack.c.b16 %v3312, %v3312
        %v3327 = vpack.c.b16 %v3313, %v3313
        %v3329 = vshrl.u32 %v3314, 16
        %v3331 = vrot.slane %v3329, 4
        %v3332 = vshll.u32 %v3314, 16
        %v3334 = vrot.slane %v3332, 5
        %v3335 = vor.u32 %v3331, %v3334
        %v3336 = vrot.slane %v3335, 4
        %v3338 = vshll.u32 %v3315, 16
        %v3340 = vrot.slane %v3338, 5
        %v3341 = vsel %vm1858, %v3336, %v3340
        %v3343 = vshrl.u32 %v3316, 16
        %v3345 = vrot.slane %v3343, 4
        %v3346 = vshll.u32 %v3316, 16
        %v3348 = vrot.slane %v3346, 5
        %v3349 = vor.u32 %v3345, %v3348
        %v3350 = vrot.slane %v3349, 4
        %v3352 = vshll.u32 %v3317, 16
        %v3354 = vrot.slane %v3352, 5
        %v3355 = vsel %vm1858, %v3350, %v3354
        %v3357 = vshrl.u32 %v3318, 16
        %v3359 = vrot.slane %v3357, 4
        %v3360 = vshll.u32 %v3318, 16
        %v3362 = vrot.slane %v3360, 5
        %v3363 = vor.u32 %v3359, %v3362
        %v3364 = vrot.slane %v3363, 4
        %v3366 = vshll.u32 %v3319, 16
        %v3368 = vrot.slane %v3366, 5
        %v3369 = vsel %vm1858, %v3364, %v3368
        %v3371 = vshrl.u32 %v3320, 16
        %v3373 = vrot.slane %v3371, 4
        %v3374 = vshll.u32 %v3320, 16
        %v3376 = vrot.slane %v3374, 5
        %v3377 = vor.u32 %v3373, %v3376
        %v3378 = vrot.slane %v3377, 4
        %v3380 = vshll.u32 %v3321, 16
        %v3382 = vrot.slane %v3380, 5
        %v3383 = vsel %vm1858, %v3378, %v3382
        %v3385 = vshrl.u32 %v3322, 16
        %v3387 = vrot.slane %v3385, 4
        %v3388 = vshll.u32 %v3322, 16
        %v3390 = vrot.slane %v3388, 5
        %v3391 = vor.u32 %v3387, %v3390
        %v3392 = vrot.slane %v3391, 4
        %v3394 = vshll.u32 %v3323, 16
        %v3396 = vrot.slane %v3394, 5
        %v3397 = vsel %vm1858, %v3392, %v3396
        %v3399 = vshrl.u32 %v3324, 16
        %v3401 = vrot.slane %v3399, 4
        %v3402 = vshll.u32 %v3324, 16
        %v3404 = vrot.slane %v3402, 5
        %v3405 = vor.u32 %v3401, %v3404
        %v3406 = vrot.slane %v3405, 4
        %v3408 = vshll.u32 %v3325, 16
        %v3410 = vrot.slane %v3408, 5
        %v3411 = vsel %vm1858, %v3406, %v3410
        %v3413 = vshrl.u32 %v3326, 16
        %v3415 = vrot.slane %v3413, 4
        %v3416 = vshll.u32 %v3326, 16
        %v3418 = vrot.slane %v3416, 5
        %v3419 = vor.u32 %v3415, %v3418
        %v3420 = vrot.slane %v3419, 4
        %v3422 = vshll.u32 %v3327, 16
        %v3424 = vrot.slane %v3422, 5
        %v3425 = vsel %vm1858, %v3420, %v3424
        %v3426 = vrot.slane %v3314, 5
        %v3427 = vrot.slane %v3426, 4
        %v3428 = vrot.slane %v3315, 5
        %v3429 = vsel %vm1973, %v3427, %v3428
        %v3430 = vrot.slane %v3316, 5
        %v3431 = vrot.slane %v3430, 4
        %v3432 = vrot.slane %v3317, 5
        %v3433 = vsel %vm1973, %v3431, %v3432
        %v3434 = vrot.slane %v3318, 5
        %v3435 = vrot.slane %v3434, 4
        %v3436 = vrot.slane %v3319, 5
        %v3437 = vsel %vm1973, %v3435, %v3436
        %v3438 = vrot.slane %v3320, 5
        %v3439 = vrot.slane %v3438, 4
        %v3440 = vrot.slane %v3321, 5
        %v3441 = vsel %vm1973, %v3439, %v3440
        %v3442 = vrot.slane %v3322, 5
        %v3443 = vrot.slane %v3442, 4
        %v3444 = vrot.slane %v3323, 5
        %v3445 = vsel %vm1973, %v3443, %v3444
        %v3446 = vrot.slane %v3324, 5
        %v3447 = vrot.slane %v3446, 4
        %v3448 = vrot.slane %v3325, 5
        %v3449 = vsel %vm1973, %v3447, %v3448
        %v3450 = vrot.slane %v3326, 5
        %v3451 = vrot.slane %v3450, 4
        %v3452 = vrot.slane %v3327, 5
        %v3453 = vsel %vm1973, %v3451, %v3452
        %v3455 = vunpack.c.l.b16 %v3292
        %v3456 = vunpack.c.h.b16 %v3292
        %v3457 = vpack.c.b16 %v3455, %v3455
        %v3458 = vpack.c.b16 %v3456, %v3456
        %v3460 = vshrl.u32 %v3457, 16
        %v3462 = vrot.slane %v3460, 4
        %v3463 = vshll.u32 %v3457, 16
        %v3465 = vrot.slane %v3463, 5
        %v3466 = vor.u32 %v3462, %v3465
        %v3467 = vrot.slane %v3466, 4
        %v3469 = vshll.u32 %v3458, 16
        %v3471 = vrot.slane %v3469, 5
        %v3472 = vsel %vm1858, %v3467, %v3471
        %v3473 = vrot.slane %v3457, 5
        %v3474 = vrot.slane %v3473, 4
        %v3475 = vrot.slane %v3458, 5
        %v3476 = vsel %vm1973, %v3474, %v3475
        %v3477 = vpack.c.b16 %v3300, %v1824
        %v3478 = vpack.c.b16 %v3304, %v3302
        %v3479 = vpack.c.b16 %v3308, %v3306
        %v3480 = vpack.c.b16 %v3312, %v3310
        %v3481 = vunpack.c.l.b16 %v3341
        %v3482 = vunpack.c.l.b16 %v3355
        %v3483 = vunpack.c.l.b16 %v3369
        %v3484 = vunpack.c.l.b16 %v3383
        %v3485 = vunpack.c.l.b16 %v3397
        %v3486 = vunpack.c.l.b16 %v3411
        %v3487 = vunpack.c.l.b16 %v3425
        %v3488 = vpack.c.b16 %v3481, %v2033
        %v3489 = vpack.c.b16 %v3483, %v3482
        %v3490 = vpack.c.b16 %v3485, %v3484
        %v3491 = vpack.c.b16 %v3487, %v3486
        %3492 = vrot.lane.b32.xlu0 %v3488, 64
        %v3493 = vpop.permute.xlu0 %3492
        %3494 = vrot.lane.b32.xlu0 %v3489, 64
        %v3495 = vpop.permute.xlu0 %3494
        %3496 = vrot.lane.b32.xlu0 %v3490, 64
        %v3497 = vpop.permute.xlu0 %3496
        %3498 = vrot.lane.b32.xlu0 %v3491, 64
        %v3499 = vpop.permute.xlu0 %3498
        %v3500 = vunpack.c.l.b16 %v3429
        %v3501 = vunpack.c.l.b16 %v3433
        %v3502 = vunpack.c.l.b16 %v3437
        %v3503 = vunpack.c.l.b16 %v3441
        %v3504 = vunpack.c.l.b16 %v3445
        %v3505 = vunpack.c.l.b16 %v3449
        %v3506 = vunpack.c.l.b16 %v3453
        %v3507 = vpack.c.b16 %v3500, %v2053
        %v3508 = vpack.c.b16 %v3502, %v3501
        %v3509 = vpack.c.b16 %v3504, %v3503
        %v3510 = vpack.c.b16 %v3506, %v3505
        %v3511 = vpack.c.b16 %v3302, %v3300
        %v3512 = vpack.c.b16 %v3306, %v3304
        %v3513 = vpack.c.b16 %v3310, %v3308
        %v3514 = vpack.c.b16 %v3455, %v3312
        %3515 = vrot.lane.b32.xlu0 %v3511, 64
        %v3516 = vpop.permute.xlu0 %3515
        %3517 = vrot.lane.b32.xlu0 %v3512, 64
        %v3518 = vpop.permute.xlu0 %3517
        %3519 = vrot.lane.b32.xlu0 %v3513, 64
        %v3520 = vpop.permute.xlu0 %3519
        %3521 = vrot.lane.b32.xlu0 %v3514, 64
        %v3522 = vpop.permute.xlu0 %3521
        %v3523 = vunpack.c.l.b16 %v3472
        %v3524 = vpack.c.b16 %v3482, %v3481
        %v3525 = vpack.c.b16 %v3484, %v3483
        %v3526 = vpack.c.b16 %v3486, %v3485
        %v3527 = vpack.c.b16 %v3523, %v3487
        %v3528 = vunpack.c.l.b16 %v3476
        %v3529 = vpack.c.b16 %v3501, %v3500
        %v3530 = vpack.c.b16 %v3503, %v3502
        %v3531 = vpack.c.b16 %v3505, %v3504
        %v3532 = vpack.c.b16 %v3528, %v3506
        %3533 = vrot.lane.b32.xlu0 %v3529, 64
        %v3534 = vpop.permute.xlu0 %3533
        %3535 = vrot.lane.b32.xlu0 %v3530, 64
        %v3536 = vpop.permute.xlu0 %3535
        %3537 = vrot.lane.b32.xlu0 %v3531, 64
        %v3538 = vpop.permute.xlu0 %3537
        %3539 = vrot.lane.b32.xlu0 %v3532, 64
        %v3540 = vpop.permute.xlu0 %3539
        %v3541 = vpack.c.b16 %v1824, %v3455
        %v3542 = vpack.c.b16 %v2033, %v3523
        %3543 = vrot.lane.b32.xlu0 %v3542, 64
        %v3544 = vpop.permute.xlu0 %3543
        %v3545 = vpack.c.b16 %v2053, %v3528
        %v3548 = vsel %vm1620, %v3477, %v3493
        %v3552 = vsel %vm1620, %v3478, %v3495
        %v3556 = vsel %vm1620, %v3479, %v3497
        %v3560 = vsel %vm1620, %v3480, %v3499
        %v3564 = vsel %vm1620, %v3507, %v3516
        %v3568 = vsel %vm1620, %v3508, %v3518
        %v3572 = vsel %vm1620, %v3509, %v3520
        %v3576 = vsel %vm1620, %v3510, %v3522
        %v3580 = vsel %vm1620, %v3524, %v3534
        %v3584 = vsel %vm1620, %v3525, %v3536
        %v3588 = vsel %vm1620, %v3526, %v3538
        %v3592 = vsel %vm1620, %v3527, %v3540
        %v3596 = vsel %vm1620, %v3541, %v3544
        %v3598 = vld [vmem:[%s13] sm:$0xf]
        %v3599 = vld [vmem:[%s13 + $0x4] sm:$0xf]
        %v3600 = vld [vmem:[%s13 + $0x8] sm:$0xf]
        %v3601 = vld [vmem:[%s13 + $0xc] sm:$0xf]
        %v3602 = vld [vmem:[%s13 + $0x10] sm:$0xf]
        %v3603 = vld [vmem:[%s13 + $0x14] sm:$0xf]
        %v3604 = vld [vmem:[%s13 + $0x18] sm:$0xf]
        %v3605 = vld [vmem:[%s13 + $0x1c] sm:$0xf]
        %v3606 = vld [vmem:[%s13 + $0x20] sm:$0xf]
        %v3607 = vld [vmem:[%s13 + $0x24] sm:$0xf]
        %v3608 = vld [vmem:[%s13 + $0x28] sm:$0xf]
        %v3609 = vld [vmem:[%s13 + $0x2c] sm:$0xf]
        %v3610 = vld [vmem:[%s13 + $0x30] sm:$0xf]
        %v3611 = vld [vmem:[%s13 + $0x34] sm:$0xf]
        %v3612 = vld [vmem:[%s13 + $0x38] sm:$0xf]
        %v3613 = vld [vmem:[%s13 + $0x3c] sm:$0xf]
        %v3614 = vld [vmem:[%s13 + $0x40] sm:$0xf]
        %v3615 = vld [vmem:[%s13 + $0x44] sm:$0xf]
        %v3616 = vld [vmem:[%s13 + $0x48] sm:$0xf]
        %v3617 = vld [vmem:[%s13 + $0x4c] sm:$0xf]
        %v3618 = vld [vmem:[%s13 + $0x50] sm:$0xf]
        %v3619 = vld [vmem:[%s13 + $0x54] sm:$0xf]
        %v3620 = vld [vmem:[%s13 + $0x58] sm:$0xf]
        %v3621 = vld [vmem:[%s13 + $0x5c] sm:$0xf]
        %v3622 = vld [vmem:[%s13 + $0x60] sm:$0xf]
        %v3623 = vld [vmem:[%s13 + $0x64] sm:$0xf]
        %v3624 = vld [vmem:[%s13 + $0x68] sm:$0xf]
        %v3625 = vld [vmem:[%s13 + $0x6c] sm:$0xf]
        %v3626 = vld [vmem:[%s13 + $0x70] sm:$0xf]
        %v3627 = vld [vmem:[%s13 + $0x74] sm:$0xf]
        %v3628 = vld [vmem:[%s13 + $0x78] sm:$0xf]
        %v3629 = vld [vmem:[%s13 + $0x7c] sm:$0xf]
        %v3630 = vld [vmem:[%s13 + $0x80] sm:$0xf]
        %v3631 = vld [vmem:[%s13 + $0x84] sm:$0xf]
        %v3632 = vld [vmem:[%s13 + $0x88] sm:$0xf]
        %v3633 = vld [vmem:[%s13 + $0x8c] sm:$0xf]
        %v3634 = vld [vmem:[%s13 + $0x90] sm:$0xf]
        %v3635 = vld [vmem:[%s13 + $0x94] sm:$0xf]
        %v3636 = vld [vmem:[%s13 + $0x98] sm:$0xf]
        %v3637 = vld [vmem:[%s13 + $0x9c] sm:$0xf]
        %v3638 = vld [vmem:[%s13 + $0xa0] sm:$0xf]
        %v3639 = vld [vmem:[%s13 + $0xa4] sm:$0xf]
        %v3640 = vld [vmem:[%s13 + $0xa8] sm:$0xf]
        %v3641 = vld [vmem:[%s13 + $0xac] sm:$0xf]
        %v3642 = vld [vmem:[%s13 + $0xb0] sm:$0xf]
        %v3643 = vld [vmem:[%s13 + $0xb4] sm:$0xf]
        %v3644 = vld [vmem:[%s13 + $0xb8] sm:$0xf]
        %v3645 = vld [vmem:[%s13 + $0xbc] sm:$0xf]
        %v3646 = vld [vmem:[%s13 + $0xc0] sm:$0xf]
        %v3647 = vld [vmem:[%s13 + $0xc4] sm:$0xf]
        %v3648 = vld [vmem:[%s13 + $0xc8] sm:$0xf]
        %v3649 = vld [vmem:[%s13 + $0xcc] sm:$0xf]
        %v3650 = vld [vmem:[%s13 + $0xd0] sm:$0xf]
        %v3651 = vld [vmem:[%s13 + $0xd4] sm:$0xf]
        %v3652 = vld [vmem:[%s13 + $0xd8] sm:$0xf]
        %v3653 = vld [vmem:[%s13 + $0xdc] sm:$0xf]
        %v3654 = vld [vmem:[%s13 + $0xe0] sm:$0xf]
        %v3655 = vld [vmem:[%s13 + $0xe4] sm:$0xf]
        %v3656 = vld [vmem:[%s13 + $0xe8] sm:$0xf]
        %v3657 = vld [vmem:[%s13 + $0xec] sm:$0xf]
        %v3658 = vld [vmem:[%s13 + $0xf0] sm:$0xf]
        %v3659 = vld [vmem:[%s13 + $0xf4] sm:$0xf]
        %v3660 = vld [vmem:[%s13 + $0xf8] sm:$0xf]
        %v3661 = vld [vmem:[%s13 + $0xfc] sm:$0xf]
        %v3662 = vld [vmem:[%s13 + $0x100] sm:$0xf]
        %v3663 = vld [vmem:[%s13 + $0x104] sm:$0xf]
        %v3664 = vld [vmem:[%s13 + $0x108] sm:$0xf]
        %v3665 = vld [vmem:[%s13 + $0x10c] sm:$0xf]
        %v3666 = vld [vmem:[%s13 + $0x110] sm:$0xf]
        %v3667 = vld [vmem:[%s13 + $0x114] sm:$0xf]
        %v3668 = vld [vmem:[%s13 + $0x118] sm:$0xf]
        %v3669 = vld [vmem:[%s13 + $0x11c] sm:$0xf]
        %v3670 = vld [vmem:[%s14] sm:$0x1]
        %v3672 = vlaneseq
        %v3673 = vshrl.u32 %v3672, 7
        %v3674 = vsub.s32 0, %v3673
        %v3675 = vrot.slane %v3670, %v3674
        %v3749 = vunpack.c.l.b16 %v3598
        %v3750 = vunpack.c.l.b16 %v3599
        %v3751 = vunpack.c.l.b16 %v3600
        %v3752 = vunpack.c.l.b16 %v3601
        %v3753 = vunpack.c.l.b16 %v3602
        %v3754 = vunpack.c.l.b16 %v3603
        %v3755 = vunpack.c.l.b16 %v3604
        %v3756 = vunpack.c.l.b16 %v3605
        %v3757 = vunpack.c.l.b16 %v3606
        %v3758 = vunpack.c.l.b16 %v3607
        %v3759 = vunpack.c.l.b16 %v3608
        %v3760 = vunpack.c.l.b16 %v3609
        %v3761 = vunpack.c.l.b16 %v3610
        %v3762 = vunpack.c.l.b16 %v3611
        %v3763 = vunpack.c.l.b16 %v3612
        %v3764 = vunpack.c.l.b16 %v3613
        %v3765 = vunpack.c.l.b16 %v3614
        %v3766 = vunpack.c.l.b16 %v3615
        %v3767 = vunpack.c.l.b16 %v3616
        %v3768 = vunpack.c.l.b16 %v3617
        %v3769 = vunpack.c.l.b16 %v3618
        %v3770 = vunpack.c.l.b16 %v3619
        %v3771 = vunpack.c.l.b16 %v3620
        %v3772 = vunpack.c.l.b16 %v3621
        %v3773 = vunpack.c.l.b16 %v3622
        %v3774 = vunpack.c.l.b16 %v3623
        %v3775 = vunpack.c.l.b16 %v3624
        %v3776 = vunpack.c.l.b16 %v3625
        %v3777 = vunpack.c.l.b16 %v3626
        %v3778 = vunpack.c.l.b16 %v3627
        %v3779 = vunpack.c.l.b16 %v3628
        %v3780 = vunpack.c.l.b16 %v3629
        %v3781 = vunpack.c.l.b16 %v3630
        %v3782 = vunpack.c.l.b16 %v3631
        %v3783 = vunpack.c.l.b16 %v3632
        %v3784 = vunpack.c.l.b16 %v3633
        %v3785 = vunpack.c.l.b16 %v3634
        %v3786 = vunpack.c.l.b16 %v3635
        %v3787 = vunpack.c.l.b16 %v3636
        %v3788 = vunpack.c.l.b16 %v3637
        %v3789 = vunpack.c.l.b16 %v3638
        %v3790 = vunpack.c.l.b16 %v3639
        %v3791 = vunpack.c.l.b16 %v3640
        %v3792 = vunpack.c.l.b16 %v3641
        %v3793 = vunpack.c.l.b16 %v3642
        %v3794 = vunpack.c.l.b16 %v3643
        %v3795 = vunpack.c.l.b16 %v3644
        %v3796 = vunpack.c.l.b16 %v3645
        %v3797 = vunpack.c.l.b16 %v3646
        %v3798 = vunpack.c.l.b16 %v3647
        %v3799 = vunpack.c.l.b16 %v3648
        %v3800 = vunpack.c.l.b16 %v3649
        %v3801 = vunpack.c.l.b16 %v3650
        %v3802 = vunpack.c.l.b16 %v3651
        %v3803 = vunpack.c.l.b16 %v3652
        %v3804 = vunpack.c.l.b16 %v3653
        %v3805 = vunpack.c.l.b16 %v3654
        %v3806 = vunpack.c.l.b16 %v3655
        %v3807 = vunpack.c.l.b16 %v3656
        %v3808 = vunpack.c.l.b16 %v3657
        %v3809 = vunpack.c.l.b16 %v3658
        %v3810 = vunpack.c.l.b16 %v3659
        %v3811 = vunpack.c.l.b16 %v3660
        %v3812 = vunpack.c.l.b16 %v3661
        %v3813 = vunpack.c.l.b16 %v3662
        %v3814 = vunpack.c.l.b16 %v3663
        %v3815 = vunpack.c.l.b16 %v3664
        %v3816 = vunpack.c.l.b16 %v3665
        %v3817 = vunpack.c.l.b16 %v3666
        %v3818 = vunpack.c.l.b16 %v3667
        %v3819 = vunpack.c.l.b16 %v3668
        %v3820 = vunpack.c.l.b16 %v3669
        %v3821 = vpack.c.b16 %v3750, %v3749
        %v3822 = vpack.c.b16 %v3752, %v3751
        %v3823 = vpack.c.b16 %v3754, %v3753
        %v3824 = vpack.c.b16 %v3756, %v3755
        %v3825 = vpack.c.b16 %v3758, %v3757
        %v3826 = vpack.c.b16 %v3760, %v3759
        %v3827 = vpack.c.b16 %v3762, %v3761
        %v3828 = vpack.c.b16 %v3764, %v3763
        %v3829 = vpack.c.b16 %v3766, %v3765
        %v3830 = vpack.c.b16 %v3768, %v3767
        %v3831 = vpack.c.b16 %v3770, %v3769
        %v3832 = vpack.c.b16 %v3772, %v3771
        %v3833 = vpack.c.b16 %v3774, %v3773
        %v3834 = vpack.c.b16 %v3776, %v3775
        %v3835 = vpack.c.b16 %v3778, %v3777
        %v3836 = vpack.c.b16 %v3780, %v3779
        %v3837 = vpack.c.b16 %v3782, %v3781
        %v3838 = vpack.c.b16 %v3784, %v3783
        %v3839 = vpack.c.b16 %v3786, %v3785
        %v3840 = vpack.c.b16 %v3788, %v3787
        %v3841 = vpack.c.b16 %v3790, %v3789
        %v3842 = vpack.c.b16 %v3792, %v3791
        %v3843 = vpack.c.b16 %v3794, %v3793
        %v3844 = vpack.c.b16 %v3796, %v3795
        %v3845 = vpack.c.b16 %v3798, %v3797
        %v3846 = vpack.c.b16 %v3800, %v3799
        %v3847 = vpack.c.b16 %v3802, %v3801
        %v3848 = vpack.c.b16 %v3804, %v3803
        %v3849 = vpack.c.b16 %v3806, %v3805
        %v3850 = vpack.c.b16 %v3808, %v3807
        %v3851 = vpack.c.b16 %v3810, %v3809
        %v3852 = vpack.c.b16 %v3812, %v3811
        %v3853 = vpack.c.b16 %v3814, %v3813
        %v3854 = vpack.c.b16 %v3816, %v3815
        %v3855 = vpack.c.b16 %v3818, %v3817
        %v3856 = vpack.c.b16 %v3820, %v3819
        %v3893 = vsel %vm1620, %v3508, 0
        %v3895 = vsel %vm1620, %v3509, 0
        %v3897 = vsel %vm1620, %v3510, 0
        %v3900 = vsel %vm1620, %v3545, 0
        %3902 = vmatprep.subr.bf16.mxu0 0
        %3903 = vmatpush1.bf16.msra.mxu0 %v3821
        %3904 = vmatprep.subr.bf16.mxu0 0
        %3905 = vmatpush1.bf16.msra.mxu0 %v3822
        %3906 = vmatprep.subr.bf16.mxu0 0
        %3907 = vmatpush1.bf16.msra.mxu0 %v3823
        %3908 = vmatprep.subr.bf16.mxu0 0
        %3909 = vmatpush1.bf16.msra.mxu0 %v3824
        %3910 = vmatprep.subr.bf16.mxu0 0
        %3911 = vmatpush1.bf16.msra.mxu0 %v3825
        %3912 = vmatprep.subr.bf16.mxu0 0
        %3913 = vmatpush1.bf16.msra.mxu0 %v3826
        %3914 = vmatprep.subr.bf16.mxu0 0
        %3915 = vmatpush1.bf16.msra.mxu0 %v3827
        %3916 = vmatprep.subr.bf16.mxu0 0
        %3917 = vmatpush1.bf16.msra.mxu0 %v3828
        %3918 = vmatprep.subr.bf16.mxu0 0
        %3919 = vmatpush1.bf16.msra.mxu0 %v3829
        %3920 = vmatprep.subr.bf16.mxu0 0
        %3921 = vmatpush1.bf16.msra.mxu0 %v3830
        %3922 = vmatprep.subr.bf16.mxu0 0
        %3923 = vmatpush1.bf16.msra.mxu0 %v3831
        %3924 = vmatprep.subr.bf16.mxu0 0
        %3925 = vmatpush1.bf16.msra.mxu0 %v3832
        %3926 = vmatprep.subr.bf16.mxu0 0
        %3927 = vmatpush1.bf16.msra.mxu0 %v3833
        %3928 = vmatprep.subr.bf16.mxu0 0
        %3929 = vmatpush1.bf16.msra.mxu0 %v3834
        %3930 = vmatprep.subr.bf16.mxu0 0
        %3931 = vmatpush1.bf16.msra.mxu0 %v3835
        %3932 = vmatprep.subr.bf16.mxu0 0
        %3933 = vmatpush1.bf16.msra.mxu0 %v3836
        %3934 = vmatprep.mubr.bf16.mxu0 %v3564
        %3935 = vmatmul.mubr.bf16.gmra.mrb[0].mxu0 %v3548
        %v3936 = vpop.f32.mrb[0].mxu0
        %v3937 = vadd.f32 %v3675, %v3936
        %v3938 = vpop.f32.mrb[0].mxu0
        %v3939 = vpop.f32.mrb[0].mxu0
        %v3940 = vadd.f32 %v3675, %v3939
        %v3941 = vpop.f32.mrb[0].mxu0
        %3942 = vmatprep.mubr.bf16.mxu0 %v3568
        %3943 = vmatmul.mubr.bf16.gmra.mrb[0].mxu0 %v3552
        %v3944 = vpop.f32.mrb[0].mxu0
        %v3945 = vadd.f32 %v3675, %v3944
        %v3946 = vpop.f32.mrb[0].mxu0
        %v3947 = vpop.f32.mrb[0].mxu0
        %v3948 = vadd.f32 %v3675, %v3947
        %v3949 = vpop.f32.mrb[0].mxu0
        %3950 = vmatprep.mubr.bf16.mxu0 %v3572
        %3951 = vmatmul.mubr.bf16.gmra.mrb[0].mxu0 %v3556
        %v3952 = vpop.f32.mrb[0].mxu0
        %v3953 = vadd.f32 %v3675, %v3952
        %v3954 = vpop.f32.mrb[0].mxu0
        %v3955 = vpop.f32.mrb[0].mxu0
        %v3956 = vadd.f32 %v3675, %v3955
        %v3957 = vpop.f32.mrb[0].mxu0
        %3958 = vmatprep.mubr.bf16.mxu0 %v3576
        %3959 = vmatmul.mubr.bf16.gmra.mrb[0].mxu0 %v3560
        %v3960 = vpop.f32.mrb[0].mxu0
        %v3961 = vadd.f32 %v3675, %v3960
        %v3962 = vpop.f32.mrb[0].mxu0
        %v3963 = vpop.f32.mrb[0].mxu0
        %v3964 = vadd.f32 %v3675, %v3963
        %v3965 = vpop.f32.mrb[0].mxu0
        %3966 = vdwg.mxu0
        %3967 = vmatprep.subr.bf16.mxu0 0
        %3968 = vmatpush1.bf16.msra.mxu0 %v3837
        %3969 = vmatprep.subr.bf16.mxu0 0
        %3970 = vmatpush1.bf16.msra.mxu0 %v3838
        %3971 = vmatprep.subr.bf16.mxu0 0
        %3972 = vmatpush1.bf16.msra.mxu0 %v3839
        %3973 = vmatprep.subr.bf16.mxu0 0
        %3974 = vmatpush1.bf16.msra.mxu0 %v3840
        %3975 = vmatprep.subr.bf16.mxu0 0
        %3976 = vmatpush1.bf16.msra.mxu0 %v3841
        %3977 = vmatprep.subr.bf16.mxu0 0
        %3978 = vmatpush1.bf16.msra.mxu0 %v3842
        %3979 = vmatprep.subr.bf16.mxu0 0
        %3980 = vmatpush1.bf16.msra.mxu0 %v3843
        %3981 = vmatprep.subr.bf16.mxu0 0
        %3982 = vmatpush1.bf16.msra.mxu0 %v3844
        %3983 = vmatprep.subr.bf16.mxu0 0
        %3984 = vmatpush1.bf16.msra.mxu0 %v3845
        %3985 = vmatprep.subr.bf16.mxu0 0
        %3986 = vmatpush1.bf16.msra.mxu0 %v3846
        %3987 = vmatprep.subr.bf16.mxu0 0
        %3988 = vmatpush1.bf16.msra.mxu0 %v3847
        %3989 = vmatprep.subr.bf16.mxu0 0
        %3990 = vmatpush1.bf16.msra.mxu0 %v3848
        %3991 = vmatprep.subr.bf16.mxu0 0
        %3992 = vmatpush1.bf16.msra.mxu0 %v3849
        %3993 = vmatprep.subr.bf16.mxu0 0
        %3994 = vmatpush1.bf16.msra.mxu0 %v3850
        %3995 = vmatprep.subr.bf16.mxu0 0
        %3996 = vmatpush1.bf16.msra.mxu0 %v3851
        %3997 = vmatprep.subr.bf16.mxu0 0
        %3998 = vmatpush1.bf16.msra.mxu0 %v3852
        %3999 = vmatprep.mubr.bf16.mxu0 %v3552
        %4000 = vmatmul.mubr.bf16.gmra.mrb[0].mxu0 %v3580
        %v4001 = vpop.f32.mrb[0].mxu0
        %v4002 = vadd.f32 %v3937, %v4001
        %v4003 = vpop.f32.mrb[0].mxu0
        %v4004 = vpop.f32.mrb[0].mxu0
        %v4005 = vadd.f32 %v3940, %v4004
        %v4006 = vpop.f32.mrb[0].mxu0
        %4007 = vmatprep.mubr.bf16.mxu0 %v3556
        %4008 = vmatmul.mubr.bf16.gmra.mrb[0].mxu0 %v3584
        %v4009 = vpop.f32.mrb[0].mxu0
        %v4010 = vadd.f32 %v3945, %v4009
        %v4011 = vpop.f32.mrb[0].mxu0
        %v4012 = vpop.f32.mrb[0].mxu0
        %v4013 = vadd.f32 %v3948, %v4012
        %v4014 = vpop.f32.mrb[0].mxu0
        %4015 = vmatprep.mubr.bf16.mxu0 %v3560
        %4016 = vmatmul.mubr.bf16.gmra.mrb[0].mxu0 %v3588
        %v4017 = vpop.f32.mrb[0].mxu0
        %v4018 = vadd.f32 %v3953, %v4017
        %v4019 = vpop.f32.mrb[0].mxu0
        %v4020 = vpop.f32.mrb[0].mxu0
        %v4021 = vadd.f32 %v3956, %v4020
        %v4022 = vpop.f32.mrb[0].mxu0
        %4023 = vmatprep.mubr.bf16.mxu0 %v3596
        %4024 = vmatmul.mubr.bf16.gmra.mrb[0].mxu0 %v3592
        %v4025 = vpop.f32.mrb[0].mxu0
        %v4026 = vadd.f32 %v3961, %v4025
        %v4027 = vpop.f32.mrb[0].mxu0
        %v4028 = vpop.f32.mrb[0].mxu0
        %v4029 = vadd.f32 %v3964, %v4028
        %v4030 = vpop.f32.mrb[0].mxu0
        %4031 = vdwg.mxu0
        %4032 = vmatprep.subr.bf16.mxu0 0
        %4033 = vmatpush1.bf16.msra.mxu0 %v3853
        %4034 = vmatprep.subr.bf16.mxu0 0
        %4035 = vmatpush1.bf16.msra.mxu0 %v3854
        %4036 = vmatprep.subr.bf16.mxu0 0
        %4037 = vmatpush1.bf16.msra.mxu0 %v3855
        %4038 = vmatprep.subr.bf16.mxu0 0
        %4039 = vmatpush1.bf16.msra.mxu0 %v3856
        %4040 = vmatprep.subr.bf16.mxu0 0
        %4041 = vmatpush1.bf16.msra.mxu0 0
        %4042 = vmatprep.subr.bf16.mxu0 0
        %4043 = vmatpush1.bf16.msra.mxu0 0
        %4044 = vmatprep.subr.bf16.mxu0 0
        %4045 = vmatpush1.bf16.msra.mxu0 0
        %4046 = vmatprep.subr.bf16.mxu0 0
        %4047 = vmatpush1.bf16.msra.mxu0 0
        %4048 = vmatprep.subr.bf16.mxu0 0
        %4049 = vmatpush1.bf16.msra.mxu0 0
        %4050 = vmatprep.subr.bf16.mxu0 0
        %4051 = vmatpush1.bf16.msra.mxu0 0
        %4052 = vmatprep.subr.bf16.mxu0 0
        %4053 = vmatpush1.bf16.msra.mxu0 0
        %4054 = vmatprep.subr.bf16.mxu0 0
        %4055 = vmatpush1.bf16.msra.mxu0 0
        %4056 = vmatprep.subr.bf16.mxu0 0
        %4057 = vmatpush1.bf16.msra.mxu0 0
        %4058 = vmatprep.subr.bf16.mxu0 0
        %4059 = vmatpush1.bf16.msra.mxu0 0
        %4060 = vmatprep.subr.bf16.mxu0 0
        %4061 = vmatpush1.bf16.msra.mxu0 0
        %4062 = vmatprep.subr.bf16.mxu0 0
        %4063 = vmatpush1.bf16.msra.mxu0 0
        %4064 = vmatprep.mubr.bf16.mxu0 0
        %4065 = vmatmul.mubr.bf16.gmra.mrb[0].mxu0 %v3893
        %v4066 = vpop.f32.mrb[0].mxu0
        %v4067 = vadd.f32 %v4002, %v4066
        %v4068 = vpop.f32.mrb[0].mxu0
        %v4069 = vpop.f32.mrb[0].mxu0
        %v4070 = vadd.f32 %v4005, %v4069
        %v4071 = vpop.f32.mrb[0].mxu0
        %4072 = vmatprep.mubr.bf16.mxu0 0
        %4073 = vmatmul.mubr.bf16.gmra.mrb[0].mxu0 %v3895
        %v4074 = vpop.f32.mrb[0].mxu0
        %v4075 = vadd.f32 %v4010, %v4074
        %v4076 = vpop.f32.mrb[0].mxu0
        %v4077 = vpop.f32.mrb[0].mxu0
        %v4078 = vadd.f32 %v4013, %v4077
        %v4079 = vpop.f32.mrb[0].mxu0
        %4080 = vmatprep.mubr.bf16.mxu0 0
        %4081 = vmatmul.mubr.bf16.gmra.mrb[0].mxu0 %v3897
        %v4082 = vpop.f32.mrb[0].mxu0
        %v4083 = vadd.f32 %v4018, %v4082
        %v4084 = vpop.f32.mrb[0].mxu0
        %v4085 = vpop.f32.mrb[0].mxu0
        %v4086 = vadd.f32 %v4021, %v4085
        %v4087 = vpop.f32.mrb[0].mxu0
        %4088 = vmatprep.mubr.bf16.mxu0 0
        %4089 = vmatmul.mubr.bf16.gmra.mrb[0].mxu0 %v3900
        %v4090 = vpop.f32.mrb[0].mxu0
        %v4091 = vadd.f32 %v4026, %v4090
        %v4092 = vpop.f32.mrb[0].mxu0
        %v4093 = vpop.f32.mrb[0].mxu0
        %v4094 = vadd.f32 %v4029, %v4093
        %v4095 = vpop.f32.mrb[0].mxu0
        %4096 = vdwg.mxu0
        %v4097 = vmax.f32 %v4067, 0.0
        %v4098 = vmax.f32 %v4070, 0.0
        %v4099 = vmax.f32 %v4075, 0.0
        %v4100 = vmax.f32 %v4078, 0.0
        %v4101 = vmax.f32 %v4083, 0.0
        %v4102 = vmax.f32 %v4086, 0.0
        %v4103 = vmax.f32 %v4091, 0.0
        %v4104 = vmax.f32 %v4094, 0.0
        %v4105 = vpack.c.bf16 %v4098, %v4097
        %v4106 = vpack.c.bf16 %v4100, %v4099
        %v4107 = vpack.c.bf16 %v4102, %v4101
        %v4108 = vpack.c.bf16 %v4104, %v4103
        %v4109 = vld [vmem:[%s15] sm:$0xff]
        %v4110 = vld [vmem:[%s15 + $0x8] sm:$0xff]
        %v4111 = vld [vmem:[%s15 + $0x10] sm:$0xff]
        %v4112 = vld [vmem:[%s15 + $0x18] sm:$0xff]
        %v4113 = vld [vmem:[%s15 + $0x20] sm:$0xff]
        %v4114 = vld [vmem:[%s15 + $0x28] sm:$0xff]
        %v4115 = vld [vmem:[%s15 + $0x30] sm:$0xff]
        %v4116 = vld [vmem:[%s15 + $0x38] sm:$0xff]
        %v4117 = vld [vmem:[%s16] sm:$0x3]
        %v4119 = vlaneseq
        %v4120 = vshrl.u32 %v4119, 7
        %v4121 = vsub.s32 0, %v4120
        %v4122 = vrot.slane %v4117, %v4121
        %v4123 = vlaneseq
        %v4124 = vshrl.u32 %v4123, 7
        %v4125 = vsub.s32 1, %v4124
        %v4126 = vrot.slane %v4117, %v4125
        %v4137 = vunpack.c.l.b16 %v4109
        %v4138 = vunpack.c.h.b16 %v4109
        %v4139 = vunpack.c.l.b16 %v4110
        %v4140 = vunpack.c.h.b16 %v4110
        %v4141 = vunpack.c.l.b16 %v4111
        %v4142 = vunpack.c.h.b16 %v4111
        %v4143 = vunpack.c.l.b16 %v4112
        %v4144 = vunpack.c.h.b16 %v4112
        %v4145 = vunpack.c.l.b16 %v4113
        %v4146 = vunpack.c.h.b16 %v4113
        %v4147 = vunpack.c.l.b16 %v4114
        %v4148 = vunpack.c.h.b16 %v4114
        %v4149 = vunpack.c.l.b16 %v4115
        %v4150 = vunpack.c.h.b16 %v4115
        %v4151 = vunpack.c.l.b16 %v4116
        %v4152 = vunpack.c.h.b16 %v4116
        %v4153 = vpack.c.b16 %v4139, %v4137
        %v4154 = vpack.c.b16 %v4140, %v4138
        %v4155 = vpack.c.b16 %v4143, %v4141
        %v4156 = vpack.c.b16 %v4144, %v4142
        %v4157 = vpack.c.b16 %v4147, %v4145
        %v4158 = vpack.c.b16 %v4148, %v4146
        %v4159 = vpack.c.b16 %v4151, %v4149
        %v4160 = vpack.c.b16 %v4152, %v4150
        %v4170 = vsel %vm1620, %v4105, 0
        %v4173 = vsel %vm1620, %v4106, 0
        %v4176 = vsel %vm1620, %v4107, 0
        %v4179 = vsel %vm1620, %v4108, 0
        %4181 = vmatprep.subr.bf16.mxu0 %v4154
        %4182 = vmatpush1.bf16.msra.mxu0 %v4153
        %4183 = vmatprep.subr.bf16.mxu0 %v4156
        %4184 = vmatpush1.bf16.msra.mxu0 %v4155
        %4185 = vmatprep.subr.bf16.mxu0 %v4158
        %4186 = vmatpush1.bf16.msra.mxu0 %v4157
        %4187 = vmatprep.subr.bf16.mxu0 %v4160
        %4188 = vmatpush1.bf16.msra.mxu0 %v4159
        %4189 = vmatprep.subr.bf16.mxu0 0
        %4190 = vmatpush1.bf16.msra.mxu0 0
        %4191 = vmatprep.subr.bf16.mxu0 0
        %4192 = vmatpush1.bf16.msra.mxu0 0
        %4193 = vmatprep.subr.bf16.mxu0 0
        %4194 = vmatpush1.bf16.msra.mxu0 0
        %4195 = vmatprep.subr.bf16.mxu0 0
        %4196 = vmatpush1.bf16.msra.mxu0 0
        %4197 = vmatprep.subr.bf16.mxu0 0
        %4198 = vmatpush1.bf16.msra.mxu0 0
        %4199 = vmatprep.subr.bf16.mxu0 0
        %4200 = vmatpush1.bf16.msra.mxu0 0
        %4201 = vmatprep.subr.bf16.mxu0 0
        %4202 = vmatpush1.bf16.msra.mxu0 0
        %4203 = vmatprep.subr.bf16.mxu0 0
        %4204 = vmatpush1.bf16.msra.mxu0 0
        %4205 = vmatprep.subr.bf16.mxu0 0
        %4206 = vmatpush1.bf16.msra.mxu0 0
        %4207 = vmatprep.subr.bf16.mxu0 0
        %4208 = vmatpush1.bf16.msra.mxu0 0
        %4209 = vmatprep.subr.bf16.mxu0 0
        %4210 = vmatpush1.bf16.msra.mxu0 0
        %4211 = vmatprep.subr.bf16.mxu0 0
        %4212 = vmatpush1.bf16.msra.mxu0 0
        %4213 = vmatprep.mubr.bf16.mxu0 0
        %4214 = vmatmul.mubr.bf16.gmra.mrb[0].mxu0 %v4170
        %v4215 = vpop.f32.mrb[0].mxu0
        %v4216 = vadd.f32 %v4122, %v4215
        %v4217 = vpop.f32.mrb[0].mxu0
        %v4218 = vadd.f32 %v4126, %v4217
        %v4219 = vpop.f32.mrb[0].mxu0
        %v4220 = vadd.f32 %v4122, %v4219
        %v4221 = vpop.f32.mrb[0].mxu0
        %v4222 = vadd.f32 %v4126, %v4221
        %4223 = vmatprep.mubr.bf16.mxu0 0
        %4224 = vmatmul.mubr.bf16.gmra.mrb[0].mxu0 %v4173
        %v4225 = vpop.f32.mrb[0].mxu0
        %v4226 = vadd.f32 %v4122, %v4225
        %v4227 = vpop.f32.mrb[0].mxu0
        %v4228 = vadd.f32 %v4126, %v4227
        %v4229 = vpop.f32.mrb[0].mxu0
        %v4230 = vadd.f32 %v4122, %v4229
        %v4231 = vpop.f32.mrb[0].mxu0
        %v4232 = vadd.f32 %v4126, %v4231
        %4233 = vmatprep.mubr.bf16.mxu0 0
        %4234 = vmatmul.mubr.bf16.gmra.mrb[0].mxu0 %v4176
        %v4235 = vpop.f32.mrb[0].mxu0
        %v4236 = vadd.f32 %v4122, %v4235
        %v4237 = vpop.f32.mrb[0].mxu0
        %v4238 = vadd.f32 %v4126, %v4237
        %v4239 = vpop.f32.mrb[0].mxu0
        %v4240 = vadd.f32 %v4122, %v4239
        %v4241 = vpop.f32.mrb[0].mxu0
        %v4242 = vadd.f32 %v4126, %v4241
        %4243 = vmatprep.mubr.bf16.mxu0 0
        %4244 = vmatmul.mubr.bf16.gmra.mrb[0].mxu0 %v4179
        %v4245 = vpop.f32.mrb[0].mxu0
        %v4246 = vadd.f32 %v4122, %v4245
        %v4247 = vpop.f32.mrb[0].mxu0
        %v4248 = vadd.f32 %v4126, %v4247
        %v4249 = vpop.f32.mrb[0].mxu0
        %v4250 = vadd.f32 %v4122, %v4249
        %v4251 = vpop.f32.mrb[0].mxu0
        %v4252 = vadd.f32 %v4126, %v4251
        %4253 = vdwg.mxu0
        %v4254 = vunpack.c.l.bf16 %v2973
        %v4255 = vunpack.c.l.bf16 %v2974
        %v4256 = vunpack.c.h.bf16 %v2973
        %v4257 = vunpack.c.h.bf16 %v2974
        %v4258 = vunpack.c.l.bf16 %v2975
        %v4259 = vunpack.c.l.bf16 %v2976
        %v4260 = vunpack.c.h.bf16 %v2975
        %v4261 = vunpack.c.h.bf16 %v2976
        %v4262 = vunpack.c.l.bf16 %v2977
        %v4263 = vunpack.c.l.bf16 %v2978
        %v4264 = vunpack.c.h.bf16 %v2977
        %v4265 = vunpack.c.h.bf16 %v2978
        %v4266 = vunpack.c.l.bf16 %v2979
        %v4267 = vunpack.c.l.bf16 %v2980
        %v4268 = vunpack.c.h.bf16 %v2979
        %v4269 = vunpack.c.h.bf16 %v2980
        %v4270 = vadd.f32 %v4216, %v4254
        %v4271 = vadd.f32 %v4218, %v4255
        %v4272 = vadd.f32 %v4220, %v4256
        %v4273 = vadd.f32 %v4222, %v4257
        %v4274 = vadd.f32 %v4226, %v4258
        %v4275 = vadd.f32 %v4228, %v4259
        %v4276 = vadd.f32 %v4230, %v4260
        %v4277 = vadd.f32 %v4232, %v4261
        %v4278 = vadd.f32 %v4236, %v4262
        %v4279 = vadd.f32 %v4238, %v4263
        %v4280 = vadd.f32 %v4240, %v4264
        %v4281 = vadd.f32 %v4242, %v4265
        %v4282 = vadd.f32 %v4246, %v4266
        %v4283 = vadd.f32 %v4248, %v4267
        %v4284 = vadd.f32 %v4250, %v4268
        %v4285 = vadd.f32 %v4252, %v4269
        %v4286 = vmax.f32 %v4270, 0.0
        %v4287 = vmax.f32 %v4271, 0.0
        %v4288 = vmax.f32 %v4272, 0.0
        %v4289 = vmax.f32 %v4273, 0.0
        %v4290 = vmax.f32 %v4274, 0.0
        %v4291 = vmax.f32 %v4275, 0.0
        %v4292 = vmax.f32 %v4276, 0.0
        %v4293 = vmax.f32 %v4277, 0.0
        %v4294 = vmax.f32 %v4278, 0.0
        %v4295 = vmax.f32 %v4279, 0.0
        %v4296 = vmax.f32 %v4280, 0.0
        %v4297 = vmax.f32 %v4281, 0.0
        %v4298 = vmax.f32 %v4282, 0.0
        %v4299 = vmax.f32 %v4283, 0.0
        %v4300 = vmax.f32 %v4284, 0.0
        %v4301 = vmax.f32 %v4285, 0.0
        %v4302 = vpack.c.bf16 %v4288, %v4286
        %v4303 = vpack.c.bf16 %v4289, %v4287
        %v4304 = vpack.c.bf16 %v4292, %v4290
        %v4305 = vpack.c.bf16 %v4293, %v4291
        %v4306 = vpack.c.bf16 %v4296, %v4294
        %v4307 = vpack.c.bf16 %v4297, %v4295
        %v4308 = vpack.c.bf16 %v4300, %v4298
        %v4309 = vpack.c.bf16 %v4301, %v4299
        %v4310 = vld [vmem:[%s17] sm:$0xf]
        %v4311 = vld [vmem:[%s17 + $0x4] sm:$0xf]
        %v4312 = vld [vmem:[%s17 + $0x8] sm:$0xf]
        %v4313 = vld [vmem:[%s17 + $0xc] sm:$0xf]
        %v4314 = vld [vmem:[%s17 + $0x10] sm:$0xf]
        %v4315 = vld [vmem:[%s17 + $0x14] sm:$0xf]
        %v4316 = vld [vmem:[%s17 + $0x18] sm:$0xf]
        %v4317 = vld [vmem:[%s17 + $0x1c] sm:$0xf]
        %v4318 = vld [vmem:[%s17 + $0x20] sm:$0xf]
        %v4319 = vld [vmem:[%s17 + $0x24] sm:$0xf]
        %v4320 = vld [vmem:[%s17 + $0x28] sm:$0xf]
        %v4321 = vld [vmem:[%s17 + $0x2c] sm:$0xf]
        %v4322 = vld [vmem:[%s17 + $0x30] sm:$0xf]
        %v4323 = vld [vmem:[%s17 + $0x34] sm:$0xf]
        %v4324 = vld [vmem:[%s17 + $0x38] sm:$0xf]
        %v4325 = vld [vmem:[%s17 + $0x3c] sm:$0xf]
        %v4326 = vld [vmem:[%s17 + $0x40] sm:$0xf]
        %v4327 = vld [vmem:[%s17 + $0x44] sm:$0xf]
        %v4328 = vld [vmem:[%s17 + $0x48] sm:$0xf]
        %v4329 = vld [vmem:[%s17 + $0x4c] sm:$0xf]
        %v4330 = vld [vmem:[%s17 + $0x50] sm:$0xf]
        %v4331 = vld [vmem:[%s17 + $0x54] sm:$0xf]
        %v4332 = vld [vmem:[%s17 + $0x58] sm:$0xf]
        %v4333 = vld [vmem:[%s17 + $0x5c] sm:$0xf]
        %v4334 = vld [vmem:[%s17 + $0x60] sm:$0xf]
        %v4335 = vld [vmem:[%s17 + $0x64] sm:$0xf]
        %v4336 = vld [vmem:[%s17 + $0x68] sm:$0xf]
        %v4337 = vld [vmem:[%s17 + $0x6c] sm:$0xf]
        %v4338 = vld [vmem:[%s17 + $0x70] sm:$0xf]
        %v4339 = vld [vmem:[%s17 + $0x74] sm:$0xf]
        %v4340 = vld [vmem:[%s17 + $0x78] sm:$0xf]
        %v4341 = vld [vmem:[%s17 + $0x7c] sm:$0xf]
        %v4342 = vld [vmem:[%s18] sm:$0x1]
        %v4344 = vlaneseq
        %v4345 = vshrl.u32 %v4344, 7
        %v4346 = vsub.s32 0, %v4345
        %v4347 = vrot.slane %v4342, %v4346
        %v4381 = vunpack.c.l.b16 %v4310
        %v4382 = vunpack.c.l.b16 %v4311
        %v4383 = vunpack.c.l.b16 %v4312
        %v4384 = vunpack.c.l.b16 %v4313
        %v4385 = vunpack.c.l.b16 %v4314
        %v4386 = vunpack.c.l.b16 %v4315
        %v4387 = vunpack.c.l.b16 %v4316
        %v4388 = vunpack.c.l.b16 %v4317
        %v4389 = vunpack.c.l.b16 %v4318
        %v4390 = vunpack.c.l.b16 %v4319
        %v4391 = vunpack.c.l.b16 %v4320
        %v4392 = vunpack.c.l.b16 %v4321
        %v4393 = vunpack.c.l.b16 %v4322
        %v4394 = vunpack.c.l.b16 %v4323
        %v4395 = vunpack.c.l.b16 %v4324
        %v4396 = vunpack.c.l.b16 %v4325
        %v4397 = vunpack.c.l.b16 %v4326
        %v4398 = vunpack.c.l.b16 %v4327
        %v4399 = vunpack.c.l.b16 %v4328
        %v4400 = vunpack.c.l.b16 %v4329
        %v4401 = vunpack.c.l.b16 %v4330
        %v4402 = vunpack.c.l.b16 %v4331
        %v4403 = vunpack.c.l.b16 %v4332
        %v4404 = vunpack.c.l.b16 %v4333
        %v4405 = vunpack.c.l.b16 %v4334
        %v4406 = vunpack.c.l.b16 %v4335
        %v4407 = vunpack.c.l.b16 %v4336
        %v4408 = vunpack.c.l.b16 %v4337
        %v4409 = vunpack.c.l.b16 %v4338
        %v4410 = vunpack.c.l.b16 %v4339
        %v4411 = vunpack.c.l.b16 %v4340
        %v4412 = vunpack.c.l.b16 %v4341
        %v4413 = vpack.c.b16 %v4382, %v4381
        %v4414 = vpack.c.b16 %v4384, %v4383
        %v4415 = vpack.c.b16 %v4386, %v4385
        %v4416 = vpack.c.b16 %v4388, %v4387
        %v4417 = vpack.c.b16 %v4390, %v4389
        %v4418 = vpack.c.b16 %v4392, %v4391
        %v4419 = vpack.c.b16 %v4394, %v4393
        %v4420 = vpack.c.b16 %v4396, %v4395
        %v4421 = vpack.c.b16 %v4398, %v4397
        %v4422 = vpack.c.b16 %v4400, %v4399
        %v4423 = vpack.c.b16 %v4402, %v4401
        %v4424 = vpack.c.b16 %v4404, %v4403
        %v4425 = vpack.c.b16 %v4406, %v4405
        %v4426 = vpack.c.b16 %v4408, %v4407
        %v4427 = vpack.c.b16 %v4410, %v4409
        %v4428 = vpack.c.b16 %v4412, %v4411
        %4445 = vmatprep.subr.bf16.mxu0 0
        %4446 = vmatpush1.bf16.msra.mxu0 %v4413
        %4447 = vmatprep.subr.bf16.mxu0 0
        %4448 = vmatpush1.bf16.msra.mxu0 %v4414
        %4449 = vmatprep.subr.bf16.mxu0 0
        %4450 = vmatpush1.bf16.msra.mxu0 %v4415
        %4451 = vmatprep.subr.bf16.mxu0 0
        %4452 = vmatpush1.bf16.msra.mxu0 %v4416
        %4453 = vmatprep.subr.bf16.mxu0 0
        %4454 = vmatpush1.bf16.msra.mxu0 %v4417
        %4455 = vmatprep.subr.bf16.mxu0 0
        %4456 = vmatpush1.bf16.msra.mxu0 %v4418
        %4457 = vmatprep.subr.bf16.mxu0 0
        %4458 = vmatpush1.bf16.msra.mxu0 %v4419
        %4459 = vmatprep.subr.bf16.mxu0 0
        %4460 = vmatpush1.bf16.msra.mxu0 %v4420
        %4461 = vmatprep.subr.bf16.mxu0 0
        %4462 = vmatpush1.bf16.msra.mxu0 %v4421
        %4463 = vmatprep.subr.bf16.mxu0 0
        %4464 = vmatpush1.bf16.msra.mxu0 %v4422
        %4465 = vmatprep.subr.bf16.mxu0 0
        %4466 = vmatpush1.bf16.msra.mxu0 %v4423
        %4467 = vmatprep.subr.bf16.mxu0 0
        %4468 = vmatpush1.bf16.msra.mxu0 %v4424
        %4469 = vmatprep.subr.bf16.mxu0 0
        %4470 = vmatpush1.bf16.msra.mxu0 %v4425
        %4471 = vmatprep.subr.bf16.mxu0 0
        %4472 = vmatpush1.bf16.msra.mxu0 %v4426
        %4473 = vmatprep.subr.bf16.mxu0 0
        %4474 = vmatpush1.bf16.msra.mxu0 %v4427
        %4475 = vmatprep.subr.bf16.mxu0 0
        %4476 = vmatpush1.bf16.msra.mxu0 %v4428
        %4477 = vmatprep.mubr.bf16.mxu0 %v4303
        %4478 = vmatmul.mubr.bf16.gmra.mrb[0].mxu0 %v4302
        %v4479 = vpop.f32.mrb[0].mxu0
        %v4480 = vadd.f32 %v4347, %v4479
        %v4481 = vpop.f32.mrb[0].mxu0
        %v4482 = vpop.f32.mrb[0].mxu0
        %v4483 = vadd.f32 %v4347, %v4482
        %v4484 = vpop.f32.mrb[0].mxu0
        %4485 = vmatprep.mubr.bf16.mxu0 %v4305
        %4486 = vmatmul.mubr.bf16.gmra.mrb[0].mxu0 %v4304
        %v4487 = vpop.f32.mrb[0].mxu0
        %v4488 = vadd.f32 %v4347, %v4487
        %v4489 = vpop.f32.mrb[0].mxu0
        %v4490 = vpop.f32.mrb[0].mxu0
        %v4491 = vadd.f32 %v4347, %v4490
        %v4492 = vpop.f32.mrb[0].mxu0
        %4493 = vmatprep.mubr.bf16.mxu0 %v4307
        %4494 = vmatmul.mubr.bf16.gmra.mrb[0].mxu0 %v4306
        %v4495 = vpop.f32.mrb[0].mxu0
        %v4496 = vadd.f32 %v4347, %v4495
        %v4497 = vpop.f32.mrb[0].mxu0
        %v4498 = vpop.f32.mrb[0].mxu0
        %v4499 = vadd.f32 %v4347, %v4498
        %v4500 = vpop.f32.mrb[0].mxu0
        %4501 = vmatprep.mubr.bf16.mxu0 %v4309
        %4502 = vmatmul.mubr.bf16.gmra.mrb[0].mxu0 %v4308
        %v4503 = vpop.f32.mrb[0].mxu0
        %v4504 = vadd.f32 %v4347, %v4503
        %v4505 = vpop.f32.mrb[0].mxu0
        %v4506 = vpop.f32.mrb[0].mxu0
        %v4507 = vadd.f32 %v4347, %v4506
        %v4508 = vpop.f32.mrb[0].mxu0
        %4509 = vdwg.mxu0
        %v4510 = vmax.f32 %v4480, 0.0
        %v4511 = vmax.f32 %v4483, 0.0
        %v4512 = vmax.f32 %v4488, 0.0
        %v4513 = vmax.f32 %v4491, 0.0
        %v4514 = vmax.f32 %v4496, 0.0
        %v4515 = vmax.f32 %v4499, 0.0
        %v4516 = vmax.f32 %v4504, 0.0
        %v4517 = vmax.f32 %v4507, 0.0
        %v4518 = vpack.c.bf16 %v4511, %v4510
        %v4519 = vpack.c.bf16 %v4513, %v4512
        %v4520 = vpack.c.bf16 %v4515, %v4514
        %v4521 = vpack.c.bf16 %v4517, %v4516
        %v4526 = vunpack.c.l.b16 %v4518
        %v4527 = vunpack.c.h.b16 %v4518
        %v4528 = vunpack.c.l.b16 %v4519
        %v4529 = vunpack.c.h.b16 %v4519
        %v4530 = vunpack.c.l.b16 %v4520
        %v4531 = vunpack.c.h.b16 %v4520
        %v4532 = vunpack.c.l.b16 %v4521
        %v4533 = vunpack.c.h.b16 %v4521
        %v4534 = vpack.c.b16 %v4526, %v4526
        %v4535 = vpack.c.b16 %v4527, %v4527
        %v4536 = vpack.c.b16 %v4528, %v4528
        %v4537 = vpack.c.b16 %v4529, %v4529
        %v4538 = vpack.c.b16 %v4530, %v4530
        %v4539 = vpack.c.b16 %v4531, %v4531
        %v4540 = vpack.c.b16 %v4532, %v4532
        %v4541 = vpack.c.b16 %v4533, %v4533
        %v4543 = vshrl.u32 %v4534, 16
        %v4545 = vrot.slane %v4543, 7
        %v4546 = vshll.u32 %v4534, 16
        %v4548 = vor.u32 %v4545, %v4546
        %v4550 = vshrl.u32 %v4535, 16
        %v4552 = vrot.slane %v4550, 7
        %v4553 = vshll.u32 %v4535, 16
        %v4555 = vor.u32 %v4552, %v4553
        %v4557 = vshrl.u32 %v4536, 16
        %v4559 = vrot.slane %v4557, 7
        %v4560 = vshll.u32 %v4536, 16
        %v4562 = vor.u32 %v4559, %v4560
        %v4564 = vshrl.u32 %v4537, 16
        %v4566 = vrot.slane %v4564, 7
        %v4567 = vshll.u32 %v4537, 16
        %v4569 = vor.u32 %v4566, %v4567
        %v4571 = vshrl.u32 %v4538, 16
        %v4573 = vrot.slane %v4571, 7
        %v4574 = vshll.u32 %v4538, 16
        %v4576 = vor.u32 %v4573, %v4574
        %v4578 = vshrl.u32 %v4539, 16
        %v4580 = vrot.slane %v4578, 7
        %v4581 = vshll.u32 %v4539, 16
        %v4583 = vor.u32 %v4580, %v4581
        %v4585 = vshrl.u32 %v4540, 16
        %v4587 = vrot.slane %v4585, 7
        %v4588 = vshll.u32 %v4540, 16
        %v4590 = vor.u32 %v4587, %v4588
        %v4592 = vshrl.u32 %v4541, 16
        %v4594 = vrot.slane %v4592, 7
        %v4595 = vshll.u32 %v4541, 16
        %v4597 = vor.u32 %v4594, %v4595
        %v4606 = vsel %vm1796, 0, %v4548
        %v4607 = vsel %vm1796, 0, %v4555
        %v4608 = vsel %vm1796, 0, %v4562
        %v4609 = vsel %vm1796, 0, %v4569
        %v4610 = vsel %vm1796, 0, %v4576
        %v4611 = vsel %vm1796, 0, %v4583
        %v4612 = vsel %vm1796, 0, %v4590
        %v4613 = vsel %vm1796, 0, %v4597
        %v4614 = vsel %vm1807, %v4606, 0
        %v4615 = vsel %vm1807, %v4607, 0
        %v4616 = vsel %vm1807, %v4608, 0
        %v4617 = vsel %vm1807, %v4609, 0
        %v4618 = vsel %vm1807, %v4610, 0
        %v4619 = vsel %vm1807, %v4611, 0
        %v4620 = vsel %vm1807, %v4612, 0
        %v4621 = vsel %vm1807, %v4613, 0
        %v4629 = vunpack.c.l.b16 %v4614
        %v4630 = vunpack.c.h.b16 %v4614
        %v4631 = vunpack.c.l.b16 %v4615
        %v4632 = vunpack.c.h.b16 %v4615
        %v4633 = vunpack.c.l.b16 %v4616
        %v4634 = vunpack.c.h.b16 %v4616
        %v4635 = vunpack.c.l.b16 %v4617
        %v4636 = vunpack.c.h.b16 %v4617
        %v4637 = vunpack.c.l.b16 %v4618
        %v4638 = vunpack.c.h.b16 %v4618
        %v4639 = vunpack.c.l.b16 %v4619
        %v4640 = vunpack.c.h.b16 %v4619
        %v4641 = vunpack.c.l.b16 %v4620
        %v4642 = vunpack.c.h.b16 %v4620
        %v4643 = vpack.c.b16 %v4629, %v4629
        %v4644 = vpack.c.b16 %v4630, %v4630
        %v4645 = vpack.c.b16 %v4631, %v4631
        %v4646 = vpack.c.b16 %v4632, %v4632
        %v4647 = vpack.c.b16 %v4633, %v4633
        %v4648 = vpack.c.b16 %v4634, %v4634
        %v4649 = vpack.c.b16 %v4635, %v4635
        %v4650 = vpack.c.b16 %v4636, %v4636
        %v4651 = vpack.c.b16 %v4637, %v4637
        %v4652 = vpack.c.b16 %v4638, %v4638
        %v4653 = vpack.c.b16 %v4639, %v4639
        %v4654 = vpack.c.b16 %v4640, %v4640
        %v4655 = vpack.c.b16 %v4641, %v4641
        %v4656 = vpack.c.b16 %v4642, %v4642
        %v4658 = vshrl.u32 %v4643, 16
        %v4660 = vrot.slane %v4658, 4
        %v4661 = vshll.u32 %v4643, 16
        %v4663 = vrot.slane %v4661, 5
        %v4664 = vor.u32 %v4660, %v4663
        %v4665 = vrot.slane %v4664, 4
        %v4667 = vshll.u32 %v4644, 16
        %v4669 = vrot.slane %v4667, 5
        %v4670 = vsel %vm1858, %v4665, %v4669
        %v4672 = vshrl.u32 %v4645, 16
        %v4674 = vrot.slane %v4672, 4
        %v4675 = vshll.u32 %v4645, 16
        %v4677 = vrot.slane %v4675, 5
        %v4678 = vor.u32 %v4674, %v4677
        %v4679 = vrot.slane %v4678, 4
        %v4681 = vshll.u32 %v4646, 16
        %v4683 = vrot.slane %v4681, 5
        %v4684 = vsel %vm1858, %v4679, %v4683
        %v4686 = vshrl.u32 %v4647, 16
        %v4688 = vrot.slane %v4686, 4
        %v4689 = vshll.u32 %v4647, 16
        %v4691 = vrot.slane %v4689, 5
        %v4692 = vor.u32 %v4688, %v4691
        %v4693 = vrot.slane %v4692, 4
        %v4695 = vshll.u32 %v4648, 16
        %v4697 = vrot.slane %v4695, 5
        %v4698 = vsel %vm1858, %v4693, %v4697
        %v4700 = vshrl.u32 %v4649, 16
        %v4702 = vrot.slane %v4700, 4
        %v4703 = vshll.u32 %v4649, 16
        %v4705 = vrot.slane %v4703, 5
        %v4706 = vor.u32 %v4702, %v4705
        %v4707 = vrot.slane %v4706, 4
        %v4709 = vshll.u32 %v4650, 16
        %v4711 = vrot.slane %v4709, 5
        %v4712 = vsel %vm1858, %v4707, %v4711
        %v4714 = vshrl.u32 %v4651, 16
        %v4716 = vrot.slane %v4714, 4
        %v4717 = vshll.u32 %v4651, 16
        %v4719 = vrot.slane %v4717, 5
        %v4720 = vor.u32 %v4716, %v4719
        %v4721 = vrot.slane %v4720, 4
        %v4723 = vshll.u32 %v4652, 16
        %v4725 = vrot.slane %v4723, 5
        %v4726 = vsel %vm1858, %v4721, %v4725
        %v4728 = vshrl.u32 %v4653, 16
        %v4730 = vrot.slane %v4728, 4
        %v4731 = vshll.u32 %v4653, 16
        %v4733 = vrot.slane %v4731, 5
        %v4734 = vor.u32 %v4730, %v4733
        %v4735 = vrot.slane %v4734, 4
        %v4737 = vshll.u32 %v4654, 16
        %v4739 = vrot.slane %v4737, 5
        %v4740 = vsel %vm1858, %v4735, %v4739
        %v4742 = vshrl.u32 %v4655, 16
        %v4744 = vrot.slane %v4742, 4
        %v4745 = vshll.u32 %v4655, 16
        %v4747 = vrot.slane %v4745, 5
        %v4748 = vor.u32 %v4744, %v4747
        %v4749 = vrot.slane %v4748, 4
        %v4751 = vshll.u32 %v4656, 16
        %v4753 = vrot.slane %v4751, 5
        %v4754 = vsel %vm1858, %v4749, %v4753
        %v4755 = vrot.slane %v4643, 5
        %v4756 = vrot.slane %v4755, 4
        %v4757 = vrot.slane %v4644, 5
        %v4758 = vsel %vm1973, %v4756, %v4757
        %v4759 = vrot.slane %v4645, 5
        %v4760 = vrot.slane %v4759, 4
        %v4761 = vrot.slane %v4646, 5
        %v4762 = vsel %vm1973, %v4760, %v4761
        %v4763 = vrot.slane %v4647, 5
        %v4764 = vrot.slane %v4763, 4
        %v4765 = vrot.slane %v4648, 5
        %v4766 = vsel %vm1973, %v4764, %v4765
        %v4767 = vrot.slane %v4649, 5
        %v4768 = vrot.slane %v4767, 4
        %v4769 = vrot.slane %v4650, 5
        %v4770 = vsel %vm1973, %v4768, %v4769
        %v4771 = vrot.slane %v4651, 5
        %v4772 = vrot.slane %v4771, 4
        %v4773 = vrot.slane %v4652, 5
        %v4774 = vsel %vm1973, %v4772, %v4773
        %v4775 = vrot.slane %v4653, 5
        %v4776 = vrot.slane %v4775, 4
        %v4777 = vrot.slane %v4654, 5
        %v4778 = vsel %vm1973, %v4776, %v4777
        %v4779 = vrot.slane %v4655, 5
        %v4780 = vrot.slane %v4779, 4
        %v4781 = vrot.slane %v4656, 5
        %v4782 = vsel %vm1973, %v4780, %v4781
        %v4784 = vunpack.c.l.b16 %v4621
        %v4785 = vunpack.c.h.b16 %v4621
        %v4786 = vpack.c.b16 %v4784, %v4784
        %v4787 = vpack.c.b16 %v4785, %v4785
        %v4789 = vshrl.u32 %v4786, 16
        %v4791 = vrot.slane %v4789, 4
        %v4792 = vshll.u32 %v4786, 16
        %v4794 = vrot.slane %v4792, 5
        %v4795 = vor.u32 %v4791, %v4794
        %v4796 = vrot.slane %v4795, 4
        %v4798 = vshll.u32 %v4787, 16
        %v4800 = vrot.slane %v4798, 5
        %v4801 = vsel %vm1858, %v4796, %v4800
        %v4802 = vrot.slane %v4786, 5
        %v4803 = vrot.slane %v4802, 4
        %v4804 = vrot.slane %v4787, 5
        %v4805 = vsel %vm1973, %v4803, %v4804
        %v4806 = vpack.c.b16 %v4629, %v1824
        %v4807 = vpack.c.b16 %v4633, %v4631
        %v4808 = vpack.c.b16 %v4637, %v4635
        %v4809 = vpack.c.b16 %v4641, %v4639
        %v4810 = vunpack.c.l.b16 %v4670
        %v4811 = vunpack.c.l.b16 %v4684
        %v4812 = vunpack.c.l.b16 %v4698
        %v4813 = vunpack.c.l.b16 %v4712
        %v4814 = vunpack.c.l.b16 %v4726
        %v4815 = vunpack.c.l.b16 %v4740
        %v4816 = vunpack.c.l.b16 %v4754
        %v4817 = vpack.c.b16 %v4810, %v2033
        %v4818 = vpack.c.b16 %v4812, %v4811
        %v4819 = vpack.c.b16 %v4814, %v4813
        %v4820 = vpack.c.b16 %v4816, %v4815
        %4821 = vrot.lane.b32.xlu0 %v4817, 64
        %v4822 = vpop.permute.xlu0 %4821
        %4823 = vrot.lane.b32.xlu0 %v4818, 64
        %v4824 = vpop.permute.xlu0 %4823
        %4825 = vrot.lane.b32.xlu0 %v4819, 64
        %v4826 = vpop.permute.xlu0 %4825
        %4827 = vrot.lane.b32.xlu0 %v4820, 64
        %v4828 = vpop.permute.xlu0 %4827
        %v4829 = vunpack.c.l.b16 %v4758
        %v4830 = vunpack.c.l.b16 %v4762
        %v4831 = vunpack.c.l.b16 %v4766
        %v4832 = vunpack.c.l.b16 %v4770
        %v4833 = vunpack.c.l.b16 %v4774
        %v4834 = vunpack.c.l.b16 %v4778
        %v4835 = vunpack.c.l.b16 %v4782
        %v4836 = vpack.c.b16 %v4829, %v2053
        %v4837 = vpack.c.b16 %v4831, %v4830
        %v4838 = vpack.c.b16 %v4833, %v4832
        %v4839 = vpack.c.b16 %v4835, %v4834
        %v4840 = vpack.c.b16 %v4631, %v4629
        %v4841 = vpack.c.b16 %v4635, %v4633
        %v4842 = vpack.c.b16 %v4639, %v4637
        %v4843 = vpack.c.b16 %v4784, %v4641
        %4844 = vrot.lane.b32.xlu0 %v4840, 64
        %v4845 = vpop.permute.xlu0 %4844
        %4846 = vrot.lane.b32.xlu0 %v4841, 64
        %v4847 = vpop.permute.xlu0 %4846
        %4848 = vrot.lane.b32.xlu0 %v4842, 64
        %v4849 = vpop.permute.xlu0 %4848
        %4850 = vrot.lane.b32.xlu0 %v4843, 64
        %v4851 = vpop.permute.xlu0 %4850
        %v4852 = vunpack.c.l.b16 %v4801
        %v4853 = vpack.c.b16 %v4811, %v4810
        %v4854 = vpack.c.b16 %v4813, %v4812
        %v4855 = vpack.c.b16 %v4815, %v4814
        %v4856 = vpack.c.b16 %v4852, %v4816
        %v4857 = vunpack.c.l.b16 %v4805
        %v4858 = vpack.c.b16 %v4830, %v4829
        %v4859 = vpack.c.b16 %v4832, %v4831
        %v4860 = vpack.c.b16 %v4834, %v4833
        %v4861 = vpack.c.b16 %v4857, %v4835
        %4862 = vrot.lane.b32.xlu0 %v4858, 64
        %v4863 = vpop.permute.xlu0 %4862
        %4864 = vrot.lane.b32.xlu0 %v4859, 64
        %v4865 = vpop.permute.xlu0 %4864
        %4866 = vrot.lane.b32.xlu0 %v4860, 64
        %v4867 = vpop.permute.xlu0 %4866
        %4868 = vrot.lane.b32.xlu0 %v4861, 64
        %v4869 = vpop.permute.xlu0 %4868
        %v4870 = vpack.c.b16 %v1824, %v4784
        %v4871 = vpack.c.b16 %v2033, %v4852
        %4872 = vrot.lane.b32.xlu0 %v4871, 64
        %v4873 = vpop.permute.xlu0 %4872
        %v4874 = vpack.c.b16 %v2053, %v4857
        %v4877 = vsel %vm1620, %v4806, %v4822
        %v4881 = vsel %vm1620, %v4807, %v4824
        %v4885 = vsel %vm1620, %v4808, %v4826
        %v4889 = vsel %vm1620, %v4809, %v4828
        %v4893 = vsel %vm1620, %v4836, %v4845
        %v4897 = vsel %vm1620, %v4837, %v4847
        %v4901 = vsel %vm1620, %v4838, %v4849
        %v4905 = vsel %vm1620, %v4839, %v4851
        %v4909 = vsel %vm1620, %v4853, %v4863
        %v4913 = vsel %vm1620, %v4854, %v4865
        %v4917 = vsel %vm1620, %v4855, %v4867
        %v4921 = vsel %vm1620, %v4856, %v4869
        %v4925 = vsel %vm1620, %v4870, %v4873
        %v4927 = vld [vmem:[%s19] sm:$0xf]
        %v4928 = vld [vmem:[%s19 + $0x4] sm:$0xf]
        %v4929 = vld [vmem:[%s19 + $0x8] sm:$0xf]
        %v4930 = vld [vmem:[%s19 + $0xc] sm:$0xf]
        %v4931 = vld [vmem:[%s19 + $0x10] sm:$0xf]
        %v4932 = vld [vmem:[%s19 + $0x14] sm:$0xf]
        %v4933 = vld [vmem:[%s19 + $0x18] sm:$0xf]
        %v4934 = vld [vmem:[%s19 + $0x1c] sm:$0xf]
        %v4935 = vld [vmem:[%s19 + $0x20] sm:$0xf]
        %v4936 = vld [vmem:[%s19 + $0x24] sm:$0xf]
        %v4937 = vld [vmem:[%s19 + $0x28] sm:$0xf]
        %v4938 = vld [vmem:[%s19 + $0x2c] sm:$0xf]
        %v4939 = vld [vmem:[%s19 + $0x30] sm:$0xf]
        %v4940 = vld [vmem:[%s19 + $0x34] sm:$0xf]
        %v4941 = vld [vmem:[%s19 + $0x38] sm:$0xf]
        %v4942 = vld [vmem:[%s19 + $0x3c] sm:$0xf]
        %v4943 = vld [vmem:[%s19 + $0x40] sm:$0xf]
        %v4944 = vld [vmem:[%s19 + $0x44] sm:$0xf]
        %v4945 = vld [vmem:[%s19 + $0x48] sm:$0xf]
        %v4946 = vld [vmem:[%s19 + $0x4c] sm:$0xf]
        %v4947 = vld [vmem:[%s19 + $0x50] sm:$0xf]
        %v4948 = vld [vmem:[%s19 + $0x54] sm:$0xf]
        %v4949 = vld [vmem:[%s19 + $0x58] sm:$0xf]
        %v4950 = vld [vmem:[%s19 + $0x5c] sm:$0xf]
        %v4951 = vld [vmem:[%s19 + $0x60] sm:$0xf]
        %v4952 = vld [vmem:[%s19 + $0x64] sm:$0xf]
        %v4953 = vld [vmem:[%s19 + $0x68] sm:$0xf]
        %v4954 = vld [vmem:[%s19 + $0x6c] sm:$0xf]
        %v4955 = vld [vmem:[%s19 + $0x70] sm:$0xf]
        %v4956 = vld [vmem:[%s19 + $0x74] sm:$0xf]
        %v4957 = vld [vmem:[%s19 + $0x78] sm:$0xf]
        %v4958 = vld [vmem:[%s19 + $0x7c] sm:$0xf]
        %v4959 = vld [vmem:[%s19 + $0x80] sm:$0xf]
        %v4960 = vld [vmem:[%s19 + $0x84] sm:$0xf]
        %v4961 = vld [vmem:[%s19 + $0x88] sm:$0xf]
        %v4962 = vld [vmem:[%s19 + $0x8c] sm:$0xf]
        %v4963 = vld [vmem:[%s19 + $0x90] sm:$0xf]
        %v4964 = vld [vmem:[%s19 + $0x94] sm:$0xf]
        %v4965 = vld [vmem:[%s19 + $0x98] sm:$0xf]
        %v4966 = vld [vmem:[%s19 + $0x9c] sm:$0xf]
        %v4967 = vld [vmem:[%s19 + $0xa0] sm:$0xf]
        %v4968 = vld [vmem:[%s19 + $0xa4] sm:$0xf]
        %v4969 = vld [vmem:[%s19 + $0xa8] sm:$0xf]
        %v4970 = vld [vmem:[%s19 + $0xac] sm:$0xf]
        %v4971 = vld [vmem:[%s19 + $0xb0] sm:$0xf]
        %v4972 = vld [vmem:[%s19 + $0xb4] sm:$0xf]
        %v4973 = vld [vmem:[%s19 + $0xb8] sm:$0xf]
        %v4974 = vld [vmem:[%s19 + $0xbc] sm:$0xf]
        %v4975 = vld [vmem:[%s19 + $0xc0] sm:$0xf]
        %v4976 = vld [vmem:[%s19 + $0xc4] sm:$0xf]
        %v4977 = vld [vmem:[%s19 + $0xc8] sm:$0xf]
        %v4978 = vld [vmem:[%s19 + $0xcc] sm:$0xf]
        %v4979 = vld [vmem:[%s19 + $0xd0] sm:$0xf]
        %v4980 = vld [vmem:[%s19 + $0xd4] sm:$0xf]
        %v4981 = vld [vmem:[%s19 + $0xd8] sm:$0xf]
        %v4982 = vld [vmem:[%s19 + $0xdc] sm:$0xf]
        %v4983 = vld [vmem:[%s19 + $0xe0] sm:$0xf]
        %v4984 = vld [vmem:[%s19 + $0xe4] sm:$0xf]
        %v4985 = vld [vmem:[%s19 + $0xe8] sm:$0xf]
        %v4986 = vld [vmem:[%s19 + $0xec] sm:$0xf]
        %v4987 = vld [vmem:[%s19 + $0xf0] sm:$0xf]
        %v4988 = vld [vmem:[%s19 + $0xf4] sm:$0xf]
        %v4989 = vld [vmem:[%s19 + $0xf8] sm:$0xf]
        %v4990 = vld [vmem:[%s19 + $0xfc] sm:$0xf]
        %v4991 = vld [vmem:[%s19 + $0x100] sm:$0xf]
        %v4992 = vld [vmem:[%s19 + $0x104] sm:$0xf]
        %v4993 = vld [vmem:[%s19 + $0x108] sm:$0xf]
        %v4994 = vld [vmem:[%s19 + $0x10c] sm:$0xf]
        %v4995 = vld [vmem:[%s19 + $0x110] sm:$0xf]
        %v4996 = vld [vmem:[%s19 + $0x114] sm:$0xf]
        %v4997 = vld [vmem:[%s19 + $0x118] sm:$0xf]
        %v4998 = vld [vmem:[%s19 + $0x11c] sm:$0xf]
        %v4999 = vld [vmem:[%s20] sm:$0x1]
        %v5001 = vlaneseq
        %v5002 = vshrl.u32 %v5001, 7
        %v5003 = vsub.s32 0, %v5002
        %v5004 = vrot.slane %v4999, %v5003
        %v5078 = vunpack.c.l.b16 %v4927
        %v5079 = vunpack.c.l.b16 %v4928
        %v5080 = vunpack.c.l.b16 %v4929
        %v5081 = vunpack.c.l.b16 %v4930
        %v5082 = vunpack.c.l.b16 %v4931
        %v5083 = vunpack.c.l.b16 %v4932
        %v5084 = vunpack.c.l.b16 %v4933
        %v5085 = vunpack.c.l.b16 %v4934
        %v5086 = vunpack.c.l.b16 %v4935
        %v5087 = vunpack.c.l.b16 %v4936
        %v5088 = vunpack.c.l.b16 %v4937
        %v5089 = vunpack.c.l.b16 %v4938
        %v5090 = vunpack.c.l.b16 %v4939
        %v5091 = vunpack.c.l.b16 %v4940
        %v5092 = vunpack.c.l.b16 %v4941
        %v5093 = vunpack.c.l.b16 %v4942
        %v5094 = vunpack.c.l.b16 %v4943
        %v5095 = vunpack.c.l.b16 %v4944
        %v5096 = vunpack.c.l.b16 %v4945
        %v5097 = vunpack.c.l.b16 %v4946
        %v5098 = vunpack.c.l.b16 %v4947
        %v5099 = vunpack.c.l.b16 %v4948
        %v5100 = vunpack.c.l.b16 %v4949
        %v5101 = vunpack.c.l.b16 %v4950
        %v5102 = vunpack.c.l.b16 %v4951
        %v5103 = vunpack.c.l.b16 %v4952
        %v5104 = vunpack.c.l.b16 %v4953
        %v5105 = vunpack.c.l.b16 %v4954
        %v5106 = vunpack.c.l.b16 %v4955
        %v5107 = vunpack.c.l.b16 %v4956
        %v5108 = vunpack.c.l.b16 %v4957
        %v5109 = vunpack.c.l.b16 %v4958
        %v5110 = vunpack.c.l.b16 %v4959
        %v5111 = vunpack.c.l.b16 %v4960
        %v5112 = vunpack.c.l.b16 %v4961
        %v5113 = vunpack.c.l.b16 %v4962
        %v5114 = vunpack.c.l.b16 %v4963
        %v5115 = vunpack.c.l.b16 %v4964
        %v5116 = vunpack.c.l.b16 %v4965
        %v5117 = vunpack.c.l.b16 %v4966
        %v5118 = vunpack.c.l.b16 %v4967
        %v5119 = vunpack.c.l.b16 %v4968
        %v5120 = vunpack.c.l.b16 %v4969
        %v5121 = vunpack.c.l.b16 %v4970
        %v5122 = vunpack.c.l.b16 %v4971
        %v5123 = vunpack.c.l.b16 %v4972
        %v5124 = vunpack.c.l.b16 %v4973
        %v5125 = vunpack.c.l.b16 %v4974
        %v5126 = vunpack.c.l.b16 %v4975
        %v5127 = vunpack.c.l.b16 %v4976
        %v5128 = vunpack.c.l.b16 %v4977
        %v5129 = vunpack.c.l.b16 %v4978
        %v5130 = vunpack.c.l.b16 %v4979
        %v5131 = vunpack.c.l.b16 %v4980
        %v5132 = vunpack.c.l.b16 %v4981
        %v5133 = vunpack.c.l.b16 %v4982
        %v5134 = vunpack.c.l.b16 %v4983
        %v5135 = vunpack.c.l.b16 %v4984
        %v5136 = vunpack.c.l.b16 %v4985
        %v5137 = vunpack.c.l.b16 %v4986
        %v5138 = vunpack.c.l.b16 %v4987
        %v5139 = vunpack.c.l.b16 %v4988
        %v5140 = vunpack.c.l.b16 %v4989
        %v5141 = vunpack.c.l.b16 %v4990
        %v5142 = vunpack.c.l.b16 %v4991
        %v5143 = vunpack.c.l.b16 %v4992
        %v5144 = vunpack.c.l.b16 %v4993
        %v5145 = vunpack.c.l.b16 %v4994
        %v5146 = vunpack.c.l.b16 %v4995
        %v5147 = vunpack.c.l.b16 %v4996
        %v5148 = vunpack.c.l.b16 %v4997
        %v5149 = vunpack.c.l.b16 %v4998
        %v5150 = vpack.c.b16 %v5079, %v5078
        %v5151 = vpack.c.b16 %v5081, %v5080
        %v5152 = vpack.c.b16 %v5083, %v5082
        %v5153 = vpack.c.b16 %v5085, %v5084
        %v5154 = vpack.c.b16 %v5087, %v5086
        %v5155 = vpack.c.b16 %v5089, %v5088
        %v5156 = vpack.c.b16 %v5091, %v5090
        %v5157 = vpack.c.b16 %v5093, %v5092
        %v5158 = vpack.c.b16 %v5095, %v5094
        %v5159 = vpack.c.b16 %v5097, %v5096
        %v5160 = vpack.c.b16 %v5099, %v5098
        %v5161 = vpack.c.b16 %v5101, %v5100
        %v5162 = vpack.c.b16 %v5103, %v5102
        %v5163 = vpack.c.b16 %v5105, %v5104
        %v5164 = vpack.c.b16 %v5107, %v5106
        %v5165 = vpack.c.b16 %v5109, %v5108
        %v5166 = vpack.c.b16 %v5111, %v5110
        %v5167 = vpack.c.b16 %v5113, %v5112
        %v5168 = vpack.c.b16 %v5115, %v5114
        %v5169 = vpack.c.b16 %v5117, %v5116
        %v5170 = vpack.c.b16 %v5119, %v5118
        %v5171 = vpack.c.b16 %v5121, %v5120
        %v5172 = vpack.c.b16 %v5123, %v5122
        %v5173 = vpack.c.b16 %v5125, %v5124
        %v5174 = vpack.c.b16 %v5127, %v5126
        %v5175 = vpack.c.b16 %v5129, %v5128
        %v5176 = vpack.c.b16 %v5131, %v5130
        %v5177 = vpack.c.b16 %v5133, %v5132
        %v5178 = vpack.c.b16 %v5135, %v5134
        %v5179 = vpack.c.b16 %v5137, %v5136
        %v5180 = vpack.c.b16 %v5139, %v5138
        %v5181 = vpack.c.b16 %v5141, %v5140
        %v5182 = vpack.c.b16 %v5143, %v5142
        %v5183 = vpack.c.b16 %v5145, %v5144
        %v5184 = vpack.c.b16 %v5147, %v5146
        %v5185 = vpack.c.b16 %v5149, %v5148
        %v5222 = vsel %vm1620, %v4837, 0
        %v5224 = vsel %vm1620, %v4838, 0
        %v5226 = vsel %vm1620, %v4839, 0
        %v5229 = vsel %vm1620, %v4874, 0
        %5231 = vmatprep.subr.bf16.mxu0 0
        %5232 = vmatpush1.bf16.msra.mxu0 %v5150
        %5233 = vmatprep.subr.bf16.mxu0 0
        %5234 = vmatpush1.bf16.msra.mxu0 %v5151
        %5235 = vmatprep.subr.bf16.mxu0 0
        %5236 = vmatpush1.bf16.msra.mxu0 %v5152
        %5237 = vmatprep.subr.bf16.mxu0 0
        %5238 = vmatpush1.bf16.msra.mxu0 %v5153
        %5239 = vmatprep.subr.bf16.mxu0 0
        %5240 = vmatpush1.bf16.msra.mxu0 %v5154
        %5241 = vmatprep.subr.bf16.mxu0 0
        %5242 = vmatpush1.bf16.msra.mxu0 %v5155
        %5243 = vmatprep.subr.bf16.mxu0 0
        %5244 = vmatpush1.bf16.msra.mxu0 %v5156
        %5245 = vmatprep.subr.bf16.mxu0 0
        %5246 = vmatpush1.bf16.msra.mxu0 %v5157
        %5247 = vmatprep.subr.bf16.mxu0 0
        %5248 = vmatpush1.bf16.msra.mxu0 %v5158
        %5249 = vmatprep.subr.bf16.mxu0 0
        %5250 = vmatpush1.bf16.msra.mxu0 %v5159
        %5251 = vmatprep.subr.bf16.mxu0 0
        %5252 = vmatpush1.bf16.msra.mxu0 %v5160
        %5253 = vmatprep.subr.bf16.mxu0 0
        %5254 = vmatpush1.bf16.msra.mxu0 %v5161
        %5255 = vmatprep.subr.bf16.mxu0 0
        %5256 = vmatpush1.bf16.msra.mxu0 %v5162
        %5257 = vmatprep.subr.bf16.mxu0 0
        %5258 = vmatpush1.bf16.msra.mxu0 %v5163
        %5259 = vmatprep.subr.bf16.mxu0 0
        %5260 = vmatpush1.bf16.msra.mxu0 %v5164
        %5261 = vmatprep.subr.bf16.mxu0 0
        %5262 = vmatpush1.bf16.msra.mxu0 %v5165
        %5263 = vmatprep.mubr.bf16.mxu0 %v4893
        %5264 = vmatmul.mubr.bf16.gmra.mrb[0].mxu0 %v4877
        %v5265 = vpop.f32.mrb[0].mxu0
        %v5266 = vadd.f32 %v5004, %v5265
        %v5267 = vpop.f32.mrb[0].mxu0
        %v5268 = vpop.f32.mrb[0].mxu0
        %v5269 = vadd.f32 %v5004, %v5268
        %v5270 = vpop.f32.mrb[0].mxu0
        %5271 = vmatprep.mubr.bf16.mxu0 %v4897
        %5272 = vmatmul.mubr.bf16.gmra.mrb[0].mxu0 %v4881
        %v5273 = vpop.f32.mrb[0].mxu0
        %v5274 = vadd.f32 %v5004, %v5273
        %v5275 = vpop.f32.mrb[0].mxu0
        %v5276 = vpop.f32.mrb[0].mxu0
        %v5277 = vadd.f32 %v5004, %v5276
        %v5278 = vpop.f32.mrb[0].mxu0
        %5279 = vmatprep.mubr.bf16.mxu0 %v4901
        %5280 = vmatmul.mubr.bf16.gmra.mrb[0].mxu0 %v4885
        %v5281 = vpop.f32.mrb[0].mxu0
        %v5282 = vadd.f32 %v5004, %v5281
        %v5283 = vpop.f32.mrb[0].mxu0
        %v5284 = vpop.f32.mrb[0].mxu0
        %v5285 = vadd.f32 %v5004, %v5284
        %v5286 = vpop.f32.mrb[0].mxu0
        %5287 = vmatprep.mubr.bf16.mxu0 %v4905
        %5288 = vmatmul.mubr.bf16.gmra.mrb[0].mxu0 %v4889
        %v5289 = vpop.f32.mrb[0].mxu0
        %v5290 = vadd.f32 %v5004, %v5289
        %v5291 = vpop.f32.mrb[0].mxu0
        %v5292 = vpop.f32.mrb[0].mxu0
        %v5293 = vadd.f32 %v5004, %v5292
        %v5294 = vpop.f32.mrb[0].mxu0
        %5295 = vdwg.mxu0
        %5296 = vmatprep.subr.bf16.mxu0 0
        %5297 = vmatpush1.bf16.msra.mxu0 %v5166
        %5298 = vmatprep.subr.bf16.mxu0 0
        %5299 = vmatpush1.bf16.msra.mxu0 %v5167
        %5300 = vmatprep.subr.bf16.mxu0 0
        %5301 = vmatpush1.bf16.msra.mxu0 %v5168
        %5302 = vmatprep.subr.bf16.mxu0 0
        %5303 = vmatpush1.bf16.msra.mxu0 %v5169
        %5304 = vmatprep.subr.bf16.mxu0 0
        %5305 = vmatpush1.bf16.msra.mxu0 %v5170
        %5306 = vmatprep.subr.bf16.mxu0 0
        %5307 = vmatpush1.bf16.msra.mxu0 %v5171
        %5308 = vmatprep.subr.bf16.mxu0 0
        %5309 = vmatpush1.bf16.msra.mxu0 %v5172
        %5310 = vmatprep.subr.bf16.mxu0 0
        %5311 = vmatpush1.bf16.msra.mxu0 %v5173
        %5312 = vmatprep.subr.bf16.mxu0 0
        %5313 = vmatpush1.bf16.msra.mxu0 %v5174
        %5314 = vmatprep.subr.bf16.mxu0 0
        %5315 = vmatpush1.bf16.msra.mxu0 %v5175
        %5316 = vmatprep.subr.bf16.mxu0 0
        %5317 = vmatpush1.bf16.msra.mxu0 %v5176
        %5318 = vmatprep.subr.bf16.mxu0 0
        %5319 = vmatpush1.bf16.msra.mxu0 %v5177
        %5320 = vmatprep.subr.bf16.mxu0 0
        %5321 = vmatpush1.bf16.msra.mxu0 %v5178
        %5322 = vmatprep.subr.bf16.mxu0 0
        %5323 = vmatpush1.bf16.msra.mxu0 %v5179
        %5324 = vmatprep.subr.bf16.mxu0 0
        %5325 = vmatpush1.bf16.msra.mxu0 %v5180
        %5326 = vmatprep.subr.bf16.mxu0 0
        %5327 = vmatpush1.bf16.msra.mxu0 %v5181
        %5328 = vmatprep.mubr.bf16.mxu0 %v4881
        %5329 = vmatmul.mubr.bf16.gmra.mrb[0].mxu0 %v4909
        %v5330 = vpop.f32.mrb[0].mxu0
        %v5331 = vadd.f32 %v5266, %v5330
        %v5332 = vpop.f32.mrb[0].mxu0
        %v5333 = vpop.f32.mrb[0].mxu0
        %v5334 = vadd.f32 %v5269, %v5333
        %v5335 = vpop.f32.mrb[0].mxu0
        %5336 = vmatprep.mubr.bf16.mxu0 %v4885
        %5337 = vmatmul.mubr.bf16.gmra.mrb[0].mxu0 %v4913
        %v5338 = vpop.f32.mrb[0].mxu0
        %v5339 = vadd.f32 %v5274, %v5338
        %v5340 = vpop.f32.mrb[0].mxu0
        %v5341 = vpop.f32.mrb[0].mxu0
        %v5342 = vadd.f32 %v5277, %v5341
        %v5343 = vpop.f32.mrb[0].mxu0
        %5344 = vmatprep.mubr.bf16.mxu0 %v4889
        %5345 = vmatmul.mubr.bf16.gmra.mrb[0].mxu0 %v4917
        %v5346 = vpop.f32.mrb[0].mxu0
        %v5347 = vadd.f32 %v5282, %v5346
        %v5348 = vpop.f32.mrb[0].mxu0
        %v5349 = vpop.f32.mrb[0].mxu0
        %v5350 = vadd.f32 %v5285, %v5349
        %v5351 = vpop.f32.mrb[0].mxu0
        %5352 = vmatprep.mubr.bf16.mxu0 %v4925
        %5353 = vmatmul.mubr.bf16.gmra.mrb[0].mxu0 %v4921
        %v5354 = vpop.f32.mrb[0].mxu0
        %v5355 = vadd.f32 %v5290, %v5354
        %v5356 = vpop.f32.mrb[0].mxu0
        %v5357 = vpop.f32.mrb[0].mxu0
        %v5358 = vadd.f32 %v5293, %v5357
        %v5359 = vpop.f32.mrb[0].mxu0
        %5360 = vdwg.mxu0
        %5361 = vmatprep.subr.bf16.mxu0 0
        %5362 = vmatpush1.bf16.msra.mxu0 %v5182
        %5363 = vmatprep.subr.bf16.mxu0 0
        %5364 = vmatpush1.bf16.msra.mxu0 %v5183
        %5365 = vmatprep.subr.bf16.mxu0 0
        %5366 = vmatpush1.bf16.msra.mxu0 %v5184
        %5367 = vmatprep.subr.bf16.mxu0 0
        %5368 = vmatpush1.bf16.msra.mxu0 %v5185
        %5369 = vmatprep.subr.bf16.mxu0 0
        %5370 = vmatpush1.bf16.msra.mxu0 0
        %5371 = vmatprep.subr.bf16.mxu0 0
        %5372 = vmatpush1.bf16.msra.mxu0 0
        %5373 = vmatprep.subr.bf16.mxu0 0
        %5374 = vmatpush1.bf16.msra.mxu0 0
        %5375 = vmatprep.subr.bf16.mxu0 0
        %5376 = vmatpush1.bf16.msra.mxu0 0
        %5377 = vmatprep.subr.bf16.mxu0 0
        %5378 = vmatpush1.bf16.msra.mxu0 0
        %5379 = vmatprep.subr.bf16.mxu0 0
        %5380 = vmatpush1.bf16.msra.mxu0 0
        %5381 = vmatprep.subr.bf16.mxu0 0
        %5382 = vmatpush1.bf16.msra.mxu0 0
        %5383 = vmatprep.subr.bf16.mxu0 0
        %5384 = vmatpush1.bf16.msra.mxu0 0
        %5385 = vmatprep.subr.bf16.mxu0 0
        %5386 = vmatpush1.bf16.msra.mxu0 0
        %5387 = vmatprep.subr.bf16.mxu0 0
        %5388 = vmatpush1.bf16.msra.mxu0 0
        %5389 = vmatprep.subr.bf16.mxu0 0
        %5390 = vmatpush1.bf16.msra.mxu0 0
        %5391 = vmatprep.subr.bf16.mxu0 0
        %5392 = vmatpush1.bf16.msra.mxu0 0
        %5393 = vmatprep.mubr.bf16.mxu0 0
        %5394 = vmatmul.mubr.bf16.gmra.mrb[0].mxu0 %v5222
        %v5395 = vpop.f32.mrb[0].mxu0
        %v5396 = vadd.f32 %v5331, %v5395
        %v5397 = vpop.f32.mrb[0].mxu0
        %v5398 = vpop.f32.mrb[0].mxu0
        %v5399 = vadd.f32 %v5334, %v5398
        %v5400 = vpop.f32.mrb[0].mxu0
        %5401 = vmatprep.mubr.bf16.mxu0 0
        %5402 = vmatmul.mubr.bf16.gmra.mrb[0].mxu0 %v5224
        %v5403 = vpop.f32.mrb[0].mxu0
        %v5404 = vadd.f32 %v5339, %v5403
        %v5405 = vpop.f32.mrb[0].mxu0
        %v5406 = vpop.f32.mrb[0].mxu0
        %v5407 = vadd.f32 %v5342, %v5406
        %v5408 = vpop.f32.mrb[0].mxu0
        %5409 = vmatprep.mubr.bf16.mxu0 0
        %5410 = vmatmul.mubr.bf16.gmra.mrb[0].mxu0 %v5226
        %v5411 = vpop.f32.mrb[0].mxu0
        %v5412 = vadd.f32 %v5347, %v5411
        %v5413 = vpop.f32.mrb[0].mxu0
        %v5414 = vpop.f32.mrb[0].mxu0
        %v5415 = vadd.f32 %v5350, %v5414
        %v5416 = vpop.f32.mrb[0].mxu0
        %5417 = vmatprep.mubr.bf16.mxu0 0
        %5418 = vmatmul.mubr.bf16.gmra.mrb[0].mxu0 %v5229
        %v5419 = vpop.f32.mrb[0].mxu0
        %v5420 = vadd.f32 %v5355, %v5419
        %v5421 = vpop.f32.mrb[0].mxu0
        %v5422 = vpop.f32.mrb[0].mxu0
        %v5423 = vadd.f32 %v5358, %v5422
        %v5424 = vpop.f32.mrb[0].mxu0
        %5425 = vdwg.mxu0
        %v5426 = vmax.f32 %v5396, 0.0
        %v5427 = vmax.f32 %v5399, 0.0
        %v5428 = vmax.f32 %v5404, 0.0
        %v5429 = vmax.f32 %v5407, 0.0
        %v5430 = vmax.f32 %v5412, 0.0
        %v5431 = vmax.f32 %v5415, 0.0
        %v5432 = vmax.f32 %v5420, 0.0
        %v5433 = vmax.f32 %v5423, 0.0
        %v5434 = vpack.c.bf16 %v5427, %v5426
        %v5435 = vpack.c.bf16 %v5429, %v5428
        %v5436 = vpack.c.bf16 %v5431, %v5430
        %v5437 = vpack.c.bf16 %v5433, %v5432
        %v5438 = vld [vmem:[%s21] sm:$0xff]
        %v5439 = vld [vmem:[%s21 + $0x8] sm:$0xff]
        %v5440 = vld [vmem:[%s21 + $0x10] sm:$0xff]
        %v5441 = vld [vmem:[%s21 + $0x18] sm:$0xff]
        %v5442 = vld [vmem:[%s21 + $0x20] sm:$0xff]
        %v5443 = vld [vmem:[%s21 + $0x28] sm:$0xff]
        %v5444 = vld [vmem:[%s21 + $0x30] sm:$0xff]
        %v5445 = vld [vmem:[%s21 + $0x38] sm:$0xff]
        %v5446 = vld [vmem:[%s22] sm:$0x3]
        %v5448 = vlaneseq
        %v5449 = vshrl.u32 %v5448, 7
        %v5450 = vsub.s32 0, %v5449
        %v5451 = vrot.slane %v5446, %v5450
        %v5452 = vlaneseq
        %v5453 = vshrl.u32 %v5452, 7
        %v5454 = vsub.s32 1, %v5453
        %v5455 = vrot.slane %v5446, %v5454
        %v5466 = vunpack.c.l.b16 %v5438
        %v5467 = vunpack.c.h.b16 %v5438
        %v5468 = vunpack.c.l.b16 %v5439
        %v5469 = vunpack.c.h.b16 %v5439
        %v5470 = vunpack.c.l.b16 %v5440
        %v5471 = vunpack.c.h.b16 %v5440
        %v5472 = vunpack.c.l.b16 %v5441
        %v5473 = vunpack.c.h.b16 %v5441
        %v5474 = vunpack.c.l.b16 %v5442
        %v5475 = vunpack.c.h.b16 %v5442
        %v5476 = vunpack.c.l.b16 %v5443
        %v5477 = vunpack.c.h.b16 %v5443
        %v5478 = vunpack.c.l.b16 %v5444
        %v5479 = vunpack.c.h.b16 %v5444
        %v5480 = vunpack.c.l.b16 %v5445
        %v5481 = vunpack.c.h.b16 %v5445
        %v5482 = vpack.c.b16 %v5468, %v5466
        %v5483 = vpack.c.b16 %v5469, %v5467
        %v5484 = vpack.c.b16 %v5472, %v5470
        %v5485 = vpack.c.b16 %v5473, %v5471
        %v5486 = vpack.c.b16 %v5476, %v5474
        %v5487 = vpack.c.b16 %v5477, %v5475
        %v5488 = vpack.c.b16 %v5480, %v5478
        %v5489 = vpack.c.b16 %v5481, %v5479
        %v5499 = vsel %vm1620, %v5434, 0
        %v5502 = vsel %vm1620, %v5435, 0
        %v5505 = vsel %vm1620, %v5436, 0
        %v5508 = vsel %vm1620, %v5437, 0
        %5510 = vmatprep.subr.bf16.mxu0 %v5483
        %5511 = vmatpush1.bf16.msra.mxu0 %v5482
        %5512 = vmatprep.subr.bf16.mxu0 %v5485
        %5513 = vmatpush1.bf16.msra.mxu0 %v5484
        %5514 = vmatprep.subr.bf16.mxu0 %v5487
        %5515 = vmatpush1.bf16.msra.mxu0 %v5486
        %5516 = vmatprep.subr.bf16.mxu0 %v5489
        %5517 = vmatpush1.bf16.msra.mxu0 %v5488
        %5518 = vmatprep.subr.bf16.mxu0 0
        %5519 = vmatpush1.bf16.msra.mxu0 0
        %5520 = vmatprep.subr.bf16.mxu0 0
        %5521 = vmatpush1.bf16.msra.mxu0 0
        %5522 = vmatprep.subr.bf16.mxu0 0
        %5523 = vmatpush1.bf16.msra.mxu0 0
        %5524 = vmatprep.subr.bf16.mxu0 0
        %5525 = vmatpush1.bf16.msra.mxu0 0
        %5526 = vmatprep.subr.bf16.mxu0 0
        %5527 = vmatpush1.bf16.msra.mxu0 0
        %5528 = vmatprep.subr.bf16.mxu0 0
        %5529 = vmatpush1.bf16.msra.mxu0 0
        %5530 = vmatprep.subr.bf16.mxu0 0
        %5531 = vmatpush1.bf16.msra.mxu0 0
        %5532 = vmatprep.subr.bf16.mxu0 0
        %5533 = vmatpush1.bf16.msra.mxu0 0
        %5534 = vmatprep.subr.bf16.mxu0 0
        %5535 = vmatpush1.bf16.msra.mxu0 0
        %5536 = vmatprep.subr.bf16.mxu0 0
        %5537 = vmatpush1.bf16.msra.mxu0 0
        %5538 = vmatprep.subr.bf16.mxu0 0
        %5539 = vmatpush1.bf16.msra.mxu0 0
        %5540 = vmatprep.subr.bf16.mxu0 0
        %5541 = vmatpush1.bf16.msra.mxu0 0
        %5542 = vmatprep.mubr.bf16.mxu0 0
        %5543 = vmatmul.mubr.bf16.gmra.mrb[0].mxu0 %v5499
        %v5544 = vpop.f32.mrb[0].mxu0
        %v5545 = vadd.f32 %v5451, %v5544
        %v5546 = vpop.f32.mrb[0].mxu0
        %v5547 = vadd.f32 %v5455, %v5546
        %v5548 = vpop.f32.mrb[0].mxu0
        %v5549 = vadd.f32 %v5451, %v5548
        %v5550 = vpop.f32.mrb[0].mxu0
        %v5551 = vadd.f32 %v5455, %v5550
        %5552 = vmatprep.mubr.bf16.mxu0 0
        %5553 = vmatmul.mubr.bf16.gmra.mrb[0].mxu0 %v5502
        %v5554 = vpop.f32.mrb[0].mxu0
        %v5555 = vadd.f32 %v5451, %v5554
        %v5556 = vpop.f32.mrb[0].mxu0
        %v5557 = vadd.f32 %v5455, %v5556
        %v5558 = vpop.f32.mrb[0].mxu0
        %v5559 = vadd.f32 %v5451, %v5558
        %v5560 = vpop.f32.mrb[0].mxu0
        %v5561 = vadd.f32 %v5455, %v5560
        %5562 = vmatprep.mubr.bf16.mxu0 0
        %5563 = vmatmul.mubr.bf16.gmra.mrb[0].mxu0 %v5505
        %v5564 = vpop.f32.mrb[0].mxu0
        %v5565 = vadd.f32 %v5451, %v5564
        %v5566 = vpop.f32.mrb[0].mxu0
        %v5567 = vadd.f32 %v5455, %v5566
        %v5568 = vpop.f32.mrb[0].mxu0
        %v5569 = vadd.f32 %v5451, %v5568
        %v5570 = vpop.f32.mrb[0].mxu0
        %v5571 = vadd.f32 %v5455, %v5570
        %5572 = vmatprep.mubr.bf16.mxu0 0
        %5573 = vmatmul.mubr.bf16.gmra.mrb[0].mxu0 %v5508
        %v5574 = vpop.f32.mrb[0].mxu0
        %v5575 = vadd.f32 %v5451, %v5574
        %v5576 = vpop.f32.mrb[0].mxu0
        %v5577 = vadd.f32 %v5455, %v5576
        %v5578 = vpop.f32.mrb[0].mxu0
        %v5579 = vadd.f32 %v5451, %v5578
        %v5580 = vpop.f32.mrb[0].mxu0
        %v5581 = vadd.f32 %v5455, %v5580
        %5582 = vdwg.mxu0
        %v5583 = vunpack.c.l.bf16 %v4302
        %v5584 = vunpack.c.l.bf16 %v4303
        %v5585 = vunpack.c.h.bf16 %v4302
        %v5586 = vunpack.c.h.bf16 %v4303
        %v5587 = vunpack.c.l.bf16 %v4304
        %v5588 = vunpack.c.l.bf16 %v4305
        %v5589 = vunpack.c.h.bf16 %v4304
        %v5590 = vunpack.c.h.bf16 %v4305
        %v5591 = vunpack.c.l.bf16 %v4306
        %v5592 = vunpack.c.l.bf16 %v4307
        %v5593 = vunpack.c.h.bf16 %v4306
        %v5594 = vunpack.c.h.bf16 %v4307
        %v5595 = vunpack.c.l.bf16 %v4308
        %v5596 = vunpack.c.l.bf16 %v4309
        %v5597 = vunpack.c.h.bf16 %v4308
        %v5598 = vunpack.c.h.bf16 %v4309
        %v5599 = vadd.f32 %v5545, %v5583
        %v5600 = vadd.f32 %v5547, %v5584
        %v5601 = vadd.f32 %v5549, %v5585
        %v5602 = vadd.f32 %v5551, %v5586
        %v5603 = vadd.f32 %v5555, %v5587
        %v5604 = vadd.f32 %v5557, %v5588
        %v5605 = vadd.f32 %v5559, %v5589
        %v5606 = vadd.f32 %v5561, %v5590
        %v5607 = vadd.f32 %v5565, %v5591
        %v5608 = vadd.f32 %v5567, %v5592
        %v5609 = vadd.f32 %v5569, %v5593
        %v5610 = vadd.f32 %v5571, %v5594
        %v5611 = vadd.f32 %v5575, %v5595
        %v5612 = vadd.f32 %v5577, %v5596
        %v5613 = vadd.f32 %v5579, %v5597
        %v5614 = vadd.f32 %v5581, %v5598
        %v5615 = vmax.f32 %v5599, 0.0
        %v5616 = vmax.f32 %v5600, 0.0
        %v5617 = vmax.f32 %v5601, 0.0
        %v5618 = vmax.f32 %v5602, 0.0
        %v5619 = vmax.f32 %v5603, 0.0
        %v5620 = vmax.f32 %v5604, 0.0
        %v5621 = vmax.f32 %v5605, 0.0
        %v5622 = vmax.f32 %v5606, 0.0
        %v5623 = vmax.f32 %v5607, 0.0
        %v5624 = vmax.f32 %v5608, 0.0
        %v5625 = vmax.f32 %v5609, 0.0
        %v5626 = vmax.f32 %v5610, 0.0
        %v5627 = vmax.f32 %v5611, 0.0
        %v5628 = vmax.f32 %v5612, 0.0
        %v5629 = vmax.f32 %v5613, 0.0
        %v5630 = vmax.f32 %v5614, 0.0
        %5631 = vst [vmem:[%s706] sm:$0xff] %v5615
        %5632 = vst [vmem:[%s706 + $0x8] sm:$0xff] %v5616
        %5633 = vst [vmem:[%s706 + $0x10] sm:$0xff] %v5617
        %5634 = vst [vmem:[%s706 + $0x18] sm:$0xff] %v5618
        %5635 = vst [vmem:[%s706 + $0x20] sm:$0xff] %v5619
        %5636 = vst [vmem:[%s706 + $0x28] sm:$0xff] %v5620
        %5637 = vst [vmem:[%s706 + $0x30] sm:$0xff] %v5621
        %5638 = vst [vmem:[%s706 + $0x38] sm:$0xff] %v5622
        %5639 = vst [vmem:[%s706 + $0x40] sm:$0xff] %v5623
        %5640 = vst [vmem:[%s706 + $0x48] sm:$0xff] %v5624
        %5641 = vst [vmem:[%s706 + $0x50] sm:$0xff] %v5625
        %5642 = vst [vmem:[%s706 + $0x58] sm:$0xff] %v5626
        %5643 = vst [vmem:[%s706 + $0x60] sm:$0xff] %v5627
        %5644 = vst [vmem:[%s706 + $0x68] sm:$0xff] %v5628
        %5645 = vst [vmem:[%s706 + $0x70] sm:$0xff] %v5629
        %5646 = vst [vmem:[%s706 + $0x78] sm:$0xff] %v5630
        %s5647 = sand.u32 %s533, 1
        %s5648 = scalar_lea.sflag [#allocation3], %s5647
        %s5649 = sand.u32 %s533, 1
        %s5650 = smul.addr %s5649, 128
        %s5651 = scalar_lea.vmem [#allocation2], %s5650
        // Predicated region
        $region113: #{my_resnet50_forward.1} parent=111 // pred_check
          %p5652 = pneg %p543
        $region114: #{my_resnet50_forward.1} parent=111 // pred_check_branch
          %5654 = sbr.rel (%p5652) target = $region116
        $region115: #{my_resnet50_forward.1} parent=111 // pred_region
          %s5655 = smul.u32 8, %s37
          %s5657 = ssub.s32 2048, 2048
          %5658 = vsyncadd %s5648, %s5657
          %s5659 = smul.addr %s5655, 2
          %s5660 = smul.addr %s5659, 128
          %s5661 = scalar_lea.hbm %s23, %s5660
          %s5662 = sshll.u32 %s5651, 4
          %s5663 = int_to_ptr.vmem [resolvable:$true] %s5662
          %5668 = dma.vmem_to_hbm [thread:$0]  %s5663, 2048, %s5661, %s5648, 256, 256, 16
        $region116: #{my_resnet50_forward.1} parent=111 // pred_fallthru
          _
      $region112: #{my_resnet50_forward.1} parent=5 // pred_fallthru
        _
      %p5669 = scmp.le.s32.totalorder 2, %s32
      // Predicated region
      $region117: #{my_resnet50_forward.1} parent=5 // pred_check
        %p5670 = pneg %p5669
      $region118: #{my_resnet50_forward.1} parent=5 // pred_check_branch
        %5672 = sbr.rel (%p5670) target = $region120
      $region119: #{my_resnet50_forward.1} parent=5 // pred_region
        %s5673 = ssub.s32 %s32, 2
        // Predicated region
        $region121: #{my_resnet50_forward.1} parent=119 // pred_check
          %p5674 = pneg %p549
        $region122: #{my_resnet50_forward.1} parent=119 // pred_check_branch
          %5676 = sbr.rel (%p5674) target = $region124
        $region123: #{my_resnet50_forward.1} parent=119 // pred_region
          %s5677 = sand.u32 %s534, 1
          %s5678 = scalar_lea.sflag [#allocation3], %s5677
          %s5679 = sand.u32 %s534, 1
          %s5680 = smul.addr %s5679, 128
          %s5681 = scalar_lea.vmem [#allocation2], %s5680
          %5682 = dma.done %s5678, 2048
        $region124: #{my_resnet50_forward.1} parent=119 // pred_fallthru
          _
      $region120: #{my_resnet50_forward.1} parent=5 // pred_fallthru
        _
    $region6: #{my_resnet50_forward.1} parent=1 // loop_footer
      %s36 = sadd.s32 1, %s32
    $region7: #{my_resnet50_forward.1} parent=1 // loop_footer_branch
      %31 = sbr.rel target = $region3
    $region8: #{my_resnet50_forward.1} parent=1 // loop_exit
      _
    %5683 = vsyncpa [#allocation3], 1
    %s5684 = scalar_lea.sflag [#allocation3], 1
    %5685 = vsyncpa %s5684, 1

</llo_original>
